<compile_context>
chip_gen: v7x
topology: tpu7x:2x2x1
jax: 0.10.0
libtpu: 0.0.40
codegen_flags: <defaults>
</compile_context>

<pallas_src>
import jax
import jax.numpy as jnp
from jax.experimental import pallas as pl
from jax.experimental.pallas import tpu as pltpu

F_PAD = 128          # lane-dense feature width for every intermediate
_NEG = -3.4e38       # effectively -inf for the masked max


# ---------------------------------------------------------------------------
# Fused forward kernel
# ---------------------------------------------------------------------------

def _max_aggregate(h, adj, mask, has_nb, weighted):
    """agg[i, f] = max over src j with mask[i, j] of (adj[i, j] *) h[j, f].

    Running max over src columns: the accumulator stays (N, F_PAD); the
    (N, N, F) message tensor is never materialized.
    """
    neg = jnp.float32(_NEG)
    acc = jnp.full(h.shape, neg, jnp.float32)
    n_src = adj.shape[1]
    for j in range(n_src):                       # static unroll; N is tiny here
        m_col = mask[:, j:j + 1]                 # (N, 1) edge-present mask
        h_row = h[j:j + 1, :]                    # (1, F) src features
        msg = adj[:, j:j + 1] * h_row if weighted else h_row
        acc = jnp.maximum(acc, jnp.where(m_col, msg, neg))
    # nodes with no incoming edge -> 0 (matches scatter-max fill semantics)
    return jnp.where(has_nb, acc, jnp.float32(0.0))


def _fused_forward_kernel(x_ref, adj_ref, wcat_ref, bcat_ref, alpha_ref,
                          w1_ref, b1_ref, a7_ref, w2_ref, b2_ref, o_ref):
    x = x_ref[...]                               # (N, F_PAD)
    adj = adj_ref[...]                           # (N, N)  row = dst, col = src

    # Edge mask and "has any incoming edge": computed once, reused by all
    # 6 conv layers (edge_weight = 1/edge_attr is never exactly 0).
    mask = adj != 0.0                                              # (N, N)
    has_nb = jnp.max(jnp.abs(adj), axis=1, keepdims=True) > 0.0   # (N, 1)

    def conv(h, li, weighted):
        agg = _max_aggregate(h, adj, mask, has_nb, weighted)
        h_cat = jnp.concatenate([agg, h], axis=-1)                # (N, 2*F_PAD)
        out = (jnp.dot(h_cat, wcat_ref[li],                       # one MXU push
                       preferred_element_type=jnp.float32)
               + bcat_ref[li])
        a = alpha_ref[li]
        return jnp.where(out > 0.0, out, a * out)                 # PReLU

    # --- GraphConv block (edge-weighted max aggregation) + JK(max) ---
    h = conv(x, 0, True)
    jk = h
    h = conv(h, 1, True)
    jk = jnp.maximum(jk, h)
    h = conv(h, 2, True)
    h = jnp.maximum(jk, h)

    # --- SAGEConv block (unweighted max aggregation) + JK(max) ---
    h = conv(h, 3, False)
    jk = h
    h = conv(h, 4, False)
    jk = jnp.maximum(jk, h)
    h = conv(h, 5, False)
    h = jnp.maximum(jk, h)

    # --- head: lin1 -> PReLU(63) -> (dropout: identity in eval) -> lin2 ---
    h1 = jnp.dot(h, w1_ref[...], preferred_element_type=jnp.float32) + b1_ref[...]
    h1 = jnp.where(h1 > 0.0, h1, a7_ref[...] * h1)
    o_ref[...] = (jnp.dot(h1, w2_ref[...], preferred_element_type=jnp.float32)
                  + b2_ref[...])


# ---------------------------------------------------------------------------
# pallas_call wrapper (single fused call, full-array blocks, no grid)
# ---------------------------------------------------------------------------

def _full_spec(a):
    nd = a.ndim
    return pl.BlockSpec(a.shape, lambda *_, _nd=nd: (0,) * _nd)


def _fused_call(*args):
    n_pad = args[0].shape[0]
    return pl.pallas_call(
        _fused_forward_kernel,
        out_shape=jax.ShapeDtypeStruct((n_pad, F_PAD), jnp.float32),
        in_specs=[_full_spec(a) for a in args],
        out_specs=pl.BlockSpec((n_pad, F_PAD), lambda *_: (0, 0)),
        compiler_params=pltpu.CompilerParams(
            vmem_limit_bytes=32 * 1024 * 1024),
    )(*args)


# ---------------------------------------------------------------------------
# Parameter init (deterministic; weights pre-padded to 128 lanes and the
# per-layer [W_rel; W_root] pairs pre-stacked along K)
# ---------------------------------------------------------------------------

def init_params(key, input_dim, hidden_dim):
    def uni(k, shape, fan_in):
        s = 1.0 / jnp.sqrt(jnp.float32(fan_in))
        return jax.random.uniform(k, shape, jnp.float32, -s, s)

    keys = jax.random.split(key, 32)
    ki = iter(range(32))

    dims_in = [input_dim] + [hidden_dim] * 5
    wcat = jnp.zeros((6, 2 * F_PAD, F_PAD), jnp.float32)
    bcat = jnp.zeros((6, 1, F_PAD), jnp.float32)
    alpha = jnp.zeros((6, 1, F_PAD), jnp.float32)
    for li, fin in enumerate(dims_in):
        wrel = uni(keys[next(ki)], (fin, hidden_dim), fin)    # lin_rel / lin_l
        brel = uni(keys[next(ki)], (hidden_dim,), fin)
        wroot = uni(keys[next(ki)], (fin, hidden_dim), fin)   # lin_root / lin_r
        wcat = wcat.at[li, :fin, :hidden_dim].set(wrel)
        wcat = wcat.at[li, F_PAD:F_PAD + fin, :hidden_dim].set(wroot)
        bcat = bcat.at[li, 0, :hidden_dim].set(brel)
        alpha = alpha.at[li, 0, :hidden_dim].set(0.25)        # PReLU init

    w1 = jnp.zeros((F_PAD, F_PAD), jnp.float32).at[:hidden_dim, :63].set(
        uni(keys[next(ki)], (hidden_dim, 63), hidden_dim))
    b1 = jnp.zeros((1, F_PAD), jnp.float32).at[0, :63].set(
        uni(keys[next(ki)], (63,), hidden_dim))
    a7 = jnp.zeros((1, F_PAD), jnp.float32).at[0, :63].set(0.25)
    w2 = jnp.zeros((F_PAD, F_PAD), jnp.float32).at[:63, :3].set(
        uni(keys[next(ki)], (63, 3), 63))
    b2 = jnp.zeros((1, F_PAD), jnp.float32).at[0, :3].set(
        uni(keys[next(ki)], (3,), 63))

    return dict(wcat=wcat, bcat=bcat, alpha=alpha,
                w1=w1, b1=b1, a7=a7, w2=w2, b2=b2)


# ---------------------------------------------------------------------------
# Full forward pass
# ---------------------------------------------------------------------------

@jax.jit
def config1_forward(params, x, edge_index, edge_attr):
    n, fin = x.shape
    n_pad = max(8, ((n + 7) // 8) * 8)

    edge_weight = (1.0 / edge_attr).astype(jnp.float32)
    src, dst = edge_index[0], edge_index[1]
    # Dense (dst, src) weighted adjacency.  NOTE: edge_weight = 1/edge_attr is
    # never exactly 0, so (adj != 0) is a valid edge mask inside the kernel.
    adjw = jnp.zeros((n_pad, n_pad), jnp.float32).at[dst, src].set(edge_weight)
    x_pad = (jnp.zeros((n_pad, F_PAD), jnp.float32)
             .at[:n, :fin].set(x.astype(jnp.float32)))

    out = _fused_call(x_pad, adjw,
                      params['wcat'], params['bcat'], params['alpha'],
                      params['w1'], params['b1'], params['a7'],
                      params['w2'], params['b2'])
    return out[:n, :3]


# ---------------------------------------------------------------------------
# Demo
# ---------------------------------------------------------------------------

if __name__ == "__main__":
    key = jax.random.PRNGKey(0)
    k_param, k_x, k_attr = jax.random.split(key, 3)

    N, INPUT_DIM, HIDDEN_DIM, OUTPUT_DIM = 16, 8, 32, 3

    params = init_params(k_param, INPUT_DIM, HIDDEN_DIM)

    # node features
    x = jax.random.normal(k_x, (N, INPUT_DIM), jnp.float32)
    # bidirectional ring graph: every node has incoming edges, no duplicates
    idx = jnp.arange(N, dtype=jnp.int32)
    src = jnp.concatenate([idx, idx])
    dst = jnp.concatenate([(idx + 1) % N, (idx - 1) % N])
    edge_index = jnp.stack([src, dst], axis=0)                      # (2, 2N)
    edge_attr = jax.random.uniform(k_attr, (2 * N,), jnp.float32, 0.5, 2.0)

    out = config1_forward(params, x, edge_index, edge_attr)
    out = jax.block_until_ready(out)
    assert out.shape == (N, OUTPUT_DIM) and out.dtype == jnp.float32
    print("KERNEL_OK")
</pallas_src>

<mosaic_0001>
module attributes {stable_mosaic.version = 11 : i64} {
  func.func @_fused_forward_kernel(%arg0: memref<16x128xf32, #tpu.memory_space<vmem>>, %arg1: memref<16x16xf32, #tpu.memory_space<vmem>>, %arg2: memref<6x256x128xf32, #tpu.memory_space<vmem>>, %arg3: memref<6x1x128xf32, #tpu.memory_space<vmem>>, %arg4: memref<6x1x128xf32, #tpu.memory_space<vmem>>, %arg5: memref<128x128xf32, #tpu.memory_space<vmem>>, %arg6: memref<1x128xf32, #tpu.memory_space<vmem>>, %arg7: memref<1x128xf32, #tpu.memory_space<vmem>>, %arg8: memref<128x128xf32, #tpu.memory_space<vmem>>, %arg9: memref<1x128xf32, #tpu.memory_space<vmem>>, %arg10: memref<16x128xf32, #tpu.memory_space<vmem>>) attributes {dimension_semantics = [], scalar_prefetch = 0 : i64, scratch_operands = 0 : i64, tpu.core_type = #tpu.core_type<tc>} {
    %c0 = arith.constant 0 : index
    %c0_0 = arith.constant 0 : index
    %0 = vector.load %arg0[%c0, %c0_0] : memref<16x128xf32, #tpu.memory_space<vmem>>, vector<16x128xf32>
    %c0_1 = arith.constant 0 : index
    %c0_2 = arith.constant 0 : index
    %1 = vector.load %arg1[%c0_1, %c0_2] : memref<16x16xf32, #tpu.memory_space<vmem>>, vector<16x16xf32>
    %cst = arith.constant 0.000000e+00 : f32
    %2 = vector.broadcast %cst : f32 to vector<16x16xf32>
    %3 = arith.cmpf one, %1, %2 : vector<16x16xf32>
    %4 = math.absf %1 : vector<16x16xf32>
    %cst_3 = arith.constant dense<0xFF800000> : vector<16xf32>
    %5 = vector.multi_reduction <maximumf>, %4, %cst_3 [1] : vector<16x16xf32> to vector<16xf32>
    %6 = vector.shape_cast %5 : vector<16xf32> to vector<16x1xf32>
    %cst_4 = arith.constant 0.000000e+00 : f32
    %7 = vector.broadcast %cst_4 : f32 to vector<16x1xf32>
    %8 = arith.cmpf ogt, %6, %7 : vector<16x1xf32>
    %cst_5 = arith.constant -3.400000e+38 : f32
    %9 = vector.broadcast %cst_5 : f32 to vector<16x128xf32>
    %10 = vector.extract_strided_slice %3 {offsets = [0, 0], sizes = [16, 1], strides = [1, 1]} : vector<16x16xi1> to vector<16x1xi1>
    %11 = vector.extract_strided_slice %0 {offsets = [0, 0], sizes = [1, 128], strides = [1, 1]} : vector<16x128xf32> to vector<1x128xf32>
    %12 = vector.extract_strided_slice %1 {offsets = [0, 0], sizes = [16, 1], strides = [1, 1]} : vector<16x16xf32> to vector<16x1xf32>
    %13 = vector.broadcast %12 : vector<16x1xf32> to vector<16x128xf32>
    %14 = vector.broadcast %11 : vector<1x128xf32> to vector<16x128xf32>
    %15 = arith.mulf %13, %14 : vector<16x128xf32>
    %cst_6 = arith.constant -3.400000e+38 : f32
    %16 = vector.shape_cast %10 : vector<16x1xi1> to vector<16x1xi1>
    %17 = vector.broadcast %16 : vector<16x1xi1> to vector<16x128xi1>
    %18 = vector.broadcast %cst_6 : f32 to vector<16x128xf32>
    %19 = arith.select %17, %15, %18 : vector<16x128xi1>, vector<16x128xf32>
    %20 = arith.maximumf %9, %19 : vector<16x128xf32>
    %21 = vector.extract_strided_slice %3 {offsets = [0, 1], sizes = [16, 1], strides = [1, 1]} : vector<16x16xi1> to vector<16x1xi1>
    %22 = vector.extract_strided_slice %0 {offsets = [1, 0], sizes = [1, 128], strides = [1, 1]} : vector<16x128xf32> to vector<1x128xf32>
    %23 = vector.extract_strided_slice %1 {offsets = [0, 1], sizes = [16, 1], strides = [1, 1]} : vector<16x16xf32> to vector<16x1xf32>
    %24 = vector.broadcast %23 : vector<16x1xf32> to vector<16x128xf32>
    %25 = vector.broadcast %22 : vector<1x128xf32> to vector<16x128xf32>
    %26 = arith.mulf %24, %25 : vector<16x128xf32>
    %cst_7 = arith.constant -3.400000e+38 : f32
    %27 = vector.shape_cast %21 : vector<16x1xi1> to vector<16x1xi1>
    %28 = vector.broadcast %27 : vector<16x1xi1> to vector<16x128xi1>
    %29 = vector.broadcast %cst_7 : f32 to vector<16x128xf32>
    %30 = arith.select %28, %26, %29 : vector<16x128xi1>, vector<16x128xf32>
    %31 = arith.maximumf %20, %30 : vector<16x128xf32>
    %32 = vector.extract_strided_slice %3 {offsets = [0, 2], sizes = [16, 1], strides = [1, 1]} : vector<16x16xi1> to vector<16x1xi1>
    %33 = vector.extract_strided_slice %0 {offsets = [2, 0], sizes = [1, 128], strides = [1, 1]} : vector<16x128xf32> to vector<1x128xf32>
    %34 = vector.extract_strided_slice %1 {offsets = [0, 2], sizes = [16, 1], strides = [1, 1]} : vector<16x16xf32> to vector<16x1xf32>
    %35 = vector.broadcast %34 : vector<16x1xf32> to vector<16x128xf32>
    %36 = vector.broadcast %33 : vector<1x128xf32> to vector<16x128xf32>
    %37 = arith.mulf %35, %36 : vector<16x128xf32>
    %cst_8 = arith.constant -3.400000e+38 : f32
    %38 = vector.shape_cast %32 : vector<16x1xi1> to vector<16x1xi1>
    %39 = vector.broadcast %38 : vector<16x1xi1> to vector<16x128xi1>
    %40 = vector.broadcast %cst_8 : f32 to vector<16x128xf32>
    %41 = arith.select %39, %37, %40 : vector<16x128xi1>, vector<16x128xf32>
    %42 = arith.maximumf %31, %41 : vector<16x128xf32>
    %43 = vector.extract_strided_slice %3 {offsets = [0, 3], sizes = [16, 1], strides = [1, 1]} : vector<16x16xi1> to vector<16x1xi1>
    %44 = vector.extract_strided_slice %0 {offsets = [3, 0], sizes = [1, 128], strides = [1, 1]} : vector<16x128xf32> to vector<1x128xf32>
    %45 = vector.extract_strided_slice %1 {offsets = [0, 3], sizes = [16, 1], strides = [1, 1]} : vector<16x16xf32> to vector<16x1xf32>
    %46 = vector.broadcast %45 : vector<16x1xf32> to vector<16x128xf32>
    %47 = vector.broadcast %44 : vector<1x128xf32> to vector<16x128xf32>
    %48 = arith.mulf %46, %47 : vector<16x128xf32>
    %cst_9 = arith.constant -3.400000e+38 : f32
    %49 = vector.shape_cast %43 : vector<16x1xi1> to vector<16x1xi1>
    %50 = vector.broadcast %49 : vector<16x1xi1> to vector<16x128xi1>
    %51 = vector.broadcast %cst_9 : f32 to vector<16x128xf32>
    %52 = arith.select %50, %48, %51 : vector<16x128xi1>, vector<16x128xf32>
    %53 = arith.maximumf %42, %52 : vector<16x128xf32>
    %54 = vector.extract_strided_slice %3 {offsets = [0, 4], sizes = [16, 1], strides = [1, 1]} : vector<16x16xi1> to vector<16x1xi1>
    %55 = vector.extract_strided_slice %0 {offsets = [4, 0], sizes = [1, 128], strides = [1, 1]} : vector<16x128xf32> to vector<1x128xf32>
    %56 = vector.extract_strided_slice %1 {offsets = [0, 4], sizes = [16, 1], strides = [1, 1]} : vector<16x16xf32> to vector<16x1xf32>
    %57 = vector.broadcast %56 : vector<16x1xf32> to vector<16x128xf32>
    %58 = vector.broadcast %55 : vector<1x128xf32> to vector<16x128xf32>
    %59 = arith.mulf %57, %58 : vector<16x128xf32>
    %cst_10 = arith.constant -3.400000e+38 : f32
    %60 = vector.shape_cast %54 : vector<16x1xi1> to vector<16x1xi1>
    %61 = vector.broadcast %60 : vector<16x1xi1> to vector<16x128xi1>
    %62 = vector.broadcast %cst_10 : f32 to vector<16x128xf32>
    %63 = arith.select %61, %59, %62 : vector<16x128xi1>, vector<16x128xf32>
    %64 = arith.maximumf %53, %63 : vector<16x128xf32>
    %65 = vector.extract_strided_slice %3 {offsets = [0, 5], sizes = [16, 1], strides = [1, 1]} : vector<16x16xi1> to vector<16x1xi1>
    %66 = vector.extract_strided_slice %0 {offsets = [5, 0], sizes = [1, 128], strides = [1, 1]} : vector<16x128xf32> to vector<1x128xf32>
    %67 = vector.extract_strided_slice %1 {offsets = [0, 5], sizes = [16, 1], strides = [1, 1]} : vector<16x16xf32> to vector<16x1xf32>
    %68 = vector.broadcast %67 : vector<16x1xf32> to vector<16x128xf32>
    %69 = vector.broadcast %66 : vector<1x128xf32> to vector<16x128xf32>
    %70 = arith.mulf %68, %69 : vector<16x128xf32>
    %cst_11 = arith.constant -3.400000e+38 : f32
    %71 = vector.shape_cast %65 : vector<16x1xi1> to vector<16x1xi1>
    %72 = vector.broadcast %71 : vector<16x1xi1> to vector<16x128xi1>
    %73 = vector.broadcast %cst_11 : f32 to vector<16x128xf32>
    %74 = arith.select %72, %70, %73 : vector<16x128xi1>, vector<16x128xf32>
    %75 = arith.maximumf %64, %74 : vector<16x128xf32>
    %76 = vector.extract_strided_slice %3 {offsets = [0, 6], sizes = [16, 1], strides = [1, 1]} : vector<16x16xi1> to vector<16x1xi1>
    %77 = vector.extract_strided_slice %0 {offsets = [6, 0], sizes = [1, 128], strides = [1, 1]} : vector<16x128xf32> to vector<1x128xf32>
    %78 = vector.extract_strided_slice %1 {offsets = [0, 6], sizes = [16, 1], strides = [1, 1]} : vector<16x16xf32> to vector<16x1xf32>
    %79 = vector.broadcast %78 : vector<16x1xf32> to vector<16x128xf32>
    %80 = vector.broadcast %77 : vector<1x128xf32> to vector<16x128xf32>
    %81 = arith.mulf %79, %80 : vector<16x128xf32>
    %cst_12 = arith.constant -3.400000e+38 : f32
    %82 = vector.shape_cast %76 : vector<16x1xi1> to vector<16x1xi1>
    %83 = vector.broadcast %82 : vector<16x1xi1> to vector<16x128xi1>
    %84 = vector.broadcast %cst_12 : f32 to vector<16x128xf32>
    %85 = arith.select %83, %81, %84 : vector<16x128xi1>, vector<16x128xf32>
    %86 = arith.maximumf %75, %85 : vector<16x128xf32>
    %87 = vector.extract_strided_slice %3 {offsets = [0, 7], sizes = [16, 1], strides = [1, 1]} : vector<16x16xi1> to vector<16x1xi1>
    %88 = vector.extract_strided_slice %0 {offsets = [7, 0], sizes = [1, 128], strides = [1, 1]} : vector<16x128xf32> to vector<1x128xf32>
    %89 = vector.extract_strided_slice %1 {offsets = [0, 7], sizes = [16, 1], strides = [1, 1]} : vector<16x16xf32> to vector<16x1xf32>
    %90 = vector.broadcast %89 : vector<16x1xf32> to vector<16x128xf32>
    %91 = vector.broadcast %88 : vector<1x128xf32> to vector<16x128xf32>
    %92 = arith.mulf %90, %91 : vector<16x128xf32>
    %cst_13 = arith.constant -3.400000e+38 : f32
    %93 = vector.shape_cast %87 : vector<16x1xi1> to vector<16x1xi1>
    %94 = vector.broadcast %93 : vector<16x1xi1> to vector<16x128xi1>
    %95 = vector.broadcast %cst_13 : f32 to vector<16x128xf32>
    %96 = arith.select %94, %92, %95 : vector<16x128xi1>, vector<16x128xf32>
    %97 = arith.maximumf %86, %96 : vector<16x128xf32>
    %98 = vector.extract_strided_slice %3 {offsets = [0, 8], sizes = [16, 1], strides = [1, 1]} : vector<16x16xi1> to vector<16x1xi1>
    %99 = vector.extract_strided_slice %0 {offsets = [8, 0], sizes = [1, 128], strides = [1, 1]} : vector<16x128xf32> to vector<1x128xf32>
    %100 = vector.extract_strided_slice %1 {offsets = [0, 8], sizes = [16, 1], strides = [1, 1]} : vector<16x16xf32> to vector<16x1xf32>
    %101 = vector.broadcast %100 : vector<16x1xf32> to vector<16x128xf32>
    %102 = vector.broadcast %99 : vector<1x128xf32> to vector<16x128xf32>
    %103 = arith.mulf %101, %102 : vector<16x128xf32>
    %cst_14 = arith.constant -3.400000e+38 : f32
    %104 = vector.shape_cast %98 : vector<16x1xi1> to vector<16x1xi1>
    %105 = vector.broadcast %104 : vector<16x1xi1> to vector<16x128xi1>
    %106 = vector.broadcast %cst_14 : f32 to vector<16x128xf32>
    %107 = arith.select %105, %103, %106 : vector<16x128xi1>, vector<16x128xf32>
    %108 = arith.maximumf %97, %107 : vector<16x128xf32>
    %109 = vector.extract_strided_slice %3 {offsets = [0, 9], sizes = [16, 1], strides = [1, 1]} : vector<16x16xi1> to vector<16x1xi1>
    %110 = vector.extract_strided_slice %0 {offsets = [9, 0], sizes = [1, 128], strides = [1, 1]} : vector<16x128xf32> to vector<1x128xf32>
    %111 = vector.extract_strided_slice %1 {offsets = [0, 9], sizes = [16, 1], strides = [1, 1]} : vector<16x16xf32> to vector<16x1xf32>
    %112 = vector.broadcast %111 : vector<16x1xf32> to vector<16x128xf32>
    %113 = vector.broadcast %110 : vector<1x128xf32> to vector<16x128xf32>
    %114 = arith.mulf %112, %113 : vector<16x128xf32>
    %cst_15 = arith.constant -3.400000e+38 : f32
    %115 = vector.shape_cast %109 : vector<16x1xi1> to vector<16x1xi1>
    %116 = vector.broadcast %115 : vector<16x1xi1> to vector<16x128xi1>
    %117 = vector.broadcast %cst_15 : f32 to vector<16x128xf32>
    %118 = arith.select %116, %114, %117 : vector<16x128xi1>, vector<16x128xf32>
    %119 = arith.maximumf %108, %118 : vector<16x128xf32>
    %120 = vector.extract_strided_slice %3 {offsets = [0, 10], sizes = [16, 1], strides = [1, 1]} : vector<16x16xi1> to vector<16x1xi1>
    %121 = vector.extract_strided_slice %0 {offsets = [10, 0], sizes = [1, 128], strides = [1, 1]} : vector<16x128xf32> to vector<1x128xf32>
    %122 = vector.extract_strided_slice %1 {offsets = [0, 10], sizes = [16, 1], strides = [1, 1]} : vector<16x16xf32> to vector<16x1xf32>
    %123 = vector.broadcast %122 : vector<16x1xf32> to vector<16x128xf32>
    %124 = vector.broadcast %121 : vector<1x128xf32> to vector<16x128xf32>
    %125 = arith.mulf %123, %124 : vector<16x128xf32>
    %cst_16 = arith.constant -3.400000e+38 : f32
    %126 = vector.shape_cast %120 : vector<16x1xi1> to vector<16x1xi1>
    %127 = vector.broadcast %126 : vector<16x1xi1> to vector<16x128xi1>
    %128 = vector.broadcast %cst_16 : f32 to vector<16x128xf32>
    %129 = arith.select %127, %125, %128 : vector<16x128xi1>, vector<16x128xf32>
    %130 = arith.maximumf %119, %129 : vector<16x128xf32>
    %131 = vector.extract_strided_slice %3 {offsets = [0, 11], sizes = [16, 1], strides = [1, 1]} : vector<16x16xi1> to vector<16x1xi1>
    %132 = vector.extract_strided_slice %0 {offsets = [11, 0], sizes = [1, 128], strides = [1, 1]} : vector<16x128xf32> to vector<1x128xf32>
    %133 = vector.extract_strided_slice %1 {offsets = [0, 11], sizes = [16, 1], strides = [1, 1]} : vector<16x16xf32> to vector<16x1xf32>
    %134 = vector.broadcast %133 : vector<16x1xf32> to vector<16x128xf32>
    %135 = vector.broadcast %132 : vector<1x128xf32> to vector<16x128xf32>
    %136 = arith.mulf %134, %135 : vector<16x128xf32>
    %cst_17 = arith.constant -3.400000e+38 : f32
    %137 = vector.shape_cast %131 : vector<16x1xi1> to vector<16x1xi1>
    %138 = vector.broadcast %137 : vector<16x1xi1> to vector<16x128xi1>
    %139 = vector.broadcast %cst_17 : f32 to vector<16x128xf32>
    %140 = arith.select %138, %136, %139 : vector<16x128xi1>, vector<16x128xf32>
    %141 = arith.maximumf %130, %140 : vector<16x128xf32>
    %142 = vector.extract_strided_slice %3 {offsets = [0, 12], sizes = [16, 1], strides = [1, 1]} : vector<16x16xi1> to vector<16x1xi1>
    %143 = vector.extract_strided_slice %0 {offsets = [12, 0], sizes = [1, 128], strides = [1, 1]} : vector<16x128xf32> to vector<1x128xf32>
    %144 = vector.extract_strided_slice %1 {offsets = [0, 12], sizes = [16, 1], strides = [1, 1]} : vector<16x16xf32> to vector<16x1xf32>
    %145 = vector.broadcast %144 : vector<16x1xf32> to vector<16x128xf32>
    %146 = vector.broadcast %143 : vector<1x128xf32> to vector<16x128xf32>
    %147 = arith.mulf %145, %146 : vector<16x128xf32>
    %cst_18 = arith.constant -3.400000e+38 : f32
    %148 = vector.shape_cast %142 : vector<16x1xi1> to vector<16x1xi1>
    %149 = vector.broadcast %148 : vector<16x1xi1> to vector<16x128xi1>
    %150 = vector.broadcast %cst_18 : f32 to vector<16x128xf32>
    %151 = arith.select %149, %147, %150 : vector<16x128xi1>, vector<16x128xf32>
    %152 = arith.maximumf %141, %151 : vector<16x128xf32>
    %153 = vector.extract_strided_slice %3 {offsets = [0, 13], sizes = [16, 1], strides = [1, 1]} : vector<16x16xi1> to vector<16x1xi1>
    %154 = vector.extract_strided_slice %0 {offsets = [13, 0], sizes = [1, 128], strides = [1, 1]} : vector<16x128xf32> to vector<1x128xf32>
    %155 = vector.extract_strided_slice %1 {offsets = [0, 13], sizes = [16, 1], strides = [1, 1]} : vector<16x16xf32> to vector<16x1xf32>
    %156 = vector.broadcast %155 : vector<16x1xf32> to vector<16x128xf32>
    %157 = vector.broadcast %154 : vector<1x128xf32> to vector<16x128xf32>
    %158 = arith.mulf %156, %157 : vector<16x128xf32>
    %cst_19 = arith.constant -3.400000e+38 : f32
    %159 = vector.shape_cast %153 : vector<16x1xi1> to vector<16x1xi1>
    %160 = vector.broadcast %159 : vector<16x1xi1> to vector<16x128xi1>
    %161 = vector.broadcast %cst_19 : f32 to vector<16x128xf32>
    %162 = arith.select %160, %158, %161 : vector<16x128xi1>, vector<16x128xf32>
    %163 = arith.maximumf %152, %162 : vector<16x128xf32>
    %164 = vector.extract_strided_slice %3 {offsets = [0, 14], sizes = [16, 1], strides = [1, 1]} : vector<16x16xi1> to vector<16x1xi1>
    %165 = vector.extract_strided_slice %0 {offsets = [14, 0], sizes = [1, 128], strides = [1, 1]} : vector<16x128xf32> to vector<1x128xf32>
    %166 = vector.extract_strided_slice %1 {offsets = [0, 14], sizes = [16, 1], strides = [1, 1]} : vector<16x16xf32> to vector<16x1xf32>
    %167 = vector.broadcast %166 : vector<16x1xf32> to vector<16x128xf32>
    %168 = vector.broadcast %165 : vector<1x128xf32> to vector<16x128xf32>
    %169 = arith.mulf %167, %168 : vector<16x128xf32>
    %cst_20 = arith.constant -3.400000e+38 : f32
    %170 = vector.shape_cast %164 : vector<16x1xi1> to vector<16x1xi1>
    %171 = vector.broadcast %170 : vector<16x1xi1> to vector<16x128xi1>
    %172 = vector.broadcast %cst_20 : f32 to vector<16x128xf32>
    %173 = arith.select %171, %169, %172 : vector<16x128xi1>, vector<16x128xf32>
    %174 = arith.maximumf %163, %173 : vector<16x128xf32>
    %175 = vector.extract_strided_slice %3 {offsets = [0, 15], sizes = [16, 1], strides = [1, 1]} : vector<16x16xi1> to vector<16x1xi1>
    %176 = vector.extract_strided_slice %0 {offsets = [15, 0], sizes = [1, 128], strides = [1, 1]} : vector<16x128xf32> to vector<1x128xf32>
    %177 = vector.extract_strided_slice %1 {offsets = [0, 15], sizes = [16, 1], strides = [1, 1]} : vector<16x16xf32> to vector<16x1xf32>
    %178 = vector.broadcast %177 : vector<16x1xf32> to vector<16x128xf32>
    %179 = vector.broadcast %176 : vector<1x128xf32> to vector<16x128xf32>
    %180 = arith.mulf %178, %179 : vector<16x128xf32>
    %cst_21 = arith.constant -3.400000e+38 : f32
    %181 = vector.shape_cast %175 : vector<16x1xi1> to vector<16x1xi1>
    %182 = vector.broadcast %181 : vector<16x1xi1> to vector<16x128xi1>
    %183 = vector.broadcast %cst_21 : f32 to vector<16x128xf32>
    %184 = arith.select %182, %180, %183 : vector<16x128xi1>, vector<16x128xf32>
    %185 = arith.maximumf %174, %184 : vector<16x128xf32>
    %cst_22 = arith.constant 0.000000e+00 : f32
    %186 = vector.shape_cast %8 : vector<16x1xi1> to vector<16x1xi1>
    %187 = vector.broadcast %186 : vector<16x1xi1> to vector<16x128xi1>
    %188 = vector.broadcast %cst_22 : f32 to vector<16x128xf32>
    %189 = arith.select %187, %185, %188 : vector<16x128xi1>, vector<16x128xf32>
    %190 = tpu.concatenate %189, %0 in 1 : vector<16x128xf32>, vector<16x128xf32> -> vector<16x256xf32>
    %c0_23 = arith.constant 0 : index
    %c0_24 = arith.constant 0 : index
    %c0_25 = arith.constant 0 : index
    %191 = vector.load %arg2[%c0_23, %c0_24, %c0_25] : memref<6x256x128xf32, #tpu.memory_space<vmem>>, vector<1x256x128xf32>
    %192 = vector.shape_cast %191 : vector<1x256x128xf32> to vector<256x128xf32>
    %cst_26 = arith.constant dense<0.000000e+00> : vector<16x128xf32>
    %193 = tpu.matmul %190, %192, %cst_26 {dimension_numbers = #tpu.dot_dimension_numbers<[1], [0], [0], [1], [0, 0, 1, 1], [], []>} : vector<16x256xf32>, vector<256x128xf32>, vector<16x128xf32> -> vector<16x128xf32>
    %c0_27 = arith.constant 0 : index
    %c0_28 = arith.constant 0 : index
    %c0_29 = arith.constant 0 : index
    %194 = vector.load %arg3[%c0_27, %c0_28, %c0_29] : memref<6x1x128xf32, #tpu.memory_space<vmem>>, vector<1x1x128xf32>
    %195 = vector.shape_cast %194 : vector<1x1x128xf32> to vector<1x128xf32>
    %196 = vector.broadcast %195 : vector<1x128xf32> to vector<16x128xf32>
    %197 = arith.addf %193, %196 : vector<16x128xf32>
    %c0_30 = arith.constant 0 : index
    %c0_31 = arith.constant 0 : index
    %c0_32 = arith.constant 0 : index
    %198 = vector.load %arg4[%c0_30, %c0_31, %c0_32] : memref<6x1x128xf32, #tpu.memory_space<vmem>>, vector<1x1x128xf32>
    %199 = vector.shape_cast %198 : vector<1x1x128xf32> to vector<1x128xf32>
    %cst_33 = arith.constant 0.000000e+00 : f32
    %200 = vector.broadcast %cst_33 : f32 to vector<16x128xf32>
    %201 = arith.cmpf ogt, %197, %200 : vector<16x128xf32>
    %202 = vector.broadcast %199 : vector<1x128xf32> to vector<16x128xf32>
    %203 = arith.mulf %202, %197 : vector<16x128xf32>
    %204 = arith.select %201, %197, %203 : vector<16x128xi1>, vector<16x128xf32>
    %cst_34 = arith.constant -3.400000e+38 : f32
    %205 = vector.broadcast %cst_34 : f32 to vector<16x128xf32>
    %206 = vector.extract_strided_slice %3 {offsets = [0, 0], sizes = [16, 1], strides = [1, 1]} : vector<16x16xi1> to vector<16x1xi1>
    %207 = vector.extract_strided_slice %204 {offsets = [0, 0], sizes = [1, 128], strides = [1, 1]} : vector<16x128xf32> to vector<1x128xf32>
    %208 = vector.extract_strided_slice %1 {offsets = [0, 0], sizes = [16, 1], strides = [1, 1]} : vector<16x16xf32> to vector<16x1xf32>
    %209 = vector.broadcast %208 : vector<16x1xf32> to vector<16x128xf32>
    %210 = vector.broadcast %207 : vector<1x128xf32> to vector<16x128xf32>
    %211 = arith.mulf %209, %210 : vector<16x128xf32>
    %cst_35 = arith.constant -3.400000e+38 : f32
    %212 = vector.shape_cast %206 : vector<16x1xi1> to vector<16x1xi1>
    %213 = vector.broadcast %212 : vector<16x1xi1> to vector<16x128xi1>
    %214 = vector.broadcast %cst_35 : f32 to vector<16x128xf32>
    %215 = arith.select %213, %211, %214 : vector<16x128xi1>, vector<16x128xf32>
    %216 = arith.maximumf %205, %215 : vector<16x128xf32>
    %217 = vector.extract_strided_slice %3 {offsets = [0, 1], sizes = [16, 1], strides = [1, 1]} : vector<16x16xi1> to vector<16x1xi1>
    %218 = vector.extract_strided_slice %204 {offsets = [1, 0], sizes = [1, 128], strides = [1, 1]} : vector<16x128xf32> to vector<1x128xf32>
    %219 = vector.extract_strided_slice %1 {offsets = [0, 1], sizes = [16, 1], strides = [1, 1]} : vector<16x16xf32> to vector<16x1xf32>
    %220 = vector.broadcast %219 : vector<16x1xf32> to vector<16x128xf32>
    %221 = vector.broadcast %218 : vector<1x128xf32> to vector<16x128xf32>
    %222 = arith.mulf %220, %221 : vector<16x128xf32>
    %cst_36 = arith.constant -3.400000e+38 : f32
    %223 = vector.shape_cast %217 : vector<16x1xi1> to vector<16x1xi1>
    %224 = vector.broadcast %223 : vector<16x1xi1> to vector<16x128xi1>
    %225 = vector.broadcast %cst_36 : f32 to vector<16x128xf32>
    %226 = arith.select %224, %222, %225 : vector<16x128xi1>, vector<16x128xf32>
    %227 = arith.maximumf %216, %226 : vector<16x128xf32>
    %228 = vector.extract_strided_slice %3 {offsets = [0, 2], sizes = [16, 1], strides = [1, 1]} : vector<16x16xi1> to vector<16x1xi1>
    %229 = vector.extract_strided_slice %204 {offsets = [2, 0], sizes = [1, 128], strides = [1, 1]} : vector<16x128xf32> to vector<1x128xf32>
    %230 = vector.extract_strided_slice %1 {offsets = [0, 2], sizes = [16, 1], strides = [1, 1]} : vector<16x16xf32> to vector<16x1xf32>
    %231 = vector.broadcast %230 : vector<16x1xf32> to vector<16x128xf32>
    %232 = vector.broadcast %229 : vector<1x128xf32> to vector<16x128xf32>
    %233 = arith.mulf %231, %232 : vector<16x128xf32>
    %cst_37 = arith.constant -3.400000e+38 : f32
    %234 = vector.shape_cast %228 : vector<16x1xi1> to vector<16x1xi1>
    %235 = vector.broadcast %234 : vector<16x1xi1> to vector<16x128xi1>
    %236 = vector.broadcast %cst_37 : f32 to vector<16x128xf32>
    %237 = arith.select %235, %233, %236 : vector<16x128xi1>, vector<16x128xf32>
    %238 = arith.maximumf %227, %237 : vector<16x128xf32>
    %239 = vector.extract_strided_slice %3 {offsets = [0, 3], sizes = [16, 1], strides = [1, 1]} : vector<16x16xi1> to vector<16x1xi1>
    %240 = vector.extract_strided_slice %204 {offsets = [3, 0], sizes = [1, 128], strides = [1, 1]} : vector<16x128xf32> to vector<1x128xf32>
    %241 = vector.extract_strided_slice %1 {offsets = [0, 3], sizes = [16, 1], strides = [1, 1]} : vector<16x16xf32> to vector<16x1xf32>
    %242 = vector.broadcast %241 : vector<16x1xf32> to vector<16x128xf32>
    %243 = vector.broadcast %240 : vector<1x128xf32> to vector<16x128xf32>
    %244 = arith.mulf %242, %243 : vector<16x128xf32>
    %cst_38 = arith.constant -3.400000e+38 : f32
    %245 = vector.shape_cast %239 : vector<16x1xi1> to vector<16x1xi1>
    %246 = vector.broadcast %245 : vector<16x1xi1> to vector<16x128xi1>
    %247 = vector.broadcast %cst_38 : f32 to vector<16x128xf32>
    %248 = arith.select %246, %244, %247 : vector<16x128xi1>, vector<16x128xf32>
    %249 = arith.maximumf %238, %248 : vector<16x128xf32>
    %250 = vector.extract_strided_slice %3 {offsets = [0, 4], sizes = [16, 1], strides = [1, 1]} : vector<16x16xi1> to vector<16x1xi1>
    %251 = vector.extract_strided_slice %204 {offsets = [4, 0], sizes = [1, 128], strides = [1, 1]} : vector<16x128xf32> to vector<1x128xf32>
    %252 = vector.extract_strided_slice %1 {offsets = [0, 4], sizes = [16, 1], strides = [1, 1]} : vector<16x16xf32> to vector<16x1xf32>
    %253 = vector.broadcast %252 : vector<16x1xf32> to vector<16x128xf32>
    %254 = vector.broadcast %251 : vector<1x128xf32> to vector<16x128xf32>
    %255 = arith.mulf %253, %254 : vector<16x128xf32>
    %cst_39 = arith.constant -3.400000e+38 : f32
    %256 = vector.shape_cast %250 : vector<16x1xi1> to vector<16x1xi1>
    %257 = vector.broadcast %256 : vector<16x1xi1> to vector<16x128xi1>
    %258 = vector.broadcast %cst_39 : f32 to vector<16x128xf32>
    %259 = arith.select %257, %255, %258 : vector<16x128xi1>, vector<16x128xf32>
    %260 = arith.maximumf %249, %259 : vector<16x128xf32>
    %261 = vector.extract_strided_slice %3 {offsets = [0, 5], sizes = [16, 1], strides = [1, 1]} : vector<16x16xi1> to vector<16x1xi1>
    %262 = vector.extract_strided_slice %204 {offsets = [5, 0], sizes = [1, 128], strides = [1, 1]} : vector<16x128xf32> to vector<1x128xf32>
    %263 = vector.extract_strided_slice %1 {offsets = [0, 5], sizes = [16, 1], strides = [1, 1]} : vector<16x16xf32> to vector<16x1xf32>
    %264 = vector.broadcast %263 : vector<16x1xf32> to vector<16x128xf32>
    %265 = vector.broadcast %262 : vector<1x128xf32> to vector<16x128xf32>
    %266 = arith.mulf %264, %265 : vector<16x128xf32>
    %cst_40 = arith.constant -3.400000e+38 : f32
    %267 = vector.shape_cast %261 : vector<16x1xi1> to vector<16x1xi1>
    %268 = vector.broadcast %267 : vector<16x1xi1> to vector<16x128xi1>
    %269 = vector.broadcast %cst_40 : f32 to vector<16x128xf32>
    %270 = arith.select %268, %266, %269 : vector<16x128xi1>, vector<16x128xf32>
    %271 = arith.maximumf %260, %270 : vector<16x128xf32>
    %272 = vector.extract_strided_slice %3 {offsets = [0, 6], sizes = [16, 1], strides = [1, 1]} : vector<16x16xi1> to vector<16x1xi1>
    %273 = vector.extract_strided_slice %204 {offsets = [6, 0], sizes = [1, 128], strides = [1, 1]} : vector<16x128xf32> to vector<1x128xf32>
    %274 = vector.extract_strided_slice %1 {offsets = [0, 6], sizes = [16, 1], strides = [1, 1]} : vector<16x16xf32> to vector<16x1xf32>
    %275 = vector.broadcast %274 : vector<16x1xf32> to vector<16x128xf32>
    %276 = vector.broadcast %273 : vector<1x128xf32> to vector<16x128xf32>
    %277 = arith.mulf %275, %276 : vector<16x128xf32>
    %cst_41 = arith.constant -3.400000e+38 : f32
    %278 = vector.shape_cast %272 : vector<16x1xi1> to vector<16x1xi1>
    %279 = vector.broadcast %278 : vector<16x1xi1> to vector<16x128xi1>
    %280 = vector.broadcast %cst_41 : f32 to vector<16x128xf32>
    %281 = arith.select %279, %277, %280 : vector<16x128xi1>, vector<16x128xf32>
    %282 = arith.maximumf %271, %281 : vector<16x128xf32>
    %283 = vector.extract_strided_slice %3 {offsets = [0, 7], sizes = [16, 1], strides = [1, 1]} : vector<16x16xi1> to vector<16x1xi1>
    %284 = vector.extract_strided_slice %204 {offsets = [7, 0], sizes = [1, 128], strides = [1, 1]} : vector<16x128xf32> to vector<1x128xf32>
    %285 = vector.extract_strided_slice %1 {offsets = [0, 7], sizes = [16, 1], strides = [1, 1]} : vector<16x16xf32> to vector<16x1xf32>
    %286 = vector.broadcast %285 : vector<16x1xf32> to vector<16x128xf32>
    %287 = vector.broadcast %284 : vector<1x128xf32> to vector<16x128xf32>
    %288 = arith.mulf %286, %287 : vector<16x128xf32>
    %cst_42 = arith.constant -3.400000e+38 : f32
    %289 = vector.shape_cast %283 : vector<16x1xi1> to vector<16x1xi1>
    %290 = vector.broadcast %289 : vector<16x1xi1> to vector<16x128xi1>
    %291 = vector.broadcast %cst_42 : f32 to vector<16x128xf32>
    %292 = arith.select %290, %288, %291 : vector<16x128xi1>, vector<16x128xf32>
    %293 = arith.maximumf %282, %292 : vector<16x128xf32>
    %294 = vector.extract_strided_slice %3 {offsets = [0, 8], sizes = [16, 1], strides = [1, 1]} : vector<16x16xi1> to vector<16x1xi1>
    %295 = vector.extract_strided_slice %204 {offsets = [8, 0], sizes = [1, 128], strides = [1, 1]} : vector<16x128xf32> to vector<1x128xf32>
    %296 = vector.extract_strided_slice %1 {offsets = [0, 8], sizes = [16, 1], strides = [1, 1]} : vector<16x16xf32> to vector<16x1xf32>
    %297 = vector.broadcast %296 : vector<16x1xf32> to vector<16x128xf32>
    %298 = vector.broadcast %295 : vector<1x128xf32> to vector<16x128xf32>
    %299 = arith.mulf %297, %298 : vector<16x128xf32>
    %cst_43 = arith.constant -3.400000e+38 : f32
    %300 = vector.shape_cast %294 : vector<16x1xi1> to vector<16x1xi1>
    %301 = vector.broadcast %300 : vector<16x1xi1> to vector<16x128xi1>
    %302 = vector.broadcast %cst_43 : f32 to vector<16x128xf32>
    %303 = arith.select %301, %299, %302 : vector<16x128xi1>, vector<16x128xf32>
    %304 = arith.maximumf %293, %303 : vector<16x128xf32>
    %305 = vector.extract_strided_slice %3 {offsets = [0, 9], sizes = [16, 1], strides = [1, 1]} : vector<16x16xi1> to vector<16x1xi1>
    %306 = vector.extract_strided_slice %204 {offsets = [9, 0], sizes = [1, 128], strides = [1, 1]} : vector<16x128xf32> to vector<1x128xf32>
    %307 = vector.extract_strided_slice %1 {offsets = [0, 9], sizes = [16, 1], strides = [1, 1]} : vector<16x16xf32> to vector<16x1xf32>
    %308 = vector.broadcast %307 : vector<16x1xf32> to vector<16x128xf32>
    %309 = vector.broadcast %306 : vector<1x128xf32> to vector<16x128xf32>
    %310 = arith.mulf %308, %309 : vector<16x128xf32>
    %cst_44 = arith.constant -3.400000e+38 : f32
    %311 = vector.shape_cast %305 : vector<16x1xi1> to vector<16x1xi1>
    %312 = vector.broadcast %311 : vector<16x1xi1> to vector<16x128xi1>
    %313 = vector.broadcast %cst_44 : f32 to vector<16x128xf32>
    %314 = arith.select %312, %310, %313 : vector<16x128xi1>, vector<16x128xf32>
    %315 = arith.maximumf %304, %314 : vector<16x128xf32>
    %316 = vector.extract_strided_slice %3 {offsets = [0, 10], sizes = [16, 1], strides = [1, 1]} : vector<16x16xi1> to vector<16x1xi1>
    %317 = vector.extract_strided_slice %204 {offsets = [10, 0], sizes = [1, 128], strides = [1, 1]} : vector<16x128xf32> to vector<1x128xf32>
    %318 = vector.extract_strided_slice %1 {offsets = [0, 10], sizes = [16, 1], strides = [1, 1]} : vector<16x16xf32> to vector<16x1xf32>
    %319 = vector.broadcast %318 : vector<16x1xf32> to vector<16x128xf32>
    %320 = vector.broadcast %317 : vector<1x128xf32> to vector<16x128xf32>
    %321 = arith.mulf %319, %320 : vector<16x128xf32>
    %cst_45 = arith.constant -3.400000e+38 : f32
    %322 = vector.shape_cast %316 : vector<16x1xi1> to vector<16x1xi1>
    %323 = vector.broadcast %322 : vector<16x1xi1> to vector<16x128xi1>
    %324 = vector.broadcast %cst_45 : f32 to vector<16x128xf32>
    %325 = arith.select %323, %321, %324 : vector<16x128xi1>, vector<16x128xf32>
    %326 = arith.maximumf %315, %325 : vector<16x128xf32>
    %327 = vector.extract_strided_slice %3 {offsets = [0, 11], sizes = [16, 1], strides = [1, 1]} : vector<16x16xi1> to vector<16x1xi1>
    %328 = vector.extract_strided_slice %204 {offsets = [11, 0], sizes = [1, 128], strides = [1, 1]} : vector<16x128xf32> to vector<1x128xf32>
    %329 = vector.extract_strided_slice %1 {offsets = [0, 11], sizes = [16, 1], strides = [1, 1]} : vector<16x16xf32> to vector<16x1xf32>
    %330 = vector.broadcast %329 : vector<16x1xf32> to vector<16x128xf32>
    %331 = vector.broadcast %328 : vector<1x128xf32> to vector<16x128xf32>
    %332 = arith.mulf %330, %331 : vector<16x128xf32>
    %cst_46 = arith.constant -3.400000e+38 : f32
    %333 = vector.shape_cast %327 : vector<16x1xi1> to vector<16x1xi1>
    %334 = vector.broadcast %333 : vector<16x1xi1> to vector<16x128xi1>
    %335 = vector.broadcast %cst_46 : f32 to vector<16x128xf32>
    %336 = arith.select %334, %332, %335 : vector<16x128xi1>, vector<16x128xf32>
    %337 = arith.maximumf %326, %336 : vector<16x128xf32>
    %338 = vector.extract_strided_slice %3 {offsets = [0, 12], sizes = [16, 1], strides = [1, 1]} : vector<16x16xi1> to vector<16x1xi1>
    %339 = vector.extract_strided_slice %204 {offsets = [12, 0], sizes = [1, 128], strides = [1, 1]} : vector<16x128xf32> to vector<1x128xf32>
    %340 = vector.extract_strided_slice %1 {offsets = [0, 12], sizes = [16, 1], strides = [1, 1]} : vector<16x16xf32> to vector<16x1xf32>
    %341 = vector.broadcast %340 : vector<16x1xf32> to vector<16x128xf32>
    %342 = vector.broadcast %339 : vector<1x128xf32> to vector<16x128xf32>
    %343 = arith.mulf %341, %342 : vector<16x128xf32>
    %cst_47 = arith.constant -3.400000e+38 : f32
    %344 = vector.shape_cast %338 : vector<16x1xi1> to vector<16x1xi1>
    %345 = vector.broadcast %344 : vector<16x1xi1> to vector<16x128xi1>
    %346 = vector.broadcast %cst_47 : f32 to vector<16x128xf32>
    %347 = arith.select %345, %343, %346 : vector<16x128xi1>, vector<16x128xf32>
    %348 = arith.maximumf %337, %347 : vector<16x128xf32>
    %349 = vector.extract_strided_slice %3 {offsets = [0, 13], sizes = [16, 1], strides = [1, 1]} : vector<16x16xi1> to vector<16x1xi1>
    %350 = vector.extract_strided_slice %204 {offsets = [13, 0], sizes = [1, 128], strides = [1, 1]} : vector<16x128xf32> to vector<1x128xf32>
    %351 = vector.extract_strided_slice %1 {offsets = [0, 13], sizes = [16, 1], strides = [1, 1]} : vector<16x16xf32> to vector<16x1xf32>
    %352 = vector.broadcast %351 : vector<16x1xf32> to vector<16x128xf32>
    %353 = vector.broadcast %350 : vector<1x128xf32> to vector<16x128xf32>
    %354 = arith.mulf %352, %353 : vector<16x128xf32>
    %cst_48 = arith.constant -3.400000e+38 : f32
    %355 = vector.shape_cast %349 : vector<16x1xi1> to vector<16x1xi1>
    %356 = vector.broadcast %355 : vector<16x1xi1> to vector<16x128xi1>
    %357 = vector.broadcast %cst_48 : f32 to vector<16x128xf32>
    %358 = arith.select %356, %354, %357 : vector<16x128xi1>, vector<16x128xf32>
    %359 = arith.maximumf %348, %358 : vector<16x128xf32>
    %360 = vector.extract_strided_slice %3 {offsets = [0, 14], sizes = [16, 1], strides = [1, 1]} : vector<16x16xi1> to vector<16x1xi1>
    %361 = vector.extract_strided_slice %204 {offsets = [14, 0], sizes = [1, 128], strides = [1, 1]} : vector<16x128xf32> to vector<1x128xf32>
    %362 = vector.extract_strided_slice %1 {offsets = [0, 14], sizes = [16, 1], strides = [1, 1]} : vector<16x16xf32> to vector<16x1xf32>
    %363 = vector.broadcast %362 : vector<16x1xf32> to vector<16x128xf32>
    %364 = vector.broadcast %361 : vector<1x128xf32> to vector<16x128xf32>
    %365 = arith.mulf %363, %364 : vector<16x128xf32>
    %cst_49 = arith.constant -3.400000e+38 : f32
    %366 = vector.shape_cast %360 : vector<16x1xi1> to vector<16x1xi1>
    %367 = vector.broadcast %366 : vector<16x1xi1> to vector<16x128xi1>
    %368 = vector.broadcast %cst_49 : f32 to vector<16x128xf32>
    %369 = arith.select %367, %365, %368 : vector<16x128xi1>, vector<16x128xf32>
    %370 = arith.maximumf %359, %369 : vector<16x128xf32>
    %371 = vector.extract_strided_slice %3 {offsets = [0, 15], sizes = [16, 1], strides = [1, 1]} : vector<16x16xi1> to vector<16x1xi1>
    %372 = vector.extract_strided_slice %204 {offsets = [15, 0], sizes = [1, 128], strides = [1, 1]} : vector<16x128xf32> to vector<1x128xf32>
    %373 = vector.extract_strided_slice %1 {offsets = [0, 15], sizes = [16, 1], strides = [1, 1]} : vector<16x16xf32> to vector<16x1xf32>
    %374 = vector.broadcast %373 : vector<16x1xf32> to vector<16x128xf32>
    %375 = vector.broadcast %372 : vector<1x128xf32> to vector<16x128xf32>
    %376 = arith.mulf %374, %375 : vector<16x128xf32>
    %cst_50 = arith.constant -3.400000e+38 : f32
    %377 = vector.shape_cast %371 : vector<16x1xi1> to vector<16x1xi1>
    %378 = vector.broadcast %377 : vector<16x1xi1> to vector<16x128xi1>
    %379 = vector.broadcast %cst_50 : f32 to vector<16x128xf32>
    %380 = arith.select %378, %376, %379 : vector<16x128xi1>, vector<16x128xf32>
    %381 = arith.maximumf %370, %380 : vector<16x128xf32>
    %cst_51 = arith.constant 0.000000e+00 : f32
    %382 = vector.shape_cast %8 : vector<16x1xi1> to vector<16x1xi1>
    %383 = vector.broadcast %382 : vector<16x1xi1> to vector<16x128xi1>
    %384 = vector.broadcast %cst_51 : f32 to vector<16x128xf32>
    %385 = arith.select %383, %381, %384 : vector<16x128xi1>, vector<16x128xf32>
    %386 = tpu.concatenate %385, %204 in 1 : vector<16x128xf32>, vector<16x128xf32> -> vector<16x256xf32>
    %c1 = arith.constant 1 : index
    %c0_52 = arith.constant 0 : index
    %c0_53 = arith.constant 0 : index
    %387 = vector.load %arg2[%c1, %c0_52, %c0_53] : memref<6x256x128xf32, #tpu.memory_space<vmem>>, vector<1x256x128xf32>
    %388 = vector.shape_cast %387 : vector<1x256x128xf32> to vector<256x128xf32>
    %cst_54 = arith.constant dense<0.000000e+00> : vector<16x128xf32>
    %389 = tpu.matmul %386, %388, %cst_54 {dimension_numbers = #tpu.dot_dimension_numbers<[1], [0], [0], [1], [0, 0, 1, 1], [], []>} : vector<16x256xf32>, vector<256x128xf32>, vector<16x128xf32> -> vector<16x128xf32>
    %c1_55 = arith.constant 1 : index
    %c0_56 = arith.constant 0 : index
    %c0_57 = arith.constant 0 : index
    %390 = vector.load %arg3[%c1_55, %c0_56, %c0_57] : memref<6x1x128xf32, #tpu.memory_space<vmem>>, vector<1x1x128xf32>
    %391 = vector.shape_cast %390 : vector<1x1x128xf32> to vector<1x128xf32>
    %392 = vector.broadcast %391 : vector<1x128xf32> to vector<16x128xf32>
    %393 = arith.addf %389, %392 : vector<16x128xf32>
    %c1_58 = arith.constant 1 : index
    %c0_59 = arith.constant 0 : index
    %c0_60 = arith.constant 0 : index
    %394 = vector.load %arg4[%c1_58, %c0_59, %c0_60] : memref<6x1x128xf32, #tpu.memory_space<vmem>>, vector<1x1x128xf32>
    %395 = vector.shape_cast %394 : vector<1x1x128xf32> to vector<1x128xf32>
    %cst_61 = arith.constant 0.000000e+00 : f32
    %396 = vector.broadcast %cst_61 : f32 to vector<16x128xf32>
    %397 = arith.cmpf ogt, %393, %396 : vector<16x128xf32>
    %398 = vector.broadcast %395 : vector<1x128xf32> to vector<16x128xf32>
    %399 = arith.mulf %398, %393 : vector<16x128xf32>
    %400 = arith.select %397, %393, %399 : vector<16x128xi1>, vector<16x128xf32>
    %401 = arith.maximumf %204, %400 : vector<16x128xf32>
    %cst_62 = arith.constant -3.400000e+38 : f32
    %402 = vector.broadcast %cst_62 : f32 to vector<16x128xf32>
    %403 = vector.extract_strided_slice %3 {offsets = [0, 0], sizes = [16, 1], strides = [1, 1]} : vector<16x16xi1> to vector<16x1xi1>
    %404 = vector.extract_strided_slice %400 {offsets = [0, 0], sizes = [1, 128], strides = [1, 1]} : vector<16x128xf32> to vector<1x128xf32>
    %405 = vector.extract_strided_slice %1 {offsets = [0, 0], sizes = [16, 1], strides = [1, 1]} : vector<16x16xf32> to vector<16x1xf32>
    %406 = vector.broadcast %405 : vector<16x1xf32> to vector<16x128xf32>
    %407 = vector.broadcast %404 : vector<1x128xf32> to vector<16x128xf32>
    %408 = arith.mulf %406, %407 : vector<16x128xf32>
    %cst_63 = arith.constant -3.400000e+38 : f32
    %409 = vector.shape_cast %403 : vector<16x1xi1> to vector<16x1xi1>
    %410 = vector.broadcast %409 : vector<16x1xi1> to vector<16x128xi1>
    %411 = vector.broadcast %cst_63 : f32 to vector<16x128xf32>
    %412 = arith.select %410, %408, %411 : vector<16x128xi1>, vector<16x128xf32>
    %413 = arith.maximumf %402, %412 : vector<16x128xf32>
    %414 = vector.extract_strided_slice %3 {offsets = [0, 1], sizes = [16, 1], strides = [1, 1]} : vector<16x16xi1> to vector<16x1xi1>
    %415 = vector.extract_strided_slice %400 {offsets = [1, 0], sizes = [1, 128], strides = [1, 1]} : vector<16x128xf32> to vector<1x128xf32>
    %416 = vector.extract_strided_slice %1 {offsets = [0, 1], sizes = [16, 1], strides = [1, 1]} : vector<16x16xf32> to vector<16x1xf32>
    %417 = vector.broadcast %416 : vector<16x1xf32> to vector<16x128xf32>
    %418 = vector.broadcast %415 : vector<1x128xf32> to vector<16x128xf32>
    %419 = arith.mulf %417, %418 : vector<16x128xf32>
    %cst_64 = arith.constant -3.400000e+38 : f32
    %420 = vector.shape_cast %414 : vector<16x1xi1> to vector<16x1xi1>
    %421 = vector.broadcast %420 : vector<16x1xi1> to vector<16x128xi1>
    %422 = vector.broadcast %cst_64 : f32 to vector<16x128xf32>
    %423 = arith.select %421, %419, %422 : vector<16x128xi1>, vector<16x128xf32>
    %424 = arith.maximumf %413, %423 : vector<16x128xf32>
    %425 = vector.extract_strided_slice %3 {offsets = [0, 2], sizes = [16, 1], strides = [1, 1]} : vector<16x16xi1> to vector<16x1xi1>
    %426 = vector.extract_strided_slice %400 {offsets = [2, 0], sizes = [1, 128], strides = [1, 1]} : vector<16x128xf32> to vector<1x128xf32>
    %427 = vector.extract_strided_slice %1 {offsets = [0, 2], sizes = [16, 1], strides = [1, 1]} : vector<16x16xf32> to vector<16x1xf32>
    %428 = vector.broadcast %427 : vector<16x1xf32> to vector<16x128xf32>
    %429 = vector.broadcast %426 : vector<1x128xf32> to vector<16x128xf32>
    %430 = arith.mulf %428, %429 : vector<16x128xf32>
    %cst_65 = arith.constant -3.400000e+38 : f32
    %431 = vector.shape_cast %425 : vector<16x1xi1> to vector<16x1xi1>
    %432 = vector.broadcast %431 : vector<16x1xi1> to vector<16x128xi1>
    %433 = vector.broadcast %cst_65 : f32 to vector<16x128xf32>
    %434 = arith.select %432, %430, %433 : vector<16x128xi1>, vector<16x128xf32>
    %435 = arith.maximumf %424, %434 : vector<16x128xf32>
    %436 = vector.extract_strided_slice %3 {offsets = [0, 3], sizes = [16, 1], strides = [1, 1]} : vector<16x16xi1> to vector<16x1xi1>
    %437 = vector.extract_strided_slice %400 {offsets = [3, 0], sizes = [1, 128], strides = [1, 1]} : vector<16x128xf32> to vector<1x128xf32>
    %438 = vector.extract_strided_slice %1 {offsets = [0, 3], sizes = [16, 1], strides = [1, 1]} : vector<16x16xf32> to vector<16x1xf32>
    %439 = vector.broadcast %438 : vector<16x1xf32> to vector<16x128xf32>
    %440 = vector.broadcast %437 : vector<1x128xf32> to vector<16x128xf32>
    %441 = arith.mulf %439, %440 : vector<16x128xf32>
    %cst_66 = arith.constant -3.400000e+38 : f32
    %442 = vector.shape_cast %436 : vector<16x1xi1> to vector<16x1xi1>
    %443 = vector.broadcast %442 : vector<16x1xi1> to vector<16x128xi1>
    %444 = vector.broadcast %cst_66 : f32 to vector<16x128xf32>
    %445 = arith.select %443, %441, %444 : vector<16x128xi1>, vector<16x128xf32>
    %446 = arith.maximumf %435, %445 : vector<16x128xf32>
    %447 = vector.extract_strided_slice %3 {offsets = [0, 4], sizes = [16, 1], strides = [1, 1]} : vector<16x16xi1> to vector<16x1xi1>
    %448 = vector.extract_strided_slice %400 {offsets = [4, 0], sizes = [1, 128], strides = [1, 1]} : vector<16x128xf32> to vector<1x128xf32>
    %449 = vector.extract_strided_slice %1 {offsets = [0, 4], sizes = [16, 1], strides = [1, 1]} : vector<16x16xf32> to vector<16x1xf32>
    %450 = vector.broadcast %449 : vector<16x1xf32> to vector<16x128xf32>
    %451 = vector.broadcast %448 : vector<1x128xf32> to vector<16x128xf32>
    %452 = arith.mulf %450, %451 : vector<16x128xf32>
    %cst_67 = arith.constant -3.400000e+38 : f32
    %453 = vector.shape_cast %447 : vector<16x1xi1> to vector<16x1xi1>
    %454 = vector.broadcast %453 : vector<16x1xi1> to vector<16x128xi1>
    %455 = vector.broadcast %cst_67 : f32 to vector<16x128xf32>
    %456 = arith.select %454, %452, %455 : vector<16x128xi1>, vector<16x128xf32>
    %457 = arith.maximumf %446, %456 : vector<16x128xf32>
    %458 = vector.extract_strided_slice %3 {offsets = [0, 5], sizes = [16, 1], strides = [1, 1]} : vector<16x16xi1> to vector<16x1xi1>
    %459 = vector.extract_strided_slice %400 {offsets = [5, 0], sizes = [1, 128], strides = [1, 1]} : vector<16x128xf32> to vector<1x128xf32>
    %460 = vector.extract_strided_slice %1 {offsets = [0, 5], sizes = [16, 1], strides = [1, 1]} : vector<16x16xf32> to vector<16x1xf32>
    %461 = vector.broadcast %460 : vector<16x1xf32> to vector<16x128xf32>
    %462 = vector.broadcast %459 : vector<1x128xf32> to vector<16x128xf32>
    %463 = arith.mulf %461, %462 : vector<16x128xf32>
    %cst_68 = arith.constant -3.400000e+38 : f32
    %464 = vector.shape_cast %458 : vector<16x1xi1> to vector<16x1xi1>
    %465 = vector.broadcast %464 : vector<16x1xi1> to vector<16x128xi1>
    %466 = vector.broadcast %cst_68 : f32 to vector<16x128xf32>
    %467 = arith.select %465, %463, %466 : vector<16x128xi1>, vector<16x128xf32>
    %468 = arith.maximumf %457, %467 : vector<16x128xf32>
    %469 = vector.extract_strided_slice %3 {offsets = [0, 6], sizes = [16, 1], strides = [1, 1]} : vector<16x16xi1> to vector<16x1xi1>
    %470 = vector.extract_strided_slice %400 {offsets = [6, 0], sizes = [1, 128], strides = [1, 1]} : vector<16x128xf32> to vector<1x128xf32>
    %471 = vector.extract_strided_slice %1 {offsets = [0, 6], sizes = [16, 1], strides = [1, 1]} : vector<16x16xf32> to vector<16x1xf32>
    %472 = vector.broadcast %471 : vector<16x1xf32> to vector<16x128xf32>
    %473 = vector.broadcast %470 : vector<1x128xf32> to vector<16x128xf32>
    %474 = arith.mulf %472, %473 : vector<16x128xf32>
    %cst_69 = arith.constant -3.400000e+38 : f32
    %475 = vector.shape_cast %469 : vector<16x1xi1> to vector<16x1xi1>
    %476 = vector.broadcast %475 : vector<16x1xi1> to vector<16x128xi1>
    %477 = vector.broadcast %cst_69 : f32 to vector<16x128xf32>
    %478 = arith.select %476, %474, %477 : vector<16x128xi1>, vector<16x128xf32>
    %479 = arith.maximumf %468, %478 : vector<16x128xf32>
    %480 = vector.extract_strided_slice %3 {offsets = [0, 7], sizes = [16, 1], strides = [1, 1]} : vector<16x16xi1> to vector<16x1xi1>
    %481 = vector.extract_strided_slice %400 {offsets = [7, 0], sizes = [1, 128], strides = [1, 1]} : vector<16x128xf32> to vector<1x128xf32>
    %482 = vector.extract_strided_slice %1 {offsets = [0, 7], sizes = [16, 1], strides = [1, 1]} : vector<16x16xf32> to vector<16x1xf32>
    %483 = vector.broadcast %482 : vector<16x1xf32> to vector<16x128xf32>
    %484 = vector.broadcast %481 : vector<1x128xf32> to vector<16x128xf32>
    %485 = arith.mulf %483, %484 : vector<16x128xf32>
    %cst_70 = arith.constant -3.400000e+38 : f32
    %486 = vector.shape_cast %480 : vector<16x1xi1> to vector<16x1xi1>
    %487 = vector.broadcast %486 : vector<16x1xi1> to vector<16x128xi1>
    %488 = vector.broadcast %cst_70 : f32 to vector<16x128xf32>
    %489 = arith.select %487, %485, %488 : vector<16x128xi1>, vector<16x128xf32>
    %490 = arith.maximumf %479, %489 : vector<16x128xf32>
    %491 = vector.extract_strided_slice %3 {offsets = [0, 8], sizes = [16, 1], strides = [1, 1]} : vector<16x16xi1> to vector<16x1xi1>
    %492 = vector.extract_strided_slice %400 {offsets = [8, 0], sizes = [1, 128], strides = [1, 1]} : vector<16x128xf32> to vector<1x128xf32>
    %493 = vector.extract_strided_slice %1 {offsets = [0, 8], sizes = [16, 1], strides = [1, 1]} : vector<16x16xf32> to vector<16x1xf32>
    %494 = vector.broadcast %493 : vector<16x1xf32> to vector<16x128xf32>
    %495 = vector.broadcast %492 : vector<1x128xf32> to vector<16x128xf32>
    %496 = arith.mulf %494, %495 : vector<16x128xf32>
    %cst_71 = arith.constant -3.400000e+38 : f32
    %497 = vector.shape_cast %491 : vector<16x1xi1> to vector<16x1xi1>
    %498 = vector.broadcast %497 : vector<16x1xi1> to vector<16x128xi1>
    %499 = vector.broadcast %cst_71 : f32 to vector<16x128xf32>
    %500 = arith.select %498, %496, %499 : vector<16x128xi1>, vector<16x128xf32>
    %501 = arith.maximumf %490, %500 : vector<16x128xf32>
    %502 = vector.extract_strided_slice %3 {offsets = [0, 9], sizes = [16, 1], strides = [1, 1]} : vector<16x16xi1> to vector<16x1xi1>
    %503 = vector.extract_strided_slice %400 {offsets = [9, 0], sizes = [1, 128], strides = [1, 1]} : vector<16x128xf32> to vector<1x128xf32>
    %504 = vector.extract_strided_slice %1 {offsets = [0, 9], sizes = [16, 1], strides = [1, 1]} : vector<16x16xf32> to vector<16x1xf32>
    %505 = vector.broadcast %504 : vector<16x1xf32> to vector<16x128xf32>
    %506 = vector.broadcast %503 : vector<1x128xf32> to vector<16x128xf32>
    %507 = arith.mulf %505, %506 : vector<16x128xf32>
    %cst_72 = arith.constant -3.400000e+38 : f32
    %508 = vector.shape_cast %502 : vector<16x1xi1> to vector<16x1xi1>
    %509 = vector.broadcast %508 : vector<16x1xi1> to vector<16x128xi1>
    %510 = vector.broadcast %cst_72 : f32 to vector<16x128xf32>
    %511 = arith.select %509, %507, %510 : vector<16x128xi1>, vector<16x128xf32>
    %512 = arith.maximumf %501, %511 : vector<16x128xf32>
    %513 = vector.extract_strided_slice %3 {offsets = [0, 10], sizes = [16, 1], strides = [1, 1]} : vector<16x16xi1> to vector<16x1xi1>
    %514 = vector.extract_strided_slice %400 {offsets = [10, 0], sizes = [1, 128], strides = [1, 1]} : vector<16x128xf32> to vector<1x128xf32>
    %515 = vector.extract_strided_slice %1 {offsets = [0, 10], sizes = [16, 1], strides = [1, 1]} : vector<16x16xf32> to vector<16x1xf32>
    %516 = vector.broadcast %515 : vector<16x1xf32> to vector<16x128xf32>
    %517 = vector.broadcast %514 : vector<1x128xf32> to vector<16x128xf32>
    %518 = arith.mulf %516, %517 : vector<16x128xf32>
    %cst_73 = arith.constant -3.400000e+38 : f32
    %519 = vector.shape_cast %513 : vector<16x1xi1> to vector<16x1xi1>
    %520 = vector.broadcast %519 : vector<16x1xi1> to vector<16x128xi1>
    %521 = vector.broadcast %cst_73 : f32 to vector<16x128xf32>
    %522 = arith.select %520, %518, %521 : vector<16x128xi1>, vector<16x128xf32>
    %523 = arith.maximumf %512, %522 : vector<16x128xf32>
    %524 = vector.extract_strided_slice %3 {offsets = [0, 11], sizes = [16, 1], strides = [1, 1]} : vector<16x16xi1> to vector<16x1xi1>
    %525 = vector.extract_strided_slice %400 {offsets = [11, 0], sizes = [1, 128], strides = [1, 1]} : vector<16x128xf32> to vector<1x128xf32>
    %526 = vector.extract_strided_slice %1 {offsets = [0, 11], sizes = [16, 1], strides = [1, 1]} : vector<16x16xf32> to vector<16x1xf32>
    %527 = vector.broadcast %526 : vector<16x1xf32> to vector<16x128xf32>
    %528 = vector.broadcast %525 : vector<1x128xf32> to vector<16x128xf32>
    %529 = arith.mulf %527, %528 : vector<16x128xf32>
    %cst_74 = arith.constant -3.400000e+38 : f32
    %530 = vector.shape_cast %524 : vector<16x1xi1> to vector<16x1xi1>
    %531 = vector.broadcast %530 : vector<16x1xi1> to vector<16x128xi1>
    %532 = vector.broadcast %cst_74 : f32 to vector<16x128xf32>
    %533 = arith.select %531, %529, %532 : vector<16x128xi1>, vector<16x128xf32>
    %534 = arith.maximumf %523, %533 : vector<16x128xf32>
    %535 = vector.extract_strided_slice %3 {offsets = [0, 12], sizes = [16, 1], strides = [1, 1]} : vector<16x16xi1> to vector<16x1xi1>
    %536 = vector.extract_strided_slice %400 {offsets = [12, 0], sizes = [1, 128], strides = [1, 1]} : vector<16x128xf32> to vector<1x128xf32>
    %537 = vector.extract_strided_slice %1 {offsets = [0, 12], sizes = [16, 1], strides = [1, 1]} : vector<16x16xf32> to vector<16x1xf32>
    %538 = vector.broadcast %537 : vector<16x1xf32> to vector<16x128xf32>
    %539 = vector.broadcast %536 : vector<1x128xf32> to vector<16x128xf32>
    %540 = arith.mulf %538, %539 : vector<16x128xf32>
    %cst_75 = arith.constant -3.400000e+38 : f32
    %541 = vector.shape_cast %535 : vector<16x1xi1> to vector<16x1xi1>
    %542 = vector.broadcast %541 : vector<16x1xi1> to vector<16x128xi1>
    %543 = vector.broadcast %cst_75 : f32 to vector<16x128xf32>
    %544 = arith.select %542, %540, %543 : vector<16x128xi1>, vector<16x128xf32>
    %545 = arith.maximumf %534, %544 : vector<16x128xf32>
    %546 = vector.extract_strided_slice %3 {offsets = [0, 13], sizes = [16, 1], strides = [1, 1]} : vector<16x16xi1> to vector<16x1xi1>
    %547 = vector.extract_strided_slice %400 {offsets = [13, 0], sizes = [1, 128], strides = [1, 1]} : vector<16x128xf32> to vector<1x128xf32>
    %548 = vector.extract_strided_slice %1 {offsets = [0, 13], sizes = [16, 1], strides = [1, 1]} : vector<16x16xf32> to vector<16x1xf32>
    %549 = vector.broadcast %548 : vector<16x1xf32> to vector<16x128xf32>
    %550 = vector.broadcast %547 : vector<1x128xf32> to vector<16x128xf32>
    %551 = arith.mulf %549, %550 : vector<16x128xf32>
    %cst_76 = arith.constant -3.400000e+38 : f32
    %552 = vector.shape_cast %546 : vector<16x1xi1> to vector<16x1xi1>
    %553 = vector.broadcast %552 : vector<16x1xi1> to vector<16x128xi1>
    %554 = vector.broadcast %cst_76 : f32 to vector<16x128xf32>
    %555 = arith.select %553, %551, %554 : vector<16x128xi1>, vector<16x128xf32>
    %556 = arith.maximumf %545, %555 : vector<16x128xf32>
    %557 = vector.extract_strided_slice %3 {offsets = [0, 14], sizes = [16, 1], strides = [1, 1]} : vector<16x16xi1> to vector<16x1xi1>
    %558 = vector.extract_strided_slice %400 {offsets = [14, 0], sizes = [1, 128], strides = [1, 1]} : vector<16x128xf32> to vector<1x128xf32>
    %559 = vector.extract_strided_slice %1 {offsets = [0, 14], sizes = [16, 1], strides = [1, 1]} : vector<16x16xf32> to vector<16x1xf32>
    %560 = vector.broadcast %559 : vector<16x1xf32> to vector<16x128xf32>
    %561 = vector.broadcast %558 : vector<1x128xf32> to vector<16x128xf32>
    %562 = arith.mulf %560, %561 : vector<16x128xf32>
    %cst_77 = arith.constant -3.400000e+38 : f32
    %563 = vector.shape_cast %557 : vector<16x1xi1> to vector<16x1xi1>
    %564 = vector.broadcast %563 : vector<16x1xi1> to vector<16x128xi1>
    %565 = vector.broadcast %cst_77 : f32 to vector<16x128xf32>
    %566 = arith.select %564, %562, %565 : vector<16x128xi1>, vector<16x128xf32>
    %567 = arith.maximumf %556, %566 : vector<16x128xf32>
    %568 = vector.extract_strided_slice %3 {offsets = [0, 15], sizes = [16, 1], strides = [1, 1]} : vector<16x16xi1> to vector<16x1xi1>
    %569 = vector.extract_strided_slice %400 {offsets = [15, 0], sizes = [1, 128], strides = [1, 1]} : vector<16x128xf32> to vector<1x128xf32>
    %570 = vector.extract_strided_slice %1 {offsets = [0, 15], sizes = [16, 1], strides = [1, 1]} : vector<16x16xf32> to vector<16x1xf32>
    %571 = vector.broadcast %570 : vector<16x1xf32> to vector<16x128xf32>
    %572 = vector.broadcast %569 : vector<1x128xf32> to vector<16x128xf32>
    %573 = arith.mulf %571, %572 : vector<16x128xf32>
    %cst_78 = arith.constant -3.400000e+38 : f32
    %574 = vector.shape_cast %568 : vector<16x1xi1> to vector<16x1xi1>
    %575 = vector.broadcast %574 : vector<16x1xi1> to vector<16x128xi1>
    %576 = vector.broadcast %cst_78 : f32 to vector<16x128xf32>
    %577 = arith.select %575, %573, %576 : vector<16x128xi1>, vector<16x128xf32>
    %578 = arith.maximumf %567, %577 : vector<16x128xf32>
    %cst_79 = arith.constant 0.000000e+00 : f32
    %579 = vector.shape_cast %8 : vector<16x1xi1> to vector<16x1xi1>
    %580 = vector.broadcast %579 : vector<16x1xi1> to vector<16x128xi1>
    %581 = vector.broadcast %cst_79 : f32 to vector<16x128xf32>
    %582 = arith.select %580, %578, %581 : vector<16x128xi1>, vector<16x128xf32>
    %583 = tpu.concatenate %582, %400 in 1 : vector<16x128xf32>, vector<16x128xf32> -> vector<16x256xf32>
    %c2 = arith.constant 2 : index
    %c0_80 = arith.constant 0 : index
    %c0_81 = arith.constant 0 : index
    %584 = vector.load %arg2[%c2, %c0_80, %c0_81] : memref<6x256x128xf32, #tpu.memory_space<vmem>>, vector<1x256x128xf32>
    %585 = vector.shape_cast %584 : vector<1x256x128xf32> to vector<256x128xf32>
    %cst_82 = arith.constant dense<0.000000e+00> : vector<16x128xf32>
    %586 = tpu.matmul %583, %585, %cst_82 {dimension_numbers = #tpu.dot_dimension_numbers<[1], [0], [0], [1], [0, 0, 1, 1], [], []>} : vector<16x256xf32>, vector<256x128xf32>, vector<16x128xf32> -> vector<16x128xf32>
    %c2_83 = arith.constant 2 : index
    %c0_84 = arith.constant 0 : index
    %c0_85 = arith.constant 0 : index
    %587 = vector.load %arg3[%c2_83, %c0_84, %c0_85] : memref<6x1x128xf32, #tpu.memory_space<vmem>>, vector<1x1x128xf32>
    %588 = vector.shape_cast %587 : vector<1x1x128xf32> to vector<1x128xf32>
    %589 = vector.broadcast %588 : vector<1x128xf32> to vector<16x128xf32>
    %590 = arith.addf %586, %589 : vector<16x128xf32>
    %c2_86 = arith.constant 2 : index
    %c0_87 = arith.constant 0 : index
    %c0_88 = arith.constant 0 : index
    %591 = vector.load %arg4[%c2_86, %c0_87, %c0_88] : memref<6x1x128xf32, #tpu.memory_space<vmem>>, vector<1x1x128xf32>
    %592 = vector.shape_cast %591 : vector<1x1x128xf32> to vector<1x128xf32>
    %cst_89 = arith.constant 0.000000e+00 : f32
    %593 = vector.broadcast %cst_89 : f32 to vector<16x128xf32>
    %594 = arith.cmpf ogt, %590, %593 : vector<16x128xf32>
    %595 = vector.broadcast %592 : vector<1x128xf32> to vector<16x128xf32>
    %596 = arith.mulf %595, %590 : vector<16x128xf32>
    %597 = arith.select %594, %590, %596 : vector<16x128xi1>, vector<16x128xf32>
    %598 = arith.maximumf %401, %597 : vector<16x128xf32>
    %cst_90 = arith.constant -3.400000e+38 : f32
    %599 = vector.broadcast %cst_90 : f32 to vector<16x128xf32>
    %600 = vector.extract_strided_slice %3 {offsets = [0, 0], sizes = [16, 1], strides = [1, 1]} : vector<16x16xi1> to vector<16x1xi1>
    %601 = vector.extract_strided_slice %598 {offsets = [0, 0], sizes = [1, 128], strides = [1, 1]} : vector<16x128xf32> to vector<1x128xf32>
    %cst_91 = arith.constant -3.400000e+38 : f32
    %602 = vector.shape_cast %600 : vector<16x1xi1> to vector<16x1xi1>
    %603 = vector.broadcast %602 : vector<16x1xi1> to vector<16x128xi1>
    %604 = vector.shape_cast %601 : vector<1x128xf32> to vector<1x128xf32>
    %605 = vector.broadcast %604 : vector<1x128xf32> to vector<16x128xf32>
    %606 = vector.broadcast %cst_91 : f32 to vector<16x128xf32>
    %607 = arith.select %603, %605, %606 : vector<16x128xi1>, vector<16x128xf32>
    %608 = arith.maximumf %599, %607 : vector<16x128xf32>
    %609 = vector.extract_strided_slice %3 {offsets = [0, 1], sizes = [16, 1], strides = [1, 1]} : vector<16x16xi1> to vector<16x1xi1>
    %610 = vector.extract_strided_slice %598 {offsets = [1, 0], sizes = [1, 128], strides = [1, 1]} : vector<16x128xf32> to vector<1x128xf32>
    %cst_92 = arith.constant -3.400000e+38 : f32
    %611 = vector.shape_cast %609 : vector<16x1xi1> to vector<16x1xi1>
    %612 = vector.broadcast %611 : vector<16x1xi1> to vector<16x128xi1>
    %613 = vector.shape_cast %610 : vector<1x128xf32> to vector<1x128xf32>
    %614 = vector.broadcast %613 : vector<1x128xf32> to vector<16x128xf32>
    %615 = vector.broadcast %cst_92 : f32 to vector<16x128xf32>
    %616 = arith.select %612, %614, %615 : vector<16x128xi1>, vector<16x128xf32>
    %617 = arith.maximumf %608, %616 : vector<16x128xf32>
    %618 = vector.extract_strided_slice %3 {offsets = [0, 2], sizes = [16, 1], strides = [1, 1]} : vector<16x16xi1> to vector<16x1xi1>
    %619 = vector.extract_strided_slice %598 {offsets = [2, 0], sizes = [1, 128], strides = [1, 1]} : vector<16x128xf32> to vector<1x128xf32>
    %cst_93 = arith.constant -3.400000e+38 : f32
    %620 = vector.shape_cast %618 : vector<16x1xi1> to vector<16x1xi1>
    %621 = vector.broadcast %620 : vector<16x1xi1> to vector<16x128xi1>
    %622 = vector.shape_cast %619 : vector<1x128xf32> to vector<1x128xf32>
    %623 = vector.broadcast %622 : vector<1x128xf32> to vector<16x128xf32>
    %624 = vector.broadcast %cst_93 : f32 to vector<16x128xf32>
    %625 = arith.select %621, %623, %624 : vector<16x128xi1>, vector<16x128xf32>
    %626 = arith.maximumf %617, %625 : vector<16x128xf32>
    %627 = vector.extract_strided_slice %3 {offsets = [0, 3], sizes = [16, 1], strides = [1, 1]} : vector<16x16xi1> to vector<16x1xi1>
    %628 = vector.extract_strided_slice %598 {offsets = [3, 0], sizes = [1, 128], strides = [1, 1]} : vector<16x128xf32> to vector<1x128xf32>
    %cst_94 = arith.constant -3.400000e+38 : f32
    %629 = vector.shape_cast %627 : vector<16x1xi1> to vector<16x1xi1>
    %630 = vector.broadcast %629 : vector<16x1xi1> to vector<16x128xi1>
    %631 = vector.shape_cast %628 : vector<1x128xf32> to vector<1x128xf32>
    %632 = vector.broadcast %631 : vector<1x128xf32> to vector<16x128xf32>
    %633 = vector.broadcast %cst_94 : f32 to vector<16x128xf32>
    %634 = arith.select %630, %632, %633 : vector<16x128xi1>, vector<16x128xf32>
    %635 = arith.maximumf %626, %634 : vector<16x128xf32>
    %636 = vector.extract_strided_slice %3 {offsets = [0, 4], sizes = [16, 1], strides = [1, 1]} : vector<16x16xi1> to vector<16x1xi1>
    %637 = vector.extract_strided_slice %598 {offsets = [4, 0], sizes = [1, 128], strides = [1, 1]} : vector<16x128xf32> to vector<1x128xf32>
    %cst_95 = arith.constant -3.400000e+38 : f32
    %638 = vector.shape_cast %636 : vector<16x1xi1> to vector<16x1xi1>
    %639 = vector.broadcast %638 : vector<16x1xi1> to vector<16x128xi1>
    %640 = vector.shape_cast %637 : vector<1x128xf32> to vector<1x128xf32>
    %641 = vector.broadcast %640 : vector<1x128xf32> to vector<16x128xf32>
    %642 = vector.broadcast %cst_95 : f32 to vector<16x128xf32>
    %643 = arith.select %639, %641, %642 : vector<16x128xi1>, vector<16x128xf32>
    %644 = arith.maximumf %635, %643 : vector<16x128xf32>
    %645 = vector.extract_strided_slice %3 {offsets = [0, 5], sizes = [16, 1], strides = [1, 1]} : vector<16x16xi1> to vector<16x1xi1>
    %646 = vector.extract_strided_slice %598 {offsets = [5, 0], sizes = [1, 128], strides = [1, 1]} : vector<16x128xf32> to vector<1x128xf32>
    %cst_96 = arith.constant -3.400000e+38 : f32
    %647 = vector.shape_cast %645 : vector<16x1xi1> to vector<16x1xi1>
    %648 = vector.broadcast %647 : vector<16x1xi1> to vector<16x128xi1>
    %649 = vector.shape_cast %646 : vector<1x128xf32> to vector<1x128xf32>
    %650 = vector.broadcast %649 : vector<1x128xf32> to vector<16x128xf32>
    %651 = vector.broadcast %cst_96 : f32 to vector<16x128xf32>
    %652 = arith.select %648, %650, %651 : vector<16x128xi1>, vector<16x128xf32>
    %653 = arith.maximumf %644, %652 : vector<16x128xf32>
    %654 = vector.extract_strided_slice %3 {offsets = [0, 6], sizes = [16, 1], strides = [1, 1]} : vector<16x16xi1> to vector<16x1xi1>
    %655 = vector.extract_strided_slice %598 {offsets = [6, 0], sizes = [1, 128], strides = [1, 1]} : vector<16x128xf32> to vector<1x128xf32>
    %cst_97 = arith.constant -3.400000e+38 : f32
    %656 = vector.shape_cast %654 : vector<16x1xi1> to vector<16x1xi1>
    %657 = vector.broadcast %656 : vector<16x1xi1> to vector<16x128xi1>
    %658 = vector.shape_cast %655 : vector<1x128xf32> to vector<1x128xf32>
    %659 = vector.broadcast %658 : vector<1x128xf32> to vector<16x128xf32>
    %660 = vector.broadcast %cst_97 : f32 to vector<16x128xf32>
    %661 = arith.select %657, %659, %660 : vector<16x128xi1>, vector<16x128xf32>
    %662 = arith.maximumf %653, %661 : vector<16x128xf32>
    %663 = vector.extract_strided_slice %3 {offsets = [0, 7], sizes = [16, 1], strides = [1, 1]} : vector<16x16xi1> to vector<16x1xi1>
    %664 = vector.extract_strided_slice %598 {offsets = [7, 0], sizes = [1, 128], strides = [1, 1]} : vector<16x128xf32> to vector<1x128xf32>
    %cst_98 = arith.constant -3.400000e+38 : f32
    %665 = vector.shape_cast %663 : vector<16x1xi1> to vector<16x1xi1>
    %666 = vector.broadcast %665 : vector<16x1xi1> to vector<16x128xi1>
    %667 = vector.shape_cast %664 : vector<1x128xf32> to vector<1x128xf32>
    %668 = vector.broadcast %667 : vector<1x128xf32> to vector<16x128xf32>
    %669 = vector.broadcast %cst_98 : f32 to vector<16x128xf32>
    %670 = arith.select %666, %668, %669 : vector<16x128xi1>, vector<16x128xf32>
    %671 = arith.maximumf %662, %670 : vector<16x128xf32>
    %672 = vector.extract_strided_slice %3 {offsets = [0, 8], sizes = [16, 1], strides = [1, 1]} : vector<16x16xi1> to vector<16x1xi1>
    %673 = vector.extract_strided_slice %598 {offsets = [8, 0], sizes = [1, 128], strides = [1, 1]} : vector<16x128xf32> to vector<1x128xf32>
    %cst_99 = arith.constant -3.400000e+38 : f32
    %674 = vector.shape_cast %672 : vector<16x1xi1> to vector<16x1xi1>
    %675 = vector.broadcast %674 : vector<16x1xi1> to vector<16x128xi1>
    %676 = vector.shape_cast %673 : vector<1x128xf32> to vector<1x128xf32>
    %677 = vector.broadcast %676 : vector<1x128xf32> to vector<16x128xf32>
    %678 = vector.broadcast %cst_99 : f32 to vector<16x128xf32>
    %679 = arith.select %675, %677, %678 : vector<16x128xi1>, vector<16x128xf32>
    %680 = arith.maximumf %671, %679 : vector<16x128xf32>
    %681 = vector.extract_strided_slice %3 {offsets = [0, 9], sizes = [16, 1], strides = [1, 1]} : vector<16x16xi1> to vector<16x1xi1>
    %682 = vector.extract_strided_slice %598 {offsets = [9, 0], sizes = [1, 128], strides = [1, 1]} : vector<16x128xf32> to vector<1x128xf32>
    %cst_100 = arith.constant -3.400000e+38 : f32
    %683 = vector.shape_cast %681 : vector<16x1xi1> to vector<16x1xi1>
    %684 = vector.broadcast %683 : vector<16x1xi1> to vector<16x128xi1>
    %685 = vector.shape_cast %682 : vector<1x128xf32> to vector<1x128xf32>
    %686 = vector.broadcast %685 : vector<1x128xf32> to vector<16x128xf32>
    %687 = vector.broadcast %cst_100 : f32 to vector<16x128xf32>
    %688 = arith.select %684, %686, %687 : vector<16x128xi1>, vector<16x128xf32>
    %689 = arith.maximumf %680, %688 : vector<16x128xf32>
    %690 = vector.extract_strided_slice %3 {offsets = [0, 10], sizes = [16, 1], strides = [1, 1]} : vector<16x16xi1> to vector<16x1xi1>
    %691 = vector.extract_strided_slice %598 {offsets = [10, 0], sizes = [1, 128], strides = [1, 1]} : vector<16x128xf32> to vector<1x128xf32>
    %cst_101 = arith.constant -3.400000e+38 : f32
    %692 = vector.shape_cast %690 : vector<16x1xi1> to vector<16x1xi1>
    %693 = vector.broadcast %692 : vector<16x1xi1> to vector<16x128xi1>
    %694 = vector.shape_cast %691 : vector<1x128xf32> to vector<1x128xf32>
    %695 = vector.broadcast %694 : vector<1x128xf32> to vector<16x128xf32>
    %696 = vector.broadcast %cst_101 : f32 to vector<16x128xf32>
    %697 = arith.select %693, %695, %696 : vector<16x128xi1>, vector<16x128xf32>
    %698 = arith.maximumf %689, %697 : vector<16x128xf32>
    %699 = vector.extract_strided_slice %3 {offsets = [0, 11], sizes = [16, 1], strides = [1, 1]} : vector<16x16xi1> to vector<16x1xi1>
    %700 = vector.extract_strided_slice %598 {offsets = [11, 0], sizes = [1, 128], strides = [1, 1]} : vector<16x128xf32> to vector<1x128xf32>
    %cst_102 = arith.constant -3.400000e+38 : f32
    %701 = vector.shape_cast %699 : vector<16x1xi1> to vector<16x1xi1>
    %702 = vector.broadcast %701 : vector<16x1xi1> to vector<16x128xi1>
    %703 = vector.shape_cast %700 : vector<1x128xf32> to vector<1x128xf32>
    %704 = vector.broadcast %703 : vector<1x128xf32> to vector<16x128xf32>
    %705 = vector.broadcast %cst_102 : f32 to vector<16x128xf32>
    %706 = arith.select %702, %704, %705 : vector<16x128xi1>, vector<16x128xf32>
    %707 = arith.maximumf %698, %706 : vector<16x128xf32>
    %708 = vector.extract_strided_slice %3 {offsets = [0, 12], sizes = [16, 1], strides = [1, 1]} : vector<16x16xi1> to vector<16x1xi1>
    %709 = vector.extract_strided_slice %598 {offsets = [12, 0], sizes = [1, 128], strides = [1, 1]} : vector<16x128xf32> to vector<1x128xf32>
    %cst_103 = arith.constant -3.400000e+38 : f32
    %710 = vector.shape_cast %708 : vector<16x1xi1> to vector<16x1xi1>
    %711 = vector.broadcast %710 : vector<16x1xi1> to vector<16x128xi1>
    %712 = vector.shape_cast %709 : vector<1x128xf32> to vector<1x128xf32>
    %713 = vector.broadcast %712 : vector<1x128xf32> to vector<16x128xf32>
    %714 = vector.broadcast %cst_103 : f32 to vector<16x128xf32>
    %715 = arith.select %711, %713, %714 : vector<16x128xi1>, vector<16x128xf32>
    %716 = arith.maximumf %707, %715 : vector<16x128xf32>
    %717 = vector.extract_strided_slice %3 {offsets = [0, 13], sizes = [16, 1], strides = [1, 1]} : vector<16x16xi1> to vector<16x1xi1>
    %718 = vector.extract_strided_slice %598 {offsets = [13, 0], sizes = [1, 128], strides = [1, 1]} : vector<16x128xf32> to vector<1x128xf32>
    %cst_104 = arith.constant -3.400000e+38 : f32
    %719 = vector.shape_cast %717 : vector<16x1xi1> to vector<16x1xi1>
    %720 = vector.broadcast %719 : vector<16x1xi1> to vector<16x128xi1>
    %721 = vector.shape_cast %718 : vector<1x128xf32> to vector<1x128xf32>
    %722 = vector.broadcast %721 : vector<1x128xf32> to vector<16x128xf32>
    %723 = vector.broadcast %cst_104 : f32 to vector<16x128xf32>
    %724 = arith.select %720, %722, %723 : vector<16x128xi1>, vector<16x128xf32>
    %725 = arith.maximumf %716, %724 : vector<16x128xf32>
    %726 = vector.extract_strided_slice %3 {offsets = [0, 14], sizes = [16, 1], strides = [1, 1]} : vector<16x16xi1> to vector<16x1xi1>
    %727 = vector.extract_strided_slice %598 {offsets = [14, 0], sizes = [1, 128], strides = [1, 1]} : vector<16x128xf32> to vector<1x128xf32>
    %cst_105 = arith.constant -3.400000e+38 : f32
    %728 = vector.shape_cast %726 : vector<16x1xi1> to vector<16x1xi1>
    %729 = vector.broadcast %728 : vector<16x1xi1> to vector<16x128xi1>
    %730 = vector.shape_cast %727 : vector<1x128xf32> to vector<1x128xf32>
    %731 = vector.broadcast %730 : vector<1x128xf32> to vector<16x128xf32>
    %732 = vector.broadcast %cst_105 : f32 to vector<16x128xf32>
    %733 = arith.select %729, %731, %732 : vector<16x128xi1>, vector<16x128xf32>
    %734 = arith.maximumf %725, %733 : vector<16x128xf32>
    %735 = vector.extract_strided_slice %3 {offsets = [0, 15], sizes = [16, 1], strides = [1, 1]} : vector<16x16xi1> to vector<16x1xi1>
    %736 = vector.extract_strided_slice %598 {offsets = [15, 0], sizes = [1, 128], strides = [1, 1]} : vector<16x128xf32> to vector<1x128xf32>
    %cst_106 = arith.constant -3.400000e+38 : f32
    %737 = vector.shape_cast %735 : vector<16x1xi1> to vector<16x1xi1>
    %738 = vector.broadcast %737 : vector<16x1xi1> to vector<16x128xi1>
    %739 = vector.shape_cast %736 : vector<1x128xf32> to vector<1x128xf32>
    %740 = vector.broadcast %739 : vector<1x128xf32> to vector<16x128xf32>
    %741 = vector.broadcast %cst_106 : f32 to vector<16x128xf32>
    %742 = arith.select %738, %740, %741 : vector<16x128xi1>, vector<16x128xf32>
    %743 = arith.maximumf %734, %742 : vector<16x128xf32>
    %cst_107 = arith.constant 0.000000e+00 : f32
    %744 = vector.shape_cast %8 : vector<16x1xi1> to vector<16x1xi1>
    %745 = vector.broadcast %744 : vector<16x1xi1> to vector<16x128xi1>
    %746 = vector.broadcast %cst_107 : f32 to vector<16x128xf32>
    %747 = arith.select %745, %743, %746 : vector<16x128xi1>, vector<16x128xf32>
    %748 = tpu.concatenate %747, %598 in 1 : vector<16x128xf32>, vector<16x128xf32> -> vector<16x256xf32>
    %c3 = arith.constant 3 : index
    %c0_108 = arith.constant 0 : index
    %c0_109 = arith.constant 0 : index
    %749 = vector.load %arg2[%c3, %c0_108, %c0_109] : memref<6x256x128xf32, #tpu.memory_space<vmem>>, vector<1x256x128xf32>
    %750 = vector.shape_cast %749 : vector<1x256x128xf32> to vector<256x128xf32>
    %cst_110 = arith.constant dense<0.000000e+00> : vector<16x128xf32>
    %751 = tpu.matmul %748, %750, %cst_110 {dimension_numbers = #tpu.dot_dimension_numbers<[1], [0], [0], [1], [0, 0, 1, 1], [], []>} : vector<16x256xf32>, vector<256x128xf32>, vector<16x128xf32> -> vector<16x128xf32>
    %c3_111 = arith.constant 3 : index
    %c0_112 = arith.constant 0 : index
    %c0_113 = arith.constant 0 : index
    %752 = vector.load %arg3[%c3_111, %c0_112, %c0_113] : memref<6x1x128xf32, #tpu.memory_space<vmem>>, vector<1x1x128xf32>
    %753 = vector.shape_cast %752 : vector<1x1x128xf32> to vector<1x128xf32>
    %754 = vector.broadcast %753 : vector<1x128xf32> to vector<16x128xf32>
    %755 = arith.addf %751, %754 : vector<16x128xf32>
    %c3_114 = arith.constant 3 : index
    %c0_115 = arith.constant 0 : index
    %c0_116 = arith.constant 0 : index
    %756 = vector.load %arg4[%c3_114, %c0_115, %c0_116] : memref<6x1x128xf32, #tpu.memory_space<vmem>>, vector<1x1x128xf32>
    %757 = vector.shape_cast %756 : vector<1x1x128xf32> to vector<1x128xf32>
    %cst_117 = arith.constant 0.000000e+00 : f32
    %758 = vector.broadcast %cst_117 : f32 to vector<16x128xf32>
    %759 = arith.cmpf ogt, %755, %758 : vector<16x128xf32>
    %760 = vector.broadcast %757 : vector<1x128xf32> to vector<16x128xf32>
    %761 = arith.mulf %760, %755 : vector<16x128xf32>
    %762 = arith.select %759, %755, %761 : vector<16x128xi1>, vector<16x128xf32>
    %cst_118 = arith.constant -3.400000e+38 : f32
    %763 = vector.broadcast %cst_118 : f32 to vector<16x128xf32>
    %764 = vector.extract_strided_slice %3 {offsets = [0, 0], sizes = [16, 1], strides = [1, 1]} : vector<16x16xi1> to vector<16x1xi1>
    %765 = vector.extract_strided_slice %762 {offsets = [0, 0], sizes = [1, 128], strides = [1, 1]} : vector<16x128xf32> to vector<1x128xf32>
    %cst_119 = arith.constant -3.400000e+38 : f32
    %766 = vector.shape_cast %764 : vector<16x1xi1> to vector<16x1xi1>
    %767 = vector.broadcast %766 : vector<16x1xi1> to vector<16x128xi1>
    %768 = vector.shape_cast %765 : vector<1x128xf32> to vector<1x128xf32>
    %769 = vector.broadcast %768 : vector<1x128xf32> to vector<16x128xf32>
    %770 = vector.broadcast %cst_119 : f32 to vector<16x128xf32>
    %771 = arith.select %767, %769, %770 : vector<16x128xi1>, vector<16x128xf32>
    %772 = arith.maximumf %763, %771 : vector<16x128xf32>
    %773 = vector.extract_strided_slice %3 {offsets = [0, 1], sizes = [16, 1], strides = [1, 1]} : vector<16x16xi1> to vector<16x1xi1>
    %774 = vector.extract_strided_slice %762 {offsets = [1, 0], sizes = [1, 128], strides = [1, 1]} : vector<16x128xf32> to vector<1x128xf32>
    %cst_120 = arith.constant -3.400000e+38 : f32
    %775 = vector.shape_cast %773 : vector<16x1xi1> to vector<16x1xi1>
    %776 = vector.broadcast %775 : vector<16x1xi1> to vector<16x128xi1>
    %777 = vector.shape_cast %774 : vector<1x128xf32> to vector<1x128xf32>
    %778 = vector.broadcast %777 : vector<1x128xf32> to vector<16x128xf32>
    %779 = vector.broadcast %cst_120 : f32 to vector<16x128xf32>
    %780 = arith.select %776, %778, %779 : vector<16x128xi1>, vector<16x128xf32>
    %781 = arith.maximumf %772, %780 : vector<16x128xf32>
    %782 = vector.extract_strided_slice %3 {offsets = [0, 2], sizes = [16, 1], strides = [1, 1]} : vector<16x16xi1> to vector<16x1xi1>
    %783 = vector.extract_strided_slice %762 {offsets = [2, 0], sizes = [1, 128], strides = [1, 1]} : vector<16x128xf32> to vector<1x128xf32>
    %cst_121 = arith.constant -3.400000e+38 : f32
    %784 = vector.shape_cast %782 : vector<16x1xi1> to vector<16x1xi1>
    %785 = vector.broadcast %784 : vector<16x1xi1> to vector<16x128xi1>
    %786 = vector.shape_cast %783 : vector<1x128xf32> to vector<1x128xf32>
    %787 = vector.broadcast %786 : vector<1x128xf32> to vector<16x128xf32>
    %788 = vector.broadcast %cst_121 : f32 to vector<16x128xf32>
    %789 = arith.select %785, %787, %788 : vector<16x128xi1>, vector<16x128xf32>
    %790 = arith.maximumf %781, %789 : vector<16x128xf32>
    %791 = vector.extract_strided_slice %3 {offsets = [0, 3], sizes = [16, 1], strides = [1, 1]} : vector<16x16xi1> to vector<16x1xi1>
    %792 = vector.extract_strided_slice %762 {offsets = [3, 0], sizes = [1, 128], strides = [1, 1]} : vector<16x128xf32> to vector<1x128xf32>
    %cst_122 = arith.constant -3.400000e+38 : f32
    %793 = vector.shape_cast %791 : vector<16x1xi1> to vector<16x1xi1>
    %794 = vector.broadcast %793 : vector<16x1xi1> to vector<16x128xi1>
    %795 = vector.shape_cast %792 : vector<1x128xf32> to vector<1x128xf32>
    %796 = vector.broadcast %795 : vector<1x128xf32> to vector<16x128xf32>
    %797 = vector.broadcast %cst_122 : f32 to vector<16x128xf32>
    %798 = arith.select %794, %796, %797 : vector<16x128xi1>, vector<16x128xf32>
    %799 = arith.maximumf %790, %798 : vector<16x128xf32>
    %800 = vector.extract_strided_slice %3 {offsets = [0, 4], sizes = [16, 1], strides = [1, 1]} : vector<16x16xi1> to vector<16x1xi1>
    %801 = vector.extract_strided_slice %762 {offsets = [4, 0], sizes = [1, 128], strides = [1, 1]} : vector<16x128xf32> to vector<1x128xf32>
    %cst_123 = arith.constant -3.400000e+38 : f32
    %802 = vector.shape_cast %800 : vector<16x1xi1> to vector<16x1xi1>
    %803 = vector.broadcast %802 : vector<16x1xi1> to vector<16x128xi1>
    %804 = vector.shape_cast %801 : vector<1x128xf32> to vector<1x128xf32>
    %805 = vector.broadcast %804 : vector<1x128xf32> to vector<16x128xf32>
    %806 = vector.broadcast %cst_123 : f32 to vector<16x128xf32>
    %807 = arith.select %803, %805, %806 : vector<16x128xi1>, vector<16x128xf32>
    %808 = arith.maximumf %799, %807 : vector<16x128xf32>
    %809 = vector.extract_strided_slice %3 {offsets = [0, 5], sizes = [16, 1], strides = [1, 1]} : vector<16x16xi1> to vector<16x1xi1>
    %810 = vector.extract_strided_slice %762 {offsets = [5, 0], sizes = [1, 128], strides = [1, 1]} : vector<16x128xf32> to vector<1x128xf32>
    %cst_124 = arith.constant -3.400000e+38 : f32
    %811 = vector.shape_cast %809 : vector<16x1xi1> to vector<16x1xi1>
    %812 = vector.broadcast %811 : vector<16x1xi1> to vector<16x128xi1>
    %813 = vector.shape_cast %810 : vector<1x128xf32> to vector<1x128xf32>
    %814 = vector.broadcast %813 : vector<1x128xf32> to vector<16x128xf32>
    %815 = vector.broadcast %cst_124 : f32 to vector<16x128xf32>
    %816 = arith.select %812, %814, %815 : vector<16x128xi1>, vector<16x128xf32>
    %817 = arith.maximumf %808, %816 : vector<16x128xf32>
    %818 = vector.extract_strided_slice %3 {offsets = [0, 6], sizes = [16, 1], strides = [1, 1]} : vector<16x16xi1> to vector<16x1xi1>
    %819 = vector.extract_strided_slice %762 {offsets = [6, 0], sizes = [1, 128], strides = [1, 1]} : vector<16x128xf32> to vector<1x128xf32>
    %cst_125 = arith.constant -3.400000e+38 : f32
    %820 = vector.shape_cast %818 : vector<16x1xi1> to vector<16x1xi1>
    %821 = vector.broadcast %820 : vector<16x1xi1> to vector<16x128xi1>
    %822 = vector.shape_cast %819 : vector<1x128xf32> to vector<1x128xf32>
    %823 = vector.broadcast %822 : vector<1x128xf32> to vector<16x128xf32>
    %824 = vector.broadcast %cst_125 : f32 to vector<16x128xf32>
    %825 = arith.select %821, %823, %824 : vector<16x128xi1>, vector<16x128xf32>
    %826 = arith.maximumf %817, %825 : vector<16x128xf32>
    %827 = vector.extract_strided_slice %3 {offsets = [0, 7], sizes = [16, 1], strides = [1, 1]} : vector<16x16xi1> to vector<16x1xi1>
    %828 = vector.extract_strided_slice %762 {offsets = [7, 0], sizes = [1, 128], strides = [1, 1]} : vector<16x128xf32> to vector<1x128xf32>
    %cst_126 = arith.constant -3.400000e+38 : f32
    %829 = vector.shape_cast %827 : vector<16x1xi1> to vector<16x1xi1>
    %830 = vector.broadcast %829 : vector<16x1xi1> to vector<16x128xi1>
    %831 = vector.shape_cast %828 : vector<1x128xf32> to vector<1x128xf32>
    %832 = vector.broadcast %831 : vector<1x128xf32> to vector<16x128xf32>
    %833 = vector.broadcast %cst_126 : f32 to vector<16x128xf32>
    %834 = arith.select %830, %832, %833 : vector<16x128xi1>, vector<16x128xf32>
    %835 = arith.maximumf %826, %834 : vector<16x128xf32>
    %836 = vector.extract_strided_slice %3 {offsets = [0, 8], sizes = [16, 1], strides = [1, 1]} : vector<16x16xi1> to vector<16x1xi1>
    %837 = vector.extract_strided_slice %762 {offsets = [8, 0], sizes = [1, 128], strides = [1, 1]} : vector<16x128xf32> to vector<1x128xf32>
    %cst_127 = arith.constant -3.400000e+38 : f32
    %838 = vector.shape_cast %836 : vector<16x1xi1> to vector<16x1xi1>
    %839 = vector.broadcast %838 : vector<16x1xi1> to vector<16x128xi1>
    %840 = vector.shape_cast %837 : vector<1x128xf32> to vector<1x128xf32>
    %841 = vector.broadcast %840 : vector<1x128xf32> to vector<16x128xf32>
    %842 = vector.broadcast %cst_127 : f32 to vector<16x128xf32>
    %843 = arith.select %839, %841, %842 : vector<16x128xi1>, vector<16x128xf32>
    %844 = arith.maximumf %835, %843 : vector<16x128xf32>
    %845 = vector.extract_strided_slice %3 {offsets = [0, 9], sizes = [16, 1], strides = [1, 1]} : vector<16x16xi1> to vector<16x1xi1>
    %846 = vector.extract_strided_slice %762 {offsets = [9, 0], sizes = [1, 128], strides = [1, 1]} : vector<16x128xf32> to vector<1x128xf32>
    %cst_128 = arith.constant -3.400000e+38 : f32
    %847 = vector.shape_cast %845 : vector<16x1xi1> to vector<16x1xi1>
    %848 = vector.broadcast %847 : vector<16x1xi1> to vector<16x128xi1>
    %849 = vector.shape_cast %846 : vector<1x128xf32> to vector<1x128xf32>
    %850 = vector.broadcast %849 : vector<1x128xf32> to vector<16x128xf32>
    %851 = vector.broadcast %cst_128 : f32 to vector<16x128xf32>
    %852 = arith.select %848, %850, %851 : vector<16x128xi1>, vector<16x128xf32>
    %853 = arith.maximumf %844, %852 : vector<16x128xf32>
    %854 = vector.extract_strided_slice %3 {offsets = [0, 10], sizes = [16, 1], strides = [1, 1]} : vector<16x16xi1> to vector<16x1xi1>
    %855 = vector.extract_strided_slice %762 {offsets = [10, 0], sizes = [1, 128], strides = [1, 1]} : vector<16x128xf32> to vector<1x128xf32>
    %cst_129 = arith.constant -3.400000e+38 : f32
    %856 = vector.shape_cast %854 : vector<16x1xi1> to vector<16x1xi1>
    %857 = vector.broadcast %856 : vector<16x1xi1> to vector<16x128xi1>
    %858 = vector.shape_cast %855 : vector<1x128xf32> to vector<1x128xf32>
    %859 = vector.broadcast %858 : vector<1x128xf32> to vector<16x128xf32>
    %860 = vector.broadcast %cst_129 : f32 to vector<16x128xf32>
    %861 = arith.select %857, %859, %860 : vector<16x128xi1>, vector<16x128xf32>
    %862 = arith.maximumf %853, %861 : vector<16x128xf32>
    %863 = vector.extract_strided_slice %3 {offsets = [0, 11], sizes = [16, 1], strides = [1, 1]} : vector<16x16xi1> to vector<16x1xi1>
    %864 = vector.extract_strided_slice %762 {offsets = [11, 0], sizes = [1, 128], strides = [1, 1]} : vector<16x128xf32> to vector<1x128xf32>
    %cst_130 = arith.constant -3.400000e+38 : f32
    %865 = vector.shape_cast %863 : vector<16x1xi1> to vector<16x1xi1>
    %866 = vector.broadcast %865 : vector<16x1xi1> to vector<16x128xi1>
    %867 = vector.shape_cast %864 : vector<1x128xf32> to vector<1x128xf32>
    %868 = vector.broadcast %867 : vector<1x128xf32> to vector<16x128xf32>
    %869 = vector.broadcast %cst_130 : f32 to vector<16x128xf32>
    %870 = arith.select %866, %868, %869 : vector<16x128xi1>, vector<16x128xf32>
    %871 = arith.maximumf %862, %870 : vector<16x128xf32>
    %872 = vector.extract_strided_slice %3 {offsets = [0, 12], sizes = [16, 1], strides = [1, 1]} : vector<16x16xi1> to vector<16x1xi1>
    %873 = vector.extract_strided_slice %762 {offsets = [12, 0], sizes = [1, 128], strides = [1, 1]} : vector<16x128xf32> to vector<1x128xf32>
    %cst_131 = arith.constant -3.400000e+38 : f32
    %874 = vector.shape_cast %872 : vector<16x1xi1> to vector<16x1xi1>
    %875 = vector.broadcast %874 : vector<16x1xi1> to vector<16x128xi1>
    %876 = vector.shape_cast %873 : vector<1x128xf32> to vector<1x128xf32>
    %877 = vector.broadcast %876 : vector<1x128xf32> to vector<16x128xf32>
    %878 = vector.broadcast %cst_131 : f32 to vector<16x128xf32>
    %879 = arith.select %875, %877, %878 : vector<16x128xi1>, vector<16x128xf32>
    %880 = arith.maximumf %871, %879 : vector<16x128xf32>
    %881 = vector.extract_strided_slice %3 {offsets = [0, 13], sizes = [16, 1], strides = [1, 1]} : vector<16x16xi1> to vector<16x1xi1>
    %882 = vector.extract_strided_slice %762 {offsets = [13, 0], sizes = [1, 128], strides = [1, 1]} : vector<16x128xf32> to vector<1x128xf32>
    %cst_132 = arith.constant -3.400000e+38 : f32
    %883 = vector.shape_cast %881 : vector<16x1xi1> to vector<16x1xi1>
    %884 = vector.broadcast %883 : vector<16x1xi1> to vector<16x128xi1>
    %885 = vector.shape_cast %882 : vector<1x128xf32> to vector<1x128xf32>
    %886 = vector.broadcast %885 : vector<1x128xf32> to vector<16x128xf32>
    %887 = vector.broadcast %cst_132 : f32 to vector<16x128xf32>
    %888 = arith.select %884, %886, %887 : vector<16x128xi1>, vector<16x128xf32>
    %889 = arith.maximumf %880, %888 : vector<16x128xf32>
    %890 = vector.extract_strided_slice %3 {offsets = [0, 14], sizes = [16, 1], strides = [1, 1]} : vector<16x16xi1> to vector<16x1xi1>
    %891 = vector.extract_strided_slice %762 {offsets = [14, 0], sizes = [1, 128], strides = [1, 1]} : vector<16x128xf32> to vector<1x128xf32>
    %cst_133 = arith.constant -3.400000e+38 : f32
    %892 = vector.shape_cast %890 : vector<16x1xi1> to vector<16x1xi1>
    %893 = vector.broadcast %892 : vector<16x1xi1> to vector<16x128xi1>
    %894 = vector.shape_cast %891 : vector<1x128xf32> to vector<1x128xf32>
    %895 = vector.broadcast %894 : vector<1x128xf32> to vector<16x128xf32>
    %896 = vector.broadcast %cst_133 : f32 to vector<16x128xf32>
    %897 = arith.select %893, %895, %896 : vector<16x128xi1>, vector<16x128xf32>
    %898 = arith.maximumf %889, %897 : vector<16x128xf32>
    %899 = vector.extract_strided_slice %3 {offsets = [0, 15], sizes = [16, 1], strides = [1, 1]} : vector<16x16xi1> to vector<16x1xi1>
    %900 = vector.extract_strided_slice %762 {offsets = [15, 0], sizes = [1, 128], strides = [1, 1]} : vector<16x128xf32> to vector<1x128xf32>
    %cst_134 = arith.constant -3.400000e+38 : f32
    %901 = vector.shape_cast %899 : vector<16x1xi1> to vector<16x1xi1>
    %902 = vector.broadcast %901 : vector<16x1xi1> to vector<16x128xi1>
    %903 = vector.shape_cast %900 : vector<1x128xf32> to vector<1x128xf32>
    %904 = vector.broadcast %903 : vector<1x128xf32> to vector<16x128xf32>
    %905 = vector.broadcast %cst_134 : f32 to vector<16x128xf32>
    %906 = arith.select %902, %904, %905 : vector<16x128xi1>, vector<16x128xf32>
    %907 = arith.maximumf %898, %906 : vector<16x128xf32>
    %cst_135 = arith.constant 0.000000e+00 : f32
    %908 = vector.shape_cast %8 : vector<16x1xi1> to vector<16x1xi1>
    %909 = vector.broadcast %908 : vector<16x1xi1> to vector<16x128xi1>
    %910 = vector.broadcast %cst_135 : f32 to vector<16x128xf32>
    %911 = arith.select %909, %907, %910 : vector<16x128xi1>, vector<16x128xf32>
    %912 = tpu.concatenate %911, %762 in 1 : vector<16x128xf32>, vector<16x128xf32> -> vector<16x256xf32>
    %c4 = arith.constant 4 : index
    %c0_136 = arith.constant 0 : index
    %c0_137 = arith.constant 0 : index
    %913 = vector.load %arg2[%c4, %c0_136, %c0_137] : memref<6x256x128xf32, #tpu.memory_space<vmem>>, vector<1x256x128xf32>
    %914 = vector.shape_cast %913 : vector<1x256x128xf32> to vector<256x128xf32>
    %cst_138 = arith.constant dense<0.000000e+00> : vector<16x128xf32>
    %915 = tpu.matmul %912, %914, %cst_138 {dimension_numbers = #tpu.dot_dimension_numbers<[1], [0], [0], [1], [0, 0, 1, 1], [], []>} : vector<16x256xf32>, vector<256x128xf32>, vector<16x128xf32> -> vector<16x128xf32>
    %c4_139 = arith.constant 4 : index
    %c0_140 = arith.constant 0 : index
    %c0_141 = arith.constant 0 : index
    %916 = vector.load %arg3[%c4_139, %c0_140, %c0_141] : memref<6x1x128xf32, #tpu.memory_space<vmem>>, vector<1x1x128xf32>
    %917 = vector.shape_cast %916 : vector<1x1x128xf32> to vector<1x128xf32>
    %918 = vector.broadcast %917 : vector<1x128xf32> to vector<16x128xf32>
    %919 = arith.addf %915, %918 : vector<16x128xf32>
    %c4_142 = arith.constant 4 : index
    %c0_143 = arith.constant 0 : index
    %c0_144 = arith.constant 0 : index
    %920 = vector.load %arg4[%c4_142, %c0_143, %c0_144] : memref<6x1x128xf32, #tpu.memory_space<vmem>>, vector<1x1x128xf32>
    %921 = vector.shape_cast %920 : vector<1x1x128xf32> to vector<1x128xf32>
    %cst_145 = arith.constant 0.000000e+00 : f32
    %922 = vector.broadcast %cst_145 : f32 to vector<16x128xf32>
    %923 = arith.cmpf ogt, %919, %922 : vector<16x128xf32>
    %924 = vector.broadcast %921 : vector<1x128xf32> to vector<16x128xf32>
    %925 = arith.mulf %924, %919 : vector<16x128xf32>
    %926 = arith.select %923, %919, %925 : vector<16x128xi1>, vector<16x128xf32>
    %927 = arith.maximumf %762, %926 : vector<16x128xf32>
    %cst_146 = arith.constant -3.400000e+38 : f32
    %928 = vector.broadcast %cst_146 : f32 to vector<16x128xf32>
    %929 = vector.extract_strided_slice %3 {offsets = [0, 0], sizes = [16, 1], strides = [1, 1]} : vector<16x16xi1> to vector<16x1xi1>
    %930 = vector.extract_strided_slice %926 {offsets = [0, 0], sizes = [1, 128], strides = [1, 1]} : vector<16x128xf32> to vector<1x128xf32>
    %cst_147 = arith.constant -3.400000e+38 : f32
    %931 = vector.shape_cast %929 : vector<16x1xi1> to vector<16x1xi1>
    %932 = vector.broadcast %931 : vector<16x1xi1> to vector<16x128xi1>
    %933 = vector.shape_cast %930 : vector<1x128xf32> to vector<1x128xf32>
    %934 = vector.broadcast %933 : vector<1x128xf32> to vector<16x128xf32>
    %935 = vector.broadcast %cst_147 : f32 to vector<16x128xf32>
    %936 = arith.select %932, %934, %935 : vector<16x128xi1>, vector<16x128xf32>
    %937 = arith.maximumf %928, %936 : vector<16x128xf32>
    %938 = vector.extract_strided_slice %3 {offsets = [0, 1], sizes = [16, 1], strides = [1, 1]} : vector<16x16xi1> to vector<16x1xi1>
    %939 = vector.extract_strided_slice %926 {offsets = [1, 0], sizes = [1, 128], strides = [1, 1]} : vector<16x128xf32> to vector<1x128xf32>
    %cst_148 = arith.constant -3.400000e+38 : f32
    %940 = vector.shape_cast %938 : vector<16x1xi1> to vector<16x1xi1>
    %941 = vector.broadcast %940 : vector<16x1xi1> to vector<16x128xi1>
    %942 = vector.shape_cast %939 : vector<1x128xf32> to vector<1x128xf32>
    %943 = vector.broadcast %942 : vector<1x128xf32> to vector<16x128xf32>
    %944 = vector.broadcast %cst_148 : f32 to vector<16x128xf32>
    %945 = arith.select %941, %943, %944 : vector<16x128xi1>, vector<16x128xf32>
    %946 = arith.maximumf %937, %945 : vector<16x128xf32>
    %947 = vector.extract_strided_slice %3 {offsets = [0, 2], sizes = [16, 1], strides = [1, 1]} : vector<16x16xi1> to vector<16x1xi1>
    %948 = vector.extract_strided_slice %926 {offsets = [2, 0], sizes = [1, 128], strides = [1, 1]} : vector<16x128xf32> to vector<1x128xf32>
    %cst_149 = arith.constant -3.400000e+38 : f32
    %949 = vector.shape_cast %947 : vector<16x1xi1> to vector<16x1xi1>
    %950 = vector.broadcast %949 : vector<16x1xi1> to vector<16x128xi1>
    %951 = vector.shape_cast %948 : vector<1x128xf32> to vector<1x128xf32>
    %952 = vector.broadcast %951 : vector<1x128xf32> to vector<16x128xf32>
    %953 = vector.broadcast %cst_149 : f32 to vector<16x128xf32>
    %954 = arith.select %950, %952, %953 : vector<16x128xi1>, vector<16x128xf32>
    %955 = arith.maximumf %946, %954 : vector<16x128xf32>
    %956 = vector.extract_strided_slice %3 {offsets = [0, 3], sizes = [16, 1], strides = [1, 1]} : vector<16x16xi1> to vector<16x1xi1>
    %957 = vector.extract_strided_slice %926 {offsets = [3, 0], sizes = [1, 128], strides = [1, 1]} : vector<16x128xf32> to vector<1x128xf32>
    %cst_150 = arith.constant -3.400000e+38 : f32
    %958 = vector.shape_cast %956 : vector<16x1xi1> to vector<16x1xi1>
    %959 = vector.broadcast %958 : vector<16x1xi1> to vector<16x128xi1>
    %960 = vector.shape_cast %957 : vector<1x128xf32> to vector<1x128xf32>
    %961 = vector.broadcast %960 : vector<1x128xf32> to vector<16x128xf32>
    %962 = vector.broadcast %cst_150 : f32 to vector<16x128xf32>
    %963 = arith.select %959, %961, %962 : vector<16x128xi1>, vector<16x128xf32>
    %964 = arith.maximumf %955, %963 : vector<16x128xf32>
    %965 = vector.extract_strided_slice %3 {offsets = [0, 4], sizes = [16, 1], strides = [1, 1]} : vector<16x16xi1> to vector<16x1xi1>
    %966 = vector.extract_strided_slice %926 {offsets = [4, 0], sizes = [1, 128], strides = [1, 1]} : vector<16x128xf32> to vector<1x128xf32>
    %cst_151 = arith.constant -3.400000e+38 : f32
    %967 = vector.shape_cast %965 : vector<16x1xi1> to vector<16x1xi1>
    %968 = vector.broadcast %967 : vector<16x1xi1> to vector<16x128xi1>
    %969 = vector.shape_cast %966 : vector<1x128xf32> to vector<1x128xf32>
    %970 = vector.broadcast %969 : vector<1x128xf32> to vector<16x128xf32>
    %971 = vector.broadcast %cst_151 : f32 to vector<16x128xf32>
    %972 = arith.select %968, %970, %971 : vector<16x128xi1>, vector<16x128xf32>
    %973 = arith.maximumf %964, %972 : vector<16x128xf32>
    %974 = vector.extract_strided_slice %3 {offsets = [0, 5], sizes = [16, 1], strides = [1, 1]} : vector<16x16xi1> to vector<16x1xi1>
    %975 = vector.extract_strided_slice %926 {offsets = [5, 0], sizes = [1, 128], strides = [1, 1]} : vector<16x128xf32> to vector<1x128xf32>
    %cst_152 = arith.constant -3.400000e+38 : f32
    %976 = vector.shape_cast %974 : vector<16x1xi1> to vector<16x1xi1>
    %977 = vector.broadcast %976 : vector<16x1xi1> to vector<16x128xi1>
    %978 = vector.shape_cast %975 : vector<1x128xf32> to vector<1x128xf32>
    %979 = vector.broadcast %978 : vector<1x128xf32> to vector<16x128xf32>
    %980 = vector.broadcast %cst_152 : f32 to vector<16x128xf32>
    %981 = arith.select %977, %979, %980 : vector<16x128xi1>, vector<16x128xf32>
    %982 = arith.maximumf %973, %981 : vector<16x128xf32>
    %983 = vector.extract_strided_slice %3 {offsets = [0, 6], sizes = [16, 1], strides = [1, 1]} : vector<16x16xi1> to vector<16x1xi1>
    %984 = vector.extract_strided_slice %926 {offsets = [6, 0], sizes = [1, 128], strides = [1, 1]} : vector<16x128xf32> to vector<1x128xf32>
    %cst_153 = arith.constant -3.400000e+38 : f32
    %985 = vector.shape_cast %983 : vector<16x1xi1> to vector<16x1xi1>
    %986 = vector.broadcast %985 : vector<16x1xi1> to vector<16x128xi1>
    %987 = vector.shape_cast %984 : vector<1x128xf32> to vector<1x128xf32>
    %988 = vector.broadcast %987 : vector<1x128xf32> to vector<16x128xf32>
    %989 = vector.broadcast %cst_153 : f32 to vector<16x128xf32>
    %990 = arith.select %986, %988, %989 : vector<16x128xi1>, vector<16x128xf32>
    %991 = arith.maximumf %982, %990 : vector<16x128xf32>
    %992 = vector.extract_strided_slice %3 {offsets = [0, 7], sizes = [16, 1], strides = [1, 1]} : vector<16x16xi1> to vector<16x1xi1>
    %993 = vector.extract_strided_slice %926 {offsets = [7, 0], sizes = [1, 128], strides = [1, 1]} : vector<16x128xf32> to vector<1x128xf32>
    %cst_154 = arith.constant -3.400000e+38 : f32
    %994 = vector.shape_cast %992 : vector<16x1xi1> to vector<16x1xi1>
    %995 = vector.broadcast %994 : vector<16x1xi1> to vector<16x128xi1>
    %996 = vector.shape_cast %993 : vector<1x128xf32> to vector<1x128xf32>
    %997 = vector.broadcast %996 : vector<1x128xf32> to vector<16x128xf32>
    %998 = vector.broadcast %cst_154 : f32 to vector<16x128xf32>
    %999 = arith.select %995, %997, %998 : vector<16x128xi1>, vector<16x128xf32>
    %1000 = arith.maximumf %991, %999 : vector<16x128xf32>
    %1001 = vector.extract_strided_slice %3 {offsets = [0, 8], sizes = [16, 1], strides = [1, 1]} : vector<16x16xi1> to vector<16x1xi1>
    %1002 = vector.extract_strided_slice %926 {offsets = [8, 0], sizes = [1, 128], strides = [1, 1]} : vector<16x128xf32> to vector<1x128xf32>
    %cst_155 = arith.constant -3.400000e+38 : f32
    %1003 = vector.shape_cast %1001 : vector<16x1xi1> to vector<16x1xi1>
    %1004 = vector.broadcast %1003 : vector<16x1xi1> to vector<16x128xi1>
    %1005 = vector.shape_cast %1002 : vector<1x128xf32> to vector<1x128xf32>
    %1006 = vector.broadcast %1005 : vector<1x128xf32> to vector<16x128xf32>
    %1007 = vector.broadcast %cst_155 : f32 to vector<16x128xf32>
    %1008 = arith.select %1004, %1006, %1007 : vector<16x128xi1>, vector<16x128xf32>
    %1009 = arith.maximumf %1000, %1008 : vector<16x128xf32>
    %1010 = vector.extract_strided_slice %3 {offsets = [0, 9], sizes = [16, 1], strides = [1, 1]} : vector<16x16xi1> to vector<16x1xi1>
    %1011 = vector.extract_strided_slice %926 {offsets = [9, 0], sizes = [1, 128], strides = [1, 1]} : vector<16x128xf32> to vector<1x128xf32>
    %cst_156 = arith.constant -3.400000e+38 : f32
    %1012 = vector.shape_cast %1010 : vector<16x1xi1> to vector<16x1xi1>
    %1013 = vector.broadcast %1012 : vector<16x1xi1> to vector<16x128xi1>
    %1014 = vector.shape_cast %1011 : vector<1x128xf32> to vector<1x128xf32>
    %1015 = vector.broadcast %1014 : vector<1x128xf32> to vector<16x128xf32>
    %1016 = vector.broadcast %cst_156 : f32 to vector<16x128xf32>
    %1017 = arith.select %1013, %1015, %1016 : vector<16x128xi1>, vector<16x128xf32>
    %1018 = arith.maximumf %1009, %1017 : vector<16x128xf32>
    %1019 = vector.extract_strided_slice %3 {offsets = [0, 10], sizes = [16, 1], strides = [1, 1]} : vector<16x16xi1> to vector<16x1xi1>
    %1020 = vector.extract_strided_slice %926 {offsets = [10, 0], sizes = [1, 128], strides = [1, 1]} : vector<16x128xf32> to vector<1x128xf32>
    %cst_157 = arith.constant -3.400000e+38 : f32
    %1021 = vector.shape_cast %1019 : vector<16x1xi1> to vector<16x1xi1>
    %1022 = vector.broadcast %1021 : vector<16x1xi1> to vector<16x128xi1>
    %1023 = vector.shape_cast %1020 : vector<1x128xf32> to vector<1x128xf32>
    %1024 = vector.broadcast %1023 : vector<1x128xf32> to vector<16x128xf32>
    %1025 = vector.broadcast %cst_157 : f32 to vector<16x128xf32>
    %1026 = arith.select %1022, %1024, %1025 : vector<16x128xi1>, vector<16x128xf32>
    %1027 = arith.maximumf %1018, %1026 : vector<16x128xf32>
    %1028 = vector.extract_strided_slice %3 {offsets = [0, 11], sizes = [16, 1], strides = [1, 1]} : vector<16x16xi1> to vector<16x1xi1>
    %1029 = vector.extract_strided_slice %926 {offsets = [11, 0], sizes = [1, 128], strides = [1, 1]} : vector<16x128xf32> to vector<1x128xf32>
    %cst_158 = arith.constant -3.400000e+38 : f32
    %1030 = vector.shape_cast %1028 : vector<16x1xi1> to vector<16x1xi1>
    %1031 = vector.broadcast %1030 : vector<16x1xi1> to vector<16x128xi1>
    %1032 = vector.shape_cast %1029 : vector<1x128xf32> to vector<1x128xf32>
    %1033 = vector.broadcast %1032 : vector<1x128xf32> to vector<16x128xf32>
    %1034 = vector.broadcast %cst_158 : f32 to vector<16x128xf32>
    %1035 = arith.select %1031, %1033, %1034 : vector<16x128xi1>, vector<16x128xf32>
    %1036 = arith.maximumf %1027, %1035 : vector<16x128xf32>
    %1037 = vector.extract_strided_slice %3 {offsets = [0, 12], sizes = [16, 1], strides = [1, 1]} : vector<16x16xi1> to vector<16x1xi1>
    %1038 = vector.extract_strided_slice %926 {offsets = [12, 0], sizes = [1, 128], strides = [1, 1]} : vector<16x128xf32> to vector<1x128xf32>
    %cst_159 = arith.constant -3.400000e+38 : f32
    %1039 = vector.shape_cast %1037 : vector<16x1xi1> to vector<16x1xi1>
    %1040 = vector.broadcast %1039 : vector<16x1xi1> to vector<16x128xi1>
    %1041 = vector.shape_cast %1038 : vector<1x128xf32> to vector<1x128xf32>
    %1042 = vector.broadcast %1041 : vector<1x128xf32> to vector<16x128xf32>
    %1043 = vector.broadcast %cst_159 : f32 to vector<16x128xf32>
    %1044 = arith.select %1040, %1042, %1043 : vector<16x128xi1>, vector<16x128xf32>
    %1045 = arith.maximumf %1036, %1044 : vector<16x128xf32>
    %1046 = vector.extract_strided_slice %3 {offsets = [0, 13], sizes = [16, 1], strides = [1, 1]} : vector<16x16xi1> to vector<16x1xi1>
    %1047 = vector.extract_strided_slice %926 {offsets = [13, 0], sizes = [1, 128], strides = [1, 1]} : vector<16x128xf32> to vector<1x128xf32>
    %cst_160 = arith.constant -3.400000e+38 : f32
    %1048 = vector.shape_cast %1046 : vector<16x1xi1> to vector<16x1xi1>
    %1049 = vector.broadcast %1048 : vector<16x1xi1> to vector<16x128xi1>
    %1050 = vector.shape_cast %1047 : vector<1x128xf32> to vector<1x128xf32>
    %1051 = vector.broadcast %1050 : vector<1x128xf32> to vector<16x128xf32>
    %1052 = vector.broadcast %cst_160 : f32 to vector<16x128xf32>
    %1053 = arith.select %1049, %1051, %1052 : vector<16x128xi1>, vector<16x128xf32>
    %1054 = arith.maximumf %1045, %1053 : vector<16x128xf32>
    %1055 = vector.extract_strided_slice %3 {offsets = [0, 14], sizes = [16, 1], strides = [1, 1]} : vector<16x16xi1> to vector<16x1xi1>
    %1056 = vector.extract_strided_slice %926 {offsets = [14, 0], sizes = [1, 128], strides = [1, 1]} : vector<16x128xf32> to vector<1x128xf32>
    %cst_161 = arith.constant -3.400000e+38 : f32
    %1057 = vector.shape_cast %1055 : vector<16x1xi1> to vector<16x1xi1>
    %1058 = vector.broadcast %1057 : vector<16x1xi1> to vector<16x128xi1>
    %1059 = vector.shape_cast %1056 : vector<1x128xf32> to vector<1x128xf32>
    %1060 = vector.broadcast %1059 : vector<1x128xf32> to vector<16x128xf32>
    %1061 = vector.broadcast %cst_161 : f32 to vector<16x128xf32>
    %1062 = arith.select %1058, %1060, %1061 : vector<16x128xi1>, vector<16x128xf32>
    %1063 = arith.maximumf %1054, %1062 : vector<16x128xf32>
    %1064 = vector.extract_strided_slice %3 {offsets = [0, 15], sizes = [16, 1], strides = [1, 1]} : vector<16x16xi1> to vector<16x1xi1>
    %1065 = vector.extract_strided_slice %926 {offsets = [15, 0], sizes = [1, 128], strides = [1, 1]} : vector<16x128xf32> to vector<1x128xf32>
    %cst_162 = arith.constant -3.400000e+38 : f32
    %1066 = vector.shape_cast %1064 : vector<16x1xi1> to vector<16x1xi1>
    %1067 = vector.broadcast %1066 : vector<16x1xi1> to vector<16x128xi1>
    %1068 = vector.shape_cast %1065 : vector<1x128xf32> to vector<1x128xf32>
    %1069 = vector.broadcast %1068 : vector<1x128xf32> to vector<16x128xf32>
    %1070 = vector.broadcast %cst_162 : f32 to vector<16x128xf32>
    %1071 = arith.select %1067, %1069, %1070 : vector<16x128xi1>, vector<16x128xf32>
    %1072 = arith.maximumf %1063, %1071 : vector<16x128xf32>
    %cst_163 = arith.constant 0.000000e+00 : f32
    %1073 = vector.shape_cast %8 : vector<16x1xi1> to vector<16x1xi1>
    %1074 = vector.broadcast %1073 : vector<16x1xi1> to vector<16x128xi1>
    %1075 = vector.broadcast %cst_163 : f32 to vector<16x128xf32>
    %1076 = arith.select %1074, %1072, %1075 : vector<16x128xi1>, vector<16x128xf32>
    %1077 = tpu.concatenate %1076, %926 in 1 : vector<16x128xf32>, vector<16x128xf32> -> vector<16x256xf32>
    %c5 = arith.constant 5 : index
    %c0_164 = arith.constant 0 : index
    %c0_165 = arith.constant 0 : index
    %1078 = vector.load %arg2[%c5, %c0_164, %c0_165] : memref<6x256x128xf32, #tpu.memory_space<vmem>>, vector<1x256x128xf32>
    %1079 = vector.shape_cast %1078 : vector<1x256x128xf32> to vector<256x128xf32>
    %cst_166 = arith.constant dense<0.000000e+00> : vector<16x128xf32>
    %1080 = tpu.matmul %1077, %1079, %cst_166 {dimension_numbers = #tpu.dot_dimension_numbers<[1], [0], [0], [1], [0, 0, 1, 1], [], []>} : vector<16x256xf32>, vector<256x128xf32>, vector<16x128xf32> -> vector<16x128xf32>
    %c5_167 = arith.constant 5 : index
    %c0_168 = arith.constant 0 : index
    %c0_169 = arith.constant 0 : index
    %1081 = vector.load %arg3[%c5_167, %c0_168, %c0_169] : memref<6x1x128xf32, #tpu.memory_space<vmem>>, vector<1x1x128xf32>
    %1082 = vector.shape_cast %1081 : vector<1x1x128xf32> to vector<1x128xf32>
    %1083 = vector.broadcast %1082 : vector<1x128xf32> to vector<16x128xf32>
    %1084 = arith.addf %1080, %1083 : vector<16x128xf32>
    %c5_170 = arith.constant 5 : index
    %c0_171 = arith.constant 0 : index
    %c0_172 = arith.constant 0 : index
    %1085 = vector.load %arg4[%c5_170, %c0_171, %c0_172] : memref<6x1x128xf32, #tpu.memory_space<vmem>>, vector<1x1x128xf32>
    %1086 = vector.shape_cast %1085 : vector<1x1x128xf32> to vector<1x128xf32>
    %cst_173 = arith.constant 0.000000e+00 : f32
    %1087 = vector.broadcast %cst_173 : f32 to vector<16x128xf32>
    %1088 = arith.cmpf ogt, %1084, %1087 : vector<16x128xf32>
    %1089 = vector.broadcast %1086 : vector<1x128xf32> to vector<16x128xf32>
    %1090 = arith.mulf %1089, %1084 : vector<16x128xf32>
    %1091 = arith.select %1088, %1084, %1090 : vector<16x128xi1>, vector<16x128xf32>
    %1092 = arith.maximumf %927, %1091 : vector<16x128xf32>
    %c0_174 = arith.constant 0 : index
    %c0_175 = arith.constant 0 : index
    %1093 = vector.load %arg5[%c0_174, %c0_175] : memref<128x128xf32, #tpu.memory_space<vmem>>, vector<128x128xf32>
    %cst_176 = arith.constant dense<0.000000e+00> : vector<16x128xf32>
    %1094 = tpu.matmul %1092, %1093, %cst_176 {dimension_numbers = #tpu.dot_dimension_numbers<[1], [0], [0], [1], [0, 0, 1, 1], [], []>} : vector<16x128xf32>, vector<128x128xf32>, vector<16x128xf32> -> vector<16x128xf32>
    %c0_177 = arith.constant 0 : index
    %c0_178 = arith.constant 0 : index
    %1095 = vector.load %arg6[%c0_177, %c0_178] : memref<1x128xf32, #tpu.memory_space<vmem>>, vector<1x128xf32>
    %1096 = vector.broadcast %1095 : vector<1x128xf32> to vector<16x128xf32>
    %1097 = arith.addf %1094, %1096 : vector<16x128xf32>
    %cst_179 = arith.constant 0.000000e+00 : f32
    %1098 = vector.broadcast %cst_179 : f32 to vector<16x128xf32>
    %1099 = arith.cmpf ogt, %1097, %1098 : vector<16x128xf32>
    %c0_180 = arith.constant 0 : index
    %c0_181 = arith.constant 0 : index
    %1100 = vector.load %arg7[%c0_180, %c0_181] : memref<1x128xf32, #tpu.memory_space<vmem>>, vector<1x128xf32>
    %1101 = vector.broadcast %1100 : vector<1x128xf32> to vector<16x128xf32>
    %1102 = arith.mulf %1101, %1097 : vector<16x128xf32>
    %1103 = arith.select %1099, %1097, %1102 : vector<16x128xi1>, vector<16x128xf32>
    %c0_182 = arith.constant 0 : index
    %c0_183 = arith.constant 0 : index
    %1104 = vector.load %arg8[%c0_182, %c0_183] : memref<128x128xf32, #tpu.memory_space<vmem>>, vector<128x128xf32>
    %cst_184 = arith.constant dense<0.000000e+00> : vector<16x128xf32>
    %1105 = tpu.matmul %1103, %1104, %cst_184 {dimension_numbers = #tpu.dot_dimension_numbers<[1], [0], [0], [1], [0, 0, 1, 1], [], []>} : vector<16x128xf32>, vector<128x128xf32>, vector<16x128xf32> -> vector<16x128xf32>
    %c0_185 = arith.constant 0 : index
    %c0_186 = arith.constant 0 : index
    %1106 = vector.load %arg9[%c0_185, %c0_186] : memref<1x128xf32, #tpu.memory_space<vmem>>, vector<1x128xf32>
    %1107 = vector.broadcast %1106 : vector<1x128xf32> to vector<16x128xf32>
    %1108 = arith.addf %1105, %1107 : vector<16x128xf32>
    %c0_187 = arith.constant 0 : index
    %c0_188 = arith.constant 0 : index
    %1109 = vector.load %arg10[%c0_187, %c0_188] : memref<16x128xf32, #tpu.memory_space<vmem>>, vector<16x128xf32>
    tpu.vector_store %arg10[%c0_187, %c0_188], %1108 {strides = array<i32>} : memref<16x128xf32, #tpu.memory_space<vmem>>, vector<16x128xf32>,
    return
  }
}

</mosaic_0001>

<llo_original>
// kernel: config1_forward.1
$region0: #{config1_forward.1}
  #allocation0 [shape = 'u32[]', space=smem, size = 0x4, offset = 0x4, fixed_abs, tag = 'smem constant byte address 0x4 - core index']
  #allocation1 [shape = 'u32[144,128]{1,0:T(1,128)}', space=vmem, size = 0x12000, scoped, tag = 'internal scratch']
  %s0 = inlined_call_operand.vmem [shape: f32[16,128], index: 0, kind: input, shape index: {}]
  %s1 = inlined_call_operand.vmem [shape: f32[16,16], index: 1, kind: input, shape index: {}]
  %s2 = inlined_call_operand.vmem [shape: f32[6,256,128], index: 2, kind: input, shape index: {}]
  %s3 = inlined_call_operand.vmem [shape: f32[6,1,128], index: 3, kind: input, shape index: {}]
  %s4 = inlined_call_operand.vmem [shape: f32[6,1,128], index: 4, kind: input, shape index: {}]
  %s5 = inlined_call_operand.vmem [shape: f32[128,128], index: 5, kind: input, shape index: {}]
  %s6 = inlined_call_operand.vmem [shape: f32[1,128], index: 6, kind: input, shape index: {}]
  %s7 = inlined_call_operand.vmem [shape: f32[1,128], index: 7, kind: input, shape index: {}]
  %s8 = inlined_call_operand.vmem [shape: f32[128,128], index: 8, kind: input, shape index: {}]
  %s9 = inlined_call_operand.vmem [shape: f32[1,128], index: 9, kind: input, shape index: {}]
  %s10 = inlined_call_operand.vmem [shape: f32[16,128], index: 10, kind: output, shape index: {}]
  %s11 = sld [smem:[#allocation0]]
  $region50: #{config1_forward.1} parent=0
    _
  %s13 = ssub.s32 1, %s11
  %s14 = scalar_select 0, %s13, %s11
  // Predicated region
  $region2: #{config1_forward.1} parent=0 // pred_check
    _
  $region3: #{config1_forward.1} parent=0 // pred_check_branch
    %16 = sbr.rel (0) target = $region5
  $region4: #{config1_forward.1} parent=0 // pred_region
    _
  $region5: #{config1_forward.1} parent=0 // pred_fallthru
    _
  // Predicated region
  $region6: #{config1_forward.1} parent=0 // pred_check
    _
  $region7: #{config1_forward.1} parent=0 // pred_check_branch
    %18 = sbr.rel (0) target = $region9
  $region8: #{config1_forward.1} parent=0 // pred_region
    _
  $region9: #{config1_forward.1} parent=0 // pred_fallthru
    _
  // Predicated region
  $region10: #{config1_forward.1} parent=0 // pred_check
    _
  $region11: #{config1_forward.1} parent=0 // pred_check_branch
    %20 = sbr.rel (0) target = $region13
  $region12: #{config1_forward.1} parent=0 // pred_region
    _
  $region13: #{config1_forward.1} parent=0 // pred_fallthru
    _
  // Predicated region
  $region14: #{config1_forward.1} parent=0 // pred_check
    _
  $region15: #{config1_forward.1} parent=0 // pred_check_branch
    %22 = sbr.rel (0) target = $region17
  $region16: #{config1_forward.1} parent=0 // pred_region
    _
  $region17: #{config1_forward.1} parent=0 // pred_fallthru
    _
  // Predicated region
  $region18: #{config1_forward.1} parent=0 // pred_check
    _
  $region19: #{config1_forward.1} parent=0 // pred_check_branch
    %24 = sbr.rel (0) target = $region21
  $region20: #{config1_forward.1} parent=0 // pred_region
    _
  $region21: #{config1_forward.1} parent=0 // pred_fallthru
    _
  // Predicated region
  $region22: #{config1_forward.1} parent=0 // pred_check
    _
  $region23: #{config1_forward.1} parent=0 // pred_check_branch
    %26 = sbr.rel (0) target = $region25
  $region24: #{config1_forward.1} parent=0 // pred_region
    _
  $region25: #{config1_forward.1} parent=0 // pred_fallthru
    _
  // Predicated region
  $region26: #{config1_forward.1} parent=0 // pred_check
    _
  $region27: #{config1_forward.1} parent=0 // pred_check_branch
    %28 = sbr.rel (0) target = $region29
  $region28: #{config1_forward.1} parent=0 // pred_region
    _
  $region29: #{config1_forward.1} parent=0 // pred_fallthru
    _
  // Predicated region
  $region30: #{config1_forward.1} parent=0 // pred_check
    _
  $region31: #{config1_forward.1} parent=0 // pred_check_branch
    %30 = sbr.rel (0) target = $region33
  $region32: #{config1_forward.1} parent=0 // pred_region
    _
  $region33: #{config1_forward.1} parent=0 // pred_fallthru
    _
  // Predicated region
  $region34: #{config1_forward.1} parent=0 // pred_check
    _
  $region35: #{config1_forward.1} parent=0 // pred_check_branch
    %32 = sbr.rel (0) target = $region37
  $region36: #{config1_forward.1} parent=0 // pred_region
    _
  $region37: #{config1_forward.1} parent=0 // pred_fallthru
    _
  // Predicated region
  $region38: #{config1_forward.1} parent=0 // pred_check
    _
  $region39: #{config1_forward.1} parent=0 // pred_check_branch
    %34 = sbr.rel (0) target = $region41
  $region40: #{config1_forward.1} parent=0 // pred_region
    _
  $region41: #{config1_forward.1} parent=0 // pred_fallthru
    _
  %v35 = vld [vmem:[%s0] sm:$0xff]
  %v36 = vld [vmem:[%s0 + $0x8] sm:$0xff]
  %v37 = vld [vmem:[%s1] sm:$0xff]
  %v38 = vld [vmem:[%s1 + $0x8] sm:$0xff]
  %vm39 = vcmp.ne.f32.partialorder %v37, 0.0
  %vm40 = vcmp.ne.f32.partialorder %v38, 0.0
  %v41 = vand.u32 2147483647, %v37
  %v42 = vand.u32 2147483647, %v38
  %vm43 = vcmask 130048
  %v44 = vsel %vm43, %v41, -inf
  %45 = vmax.xlane.f32.xlu0 %v44
  %v46 = vpop.xlane.xlu0 %45
  %v47 = vsel %vm43, %v42, -inf
  %48 = vmax.xlane.f32.xlu0 %v47
  %v49 = vpop.xlane.xlu0 %48
  %vm50 = vcmp.gt.f32.partialorder %v46, 0.0
  %vm51 = vcmp.gt.f32.partialorder %v49, 0.0
  %53 = vset.pattern.permute.xlu0 0
  %54 = vperm.xlu0 %53, %v37
  %v55 = vpop.permute.xlu0 %54
  %58 = vset.pattern.permute.xlu0 0
  %59 = vperm.xlu0 %58, %v38
  %v60 = vpop.permute.xlu0 %59
  %v62 = vlaneseq
  %v63 = vshrl.u32 %v62, 7
  %v64 = vsub.s32 0, %v63
  %v65 = vrot.slane %v35, %v64
  %v66 = vmul.f32 %v55, %v65
  %v67 = vmul.f32 %v60, %v65
  %v68 = vsel %vm39, 1, 0
  %v69 = vsel %vm40, 1, 0
  %70 = vset.pattern.permute.xlu0 0
  %71 = vperm.xlu0 %70, %v68
  %v72 = vpop.permute.xlu0 %71
  %73 = vset.pattern.permute.xlu0 0
  %74 = vperm.xlu0 %73, %v69
  %v75 = vpop.permute.xlu0 %74
  %vm76 = vcmp.eq.s32.totalorder %v72, 1
  %vm77 = vcmp.eq.s32.totalorder %v75, 1
  %v78 = vsel %vm76, %v66, -3.4e+38
  %v79 = vsel %vm77, %v67, -3.4e+38
  %v80 = vmax.f32 %v78, -3.4e+38
  %v81 = vmax.f32 %v79, -3.4e+38
  %82 = vset.pattern.permute.xlu0 1
  %83 = vperm.xlu0 %82, %v37
  %v84 = vpop.permute.xlu0 %83
  %86 = vset.pattern.permute.xlu0 1
  %87 = vperm.xlu0 %86, %v38
  %v88 = vpop.permute.xlu0 %87
  %v90 = vlaneseq
  %v91 = vshrl.u32 %v90, 7
  %v92 = vsub.s32 1, %v91
  %v93 = vrot.slane %v35, %v92
  %v94 = vmul.f32 %v84, %v93
  %v95 = vmul.f32 %v88, %v93
  %96 = vset.pattern.permute.xlu0 1
  %97 = vperm.xlu0 %96, %v68
  %v98 = vpop.permute.xlu0 %97
  %99 = vset.pattern.permute.xlu0 1
  %100 = vperm.xlu0 %99, %v69
  %v101 = vpop.permute.xlu0 %100
  %vm102 = vcmp.eq.s32.totalorder %v98, 1
  %vm103 = vcmp.eq.s32.totalorder %v101, 1
  %v104 = vsel %vm102, %v94, -3.4e+38
  %v105 = vsel %vm103, %v95, -3.4e+38
  %v106 = vmax.f32 %v80, %v104
  %v107 = vmax.f32 %v81, %v105
  %108 = vset.pattern.permute.xlu0 2
  %109 = vperm.xlu0 %108, %v37
  %v110 = vpop.permute.xlu0 %109
  %112 = vset.pattern.permute.xlu0 2
  %113 = vperm.xlu0 %112, %v38
  %v114 = vpop.permute.xlu0 %113
  %v116 = vlaneseq
  %v117 = vshrl.u32 %v116, 7
  %v118 = vsub.s32 2, %v117
  %v119 = vrot.slane %v35, %v118
  %v120 = vmul.f32 %v110, %v119
  %v121 = vmul.f32 %v114, %v119
  %122 = vset.pattern.permute.xlu0 2
  %123 = vperm.xlu0 %122, %v68
  %v124 = vpop.permute.xlu0 %123
  %125 = vset.pattern.permute.xlu0 2
  %126 = vperm.xlu0 %125, %v69
  %v127 = vpop.permute.xlu0 %126
  %vm128 = vcmp.eq.s32.totalorder %v124, 1
  %vm129 = vcmp.eq.s32.totalorder %v127, 1
  %v130 = vsel %vm128, %v120, -3.4e+38
  %v131 = vsel %vm129, %v121, -3.4e+38
  %v132 = vmax.f32 %v106, %v130
  %v133 = vmax.f32 %v107, %v131
  %134 = vset.pattern.permute.xlu0 3
  %135 = vperm.xlu0 %134, %v37
  %v136 = vpop.permute.xlu0 %135
  %138 = vset.pattern.permute.xlu0 3
  %139 = vperm.xlu0 %138, %v38
  %v140 = vpop.permute.xlu0 %139
  %v142 = vlaneseq
  %v143 = vshrl.u32 %v142, 7
  %v144 = vsub.s32 3, %v143
  %v145 = vrot.slane %v35, %v144
  %v146 = vmul.f32 %v136, %v145
  %v147 = vmul.f32 %v140, %v145
  %148 = vset.pattern.permute.xlu0 3
  %149 = vperm.xlu0 %148, %v68
  %v150 = vpop.permute.xlu0 %149
  %151 = vset.pattern.permute.xlu0 3
  %152 = vperm.xlu0 %151, %v69
  %v153 = vpop.permute.xlu0 %152
  %vm154 = vcmp.eq.s32.totalorder %v150, 1
  %vm155 = vcmp.eq.s32.totalorder %v153, 1
  %v156 = vsel %vm154, %v146, -3.4e+38
  %v157 = vsel %vm155, %v147, -3.4e+38
  %v158 = vmax.f32 %v132, %v156
  %v159 = vmax.f32 %v133, %v157
  %160 = vset.pattern.permute.xlu0 4
  %161 = vperm.xlu0 %160, %v37
  %v162 = vpop.permute.xlu0 %161
  %164 = vset.pattern.permute.xlu0 4
  %165 = vperm.xlu0 %164, %v38
  %v166 = vpop.permute.xlu0 %165
  %v168 = vlaneseq
  %v169 = vshrl.u32 %v168, 7
  %v170 = vsub.s32 4, %v169
  %v171 = vrot.slane %v35, %v170
  %v172 = vmul.f32 %v162, %v171
  %v173 = vmul.f32 %v166, %v171
  %174 = vset.pattern.permute.xlu0 4
  %175 = vperm.xlu0 %174, %v68
  %v176 = vpop.permute.xlu0 %175
  %177 = vset.pattern.permute.xlu0 4
  %178 = vperm.xlu0 %177, %v69
  %v179 = vpop.permute.xlu0 %178
  %vm180 = vcmp.eq.s32.totalorder %v176, 1
  %vm181 = vcmp.eq.s32.totalorder %v179, 1
  %v182 = vsel %vm180, %v172, -3.4e+38
  %v183 = vsel %vm181, %v173, -3.4e+38
  %v184 = vmax.f32 %v158, %v182
  %v185 = vmax.f32 %v159, %v183
  %186 = vset.pattern.permute.xlu0 5
  %187 = vperm.xlu0 %186, %v37
  %v188 = vpop.permute.xlu0 %187
  %190 = vset.pattern.permute.xlu0 5
  %191 = vperm.xlu0 %190, %v38
  %v192 = vpop.permute.xlu0 %191
  %v194 = vlaneseq
  %v195 = vshrl.u32 %v194, 7
  %v196 = vsub.s32 5, %v195
  %v197 = vrot.slane %v35, %v196
  %v198 = vmul.f32 %v188, %v197
  %v199 = vmul.f32 %v192, %v197
  %200 = vset.pattern.permute.xlu0 5
  %201 = vperm.xlu0 %200, %v68
  %v202 = vpop.permute.xlu0 %201
  %203 = vset.pattern.permute.xlu0 5
  %204 = vperm.xlu0 %203, %v69
  %v205 = vpop.permute.xlu0 %204
  %vm206 = vcmp.eq.s32.totalorder %v202, 1
  %vm207 = vcmp.eq.s32.totalorder %v205, 1
  %v208 = vsel %vm206, %v198, -3.4e+38
  %v209 = vsel %vm207, %v199, -3.4e+38
  %v210 = vmax.f32 %v184, %v208
  %v211 = vmax.f32 %v185, %v209
  %212 = vset.pattern.permute.xlu0 6
  %213 = vperm.xlu0 %212, %v37
  %v214 = vpop.permute.xlu0 %213
  %216 = vset.pattern.permute.xlu0 6
  %217 = vperm.xlu0 %216, %v38
  %v218 = vpop.permute.xlu0 %217
  %v220 = vlaneseq
  %v221 = vshrl.u32 %v220, 7
  %v222 = vsub.s32 6, %v221
  %v223 = vrot.slane %v35, %v222
  %v224 = vmul.f32 %v214, %v223
  %v225 = vmul.f32 %v218, %v223
  %226 = vset.pattern.permute.xlu0 6
  %227 = vperm.xlu0 %226, %v68
  %v228 = vpop.permute.xlu0 %227
  %229 = vset.pattern.permute.xlu0 6
  %230 = vperm.xlu0 %229, %v69
  %v231 = vpop.permute.xlu0 %230
  %vm232 = vcmp.eq.s32.totalorder %v228, 1
  %vm233 = vcmp.eq.s32.totalorder %v231, 1
  %v234 = vsel %vm232, %v224, -3.4e+38
  %v235 = vsel %vm233, %v225, -3.4e+38
  %v236 = vmax.f32 %v210, %v234
  %v237 = vmax.f32 %v211, %v235
  %238 = vset.pattern.permute.xlu0 7
  %239 = vperm.xlu0 %238, %v37
  %v240 = vpop.permute.xlu0 %239
  %242 = vset.pattern.permute.xlu0 7
  %243 = vperm.xlu0 %242, %v38
  %v244 = vpop.permute.xlu0 %243
  %v246 = vlaneseq
  %v247 = vshrl.u32 %v246, 7
  %v248 = vsub.s32 7, %v247
  %v249 = vrot.slane %v35, %v248
  %v250 = vmul.f32 %v240, %v249
  %v251 = vmul.f32 %v244, %v249
  %252 = vset.pattern.permute.xlu0 7
  %253 = vperm.xlu0 %252, %v68
  %v254 = vpop.permute.xlu0 %253
  %255 = vset.pattern.permute.xlu0 7
  %256 = vperm.xlu0 %255, %v69
  %v257 = vpop.permute.xlu0 %256
  %vm258 = vcmp.eq.s32.totalorder %v254, 1
  %vm259 = vcmp.eq.s32.totalorder %v257, 1
  %v260 = vsel %vm258, %v250, -3.4e+38
  %v261 = vsel %vm259, %v251, -3.4e+38
  %v262 = vmax.f32 %v236, %v260
  %v263 = vmax.f32 %v237, %v261
  %264 = vset.pattern.permute.xlu0 8
  %265 = vperm.xlu0 %264, %v37
  %v266 = vpop.permute.xlu0 %265
  %268 = vset.pattern.permute.xlu0 8
  %269 = vperm.xlu0 %268, %v38
  %v270 = vpop.permute.xlu0 %269
  %v272 = vlaneseq
  %v273 = vshrl.u32 %v272, 7
  %v274 = vsub.s32 0, %v273
  %v275 = vrot.slane %v36, %v274
  %v276 = vmul.f32 %v266, %v275
  %v277 = vmul.f32 %v270, %v275
  %278 = vset.pattern.permute.xlu0 8
  %279 = vperm.xlu0 %278, %v68
  %v280 = vpop.permute.xlu0 %279
  %281 = vset.pattern.permute.xlu0 8
  %282 = vperm.xlu0 %281, %v69
  %v283 = vpop.permute.xlu0 %282
  %vm284 = vcmp.eq.s32.totalorder %v280, 1
  %vm285 = vcmp.eq.s32.totalorder %v283, 1
  %v286 = vsel %vm284, %v276, -3.4e+38
  %v287 = vsel %vm285, %v277, -3.4e+38
  %v288 = vmax.f32 %v262, %v286
  %v289 = vmax.f32 %v263, %v287
  %290 = vset.pattern.permute.xlu0 9
  %291 = vperm.xlu0 %290, %v37
  %v292 = vpop.permute.xlu0 %291
  %294 = vset.pattern.permute.xlu0 9
  %295 = vperm.xlu0 %294, %v38
  %v296 = vpop.permute.xlu0 %295
  %v298 = vlaneseq
  %v299 = vshrl.u32 %v298, 7
  %v300 = vsub.s32 1, %v299
  %v301 = vrot.slane %v36, %v300
  %v302 = vmul.f32 %v292, %v301
  %v303 = vmul.f32 %v296, %v301
  %304 = vset.pattern.permute.xlu0 9
  %305 = vperm.xlu0 %304, %v68
  %v306 = vpop.permute.xlu0 %305
  %307 = vset.pattern.permute.xlu0 9
  %308 = vperm.xlu0 %307, %v69
  %v309 = vpop.permute.xlu0 %308
  %vm310 = vcmp.eq.s32.totalorder %v306, 1
  %vm311 = vcmp.eq.s32.totalorder %v309, 1
  %v312 = vsel %vm310, %v302, -3.4e+38
  %v313 = vsel %vm311, %v303, -3.4e+38
  %v314 = vmax.f32 %v288, %v312
  %v315 = vmax.f32 %v289, %v313
  %316 = vset.pattern.permute.xlu0 10
  %317 = vperm.xlu0 %316, %v37
  %v318 = vpop.permute.xlu0 %317
  %320 = vset.pattern.permute.xlu0 10
  %321 = vperm.xlu0 %320, %v38
  %v322 = vpop.permute.xlu0 %321
  %v324 = vlaneseq
  %v325 = vshrl.u32 %v324, 7
  %v326 = vsub.s32 2, %v325
  %v327 = vrot.slane %v36, %v326
  %v328 = vmul.f32 %v318, %v327
  %v329 = vmul.f32 %v322, %v327
  %330 = vset.pattern.permute.xlu0 10
  %331 = vperm.xlu0 %330, %v68
  %v332 = vpop.permute.xlu0 %331
  %333 = vset.pattern.permute.xlu0 10
  %334 = vperm.xlu0 %333, %v69
  %v335 = vpop.permute.xlu0 %334
  %vm336 = vcmp.eq.s32.totalorder %v332, 1
  %vm337 = vcmp.eq.s32.totalorder %v335, 1
  %v338 = vsel %vm336, %v328, -3.4e+38
  %v339 = vsel %vm337, %v329, -3.4e+38
  %v340 = vmax.f32 %v314, %v338
  %v341 = vmax.f32 %v315, %v339
  %342 = vset.pattern.permute.xlu0 11
  %343 = vperm.xlu0 %342, %v37
  %v344 = vpop.permute.xlu0 %343
  %346 = vset.pattern.permute.xlu0 11
  %347 = vperm.xlu0 %346, %v38
  %v348 = vpop.permute.xlu0 %347
  %v350 = vlaneseq
  %v351 = vshrl.u32 %v350, 7
  %v352 = vsub.s32 3, %v351
  %v353 = vrot.slane %v36, %v352
  %v354 = vmul.f32 %v344, %v353
  %v355 = vmul.f32 %v348, %v353
  %356 = vset.pattern.permute.xlu0 11
  %357 = vperm.xlu0 %356, %v68
  %v358 = vpop.permute.xlu0 %357
  %359 = vset.pattern.permute.xlu0 11
  %360 = vperm.xlu0 %359, %v69
  %v361 = vpop.permute.xlu0 %360
  %vm362 = vcmp.eq.s32.totalorder %v358, 1
  %vm363 = vcmp.eq.s32.totalorder %v361, 1
  %v364 = vsel %vm362, %v354, -3.4e+38
  %v365 = vsel %vm363, %v355, -3.4e+38
  %v366 = vmax.f32 %v340, %v364
  %v367 = vmax.f32 %v341, %v365
  %368 = vset.pattern.permute.xlu0 12
  %369 = vperm.xlu0 %368, %v37
  %v370 = vpop.permute.xlu0 %369
  %372 = vset.pattern.permute.xlu0 12
  %373 = vperm.xlu0 %372, %v38
  %v374 = vpop.permute.xlu0 %373
  %v376 = vlaneseq
  %v377 = vshrl.u32 %v376, 7
  %v378 = vsub.s32 4, %v377
  %v379 = vrot.slane %v36, %v378
  %v380 = vmul.f32 %v370, %v379
  %v381 = vmul.f32 %v374, %v379
  %382 = vset.pattern.permute.xlu0 12
  %383 = vperm.xlu0 %382, %v68
  %v384 = vpop.permute.xlu0 %383
  %385 = vset.pattern.permute.xlu0 12
  %386 = vperm.xlu0 %385, %v69
  %v387 = vpop.permute.xlu0 %386
  %vm388 = vcmp.eq.s32.totalorder %v384, 1
  %vm389 = vcmp.eq.s32.totalorder %v387, 1
  %v390 = vsel %vm388, %v380, -3.4e+38
  %v391 = vsel %vm389, %v381, -3.4e+38
  %v392 = vmax.f32 %v366, %v390
  %v393 = vmax.f32 %v367, %v391
  %394 = vset.pattern.permute.xlu0 13
  %395 = vperm.xlu0 %394, %v37
  %v396 = vpop.permute.xlu0 %395
  %398 = vset.pattern.permute.xlu0 13
  %399 = vperm.xlu0 %398, %v38
  %v400 = vpop.permute.xlu0 %399
  %v402 = vlaneseq
  %v403 = vshrl.u32 %v402, 7
  %v404 = vsub.s32 5, %v403
  %v405 = vrot.slane %v36, %v404
  %v406 = vmul.f32 %v396, %v405
  %v407 = vmul.f32 %v400, %v405
  %408 = vset.pattern.permute.xlu0 13
  %409 = vperm.xlu0 %408, %v68
  %v410 = vpop.permute.xlu0 %409
  %411 = vset.pattern.permute.xlu0 13
  %412 = vperm.xlu0 %411, %v69
  %v413 = vpop.permute.xlu0 %412
  %vm414 = vcmp.eq.s32.totalorder %v410, 1
  %vm415 = vcmp.eq.s32.totalorder %v413, 1
  %v416 = vsel %vm414, %v406, -3.4e+38
  %v417 = vsel %vm415, %v407, -3.4e+38
  %v418 = vmax.f32 %v392, %v416
  %v419 = vmax.f32 %v393, %v417
  %420 = vset.pattern.permute.xlu0 14
  %421 = vperm.xlu0 %420, %v37
  %v422 = vpop.permute.xlu0 %421
  %424 = vset.pattern.permute.xlu0 14
  %425 = vperm.xlu0 %424, %v38
  %v426 = vpop.permute.xlu0 %425
  %v428 = vlaneseq
  %v429 = vshrl.u32 %v428, 7
  %v430 = vsub.s32 6, %v429
  %v431 = vrot.slane %v36, %v430
  %v432 = vmul.f32 %v422, %v431
  %v433 = vmul.f32 %v426, %v431
  %434 = vset.pattern.permute.xlu0 14
  %435 = vperm.xlu0 %434, %v68
  %v436 = vpop.permute.xlu0 %435
  %437 = vset.pattern.permute.xlu0 14
  %438 = vperm.xlu0 %437, %v69
  %v439 = vpop.permute.xlu0 %438
  %vm440 = vcmp.eq.s32.totalorder %v436, 1
  %vm441 = vcmp.eq.s32.totalorder %v439, 1
  %v442 = vsel %vm440, %v432, -3.4e+38
  %v443 = vsel %vm441, %v433, -3.4e+38
  %v444 = vmax.f32 %v418, %v442
  %v445 = vmax.f32 %v419, %v443
  %446 = vset.pattern.permute.xlu0 15
  %447 = vperm.xlu0 %446, %v37
  %v448 = vpop.permute.xlu0 %447
  %450 = vset.pattern.permute.xlu0 15
  %451 = vperm.xlu0 %450, %v38
  %v452 = vpop.permute.xlu0 %451
  %v454 = vlaneseq
  %v455 = vshrl.u32 %v454, 7
  %v456 = vsub.s32 7, %v455
  %v457 = vrot.slane %v36, %v456
  %v458 = vmul.f32 %v448, %v457
  %v459 = vmul.f32 %v452, %v457
  %460 = vset.pattern.permute.xlu0 15
  %461 = vperm.xlu0 %460, %v68
  %v462 = vpop.permute.xlu0 %461
  %463 = vset.pattern.permute.xlu0 15
  %464 = vperm.xlu0 %463, %v69
  %v465 = vpop.permute.xlu0 %464
  %vm466 = vcmp.eq.s32.totalorder %v462, 1
  %vm467 = vcmp.eq.s32.totalorder %v465, 1
  %v468 = vsel %vm466, %v458, -3.4e+38
  %v469 = vsel %vm467, %v459, -3.4e+38
  %v470 = vmax.f32 %v444, %v468
  %v471 = vmax.f32 %v445, %v469
  %v472 = vsel %vm50, 1, 0
  %v473 = vsel %vm51, 1, 0
  %vm474 = vcmp.eq.s32.totalorder %v472, 1
  %vm475 = vcmp.eq.s32.totalorder %v473, 1
  %v476 = vsel %vm474, %v470, 0.0
  %v477 = vsel %vm475, %v471, 0.0
  %v478 = vld [vmem:[%s2] sm:$0xff]
  %v479 = vld [vmem:[%s2 + $0x8] sm:$0xff]
  %v480 = vld [vmem:[%s2 + $0x10] sm:$0xff]
  %v481 = vld [vmem:[%s2 + $0x18] sm:$0xff]
  %v482 = vld [vmem:[%s2 + $0x20] sm:$0xff]
  %v483 = vld [vmem:[%s2 + $0x28] sm:$0xff]
  %v484 = vld [vmem:[%s2 + $0x30] sm:$0xff]
  %v485 = vld [vmem:[%s2 + $0x38] sm:$0xff]
  %v486 = vld [vmem:[%s2 + $0x40] sm:$0xff]
  %v487 = vld [vmem:[%s2 + $0x48] sm:$0xff]
  %v488 = vld [vmem:[%s2 + $0x50] sm:$0xff]
  %v489 = vld [vmem:[%s2 + $0x58] sm:$0xff]
  %v490 = vld [vmem:[%s2 + $0x60] sm:$0xff]
  %v491 = vld [vmem:[%s2 + $0x68] sm:$0xff]
  %v492 = vld [vmem:[%s2 + $0x70] sm:$0xff]
  %v493 = vld [vmem:[%s2 + $0x78] sm:$0xff]
  %v494 = vld [vmem:[%s2 + $0x80] sm:$0xff]
  %v495 = vld [vmem:[%s2 + $0x88] sm:$0xff]
  %v496 = vld [vmem:[%s2 + $0x90] sm:$0xff]
  %v497 = vld [vmem:[%s2 + $0x98] sm:$0xff]
  %v498 = vld [vmem:[%s2 + $0xa0] sm:$0xff]
  %v499 = vld [vmem:[%s2 + $0xa8] sm:$0xff]
  %v500 = vld [vmem:[%s2 + $0xb0] sm:$0xff]
  %v501 = vld [vmem:[%s2 + $0xb8] sm:$0xff]
  %v502 = vld [vmem:[%s2 + $0xc0] sm:$0xff]
  %v503 = vld [vmem:[%s2 + $0xc8] sm:$0xff]
  %v504 = vld [vmem:[%s2 + $0xd0] sm:$0xff]
  %v505 = vld [vmem:[%s2 + $0xd8] sm:$0xff]
  %v506 = vld [vmem:[%s2 + $0xe0] sm:$0xff]
  %v507 = vld [vmem:[%s2 + $0xe8] sm:$0xff]
  %v508 = vld [vmem:[%s2 + $0xf0] sm:$0xff]
  %v509 = vld [vmem:[%s2 + $0xf8] sm:$0xff]
  %v510 = vld [vmem:[%s3] sm:$0x1]
  %v512 = vlaneseq
  %v513 = vshrl.u32 %v512, 7
  %v514 = vsub.s32 0, %v513
  %v515 = vrot.slane %v510, %v514
  %517 = vmatprep.subr.mxu0 0.0
  %518 = vmatpush1.msra.mxu0 %v478
  %519 = vmatprep.subr.mxu0 0.0
  %520 = vmatpush1.msra.mxu0 %v479
  %521 = vmatprep.subr.mxu0 0.0
  %522 = vmatpush1.msra.mxu0 %v480
  %523 = vmatprep.subr.mxu0 0.0
  %524 = vmatpush1.msra.mxu0 %v481
  %525 = vmatprep.subr.mxu0 0.0
  %526 = vmatpush1.msra.mxu0 %v482
  %527 = vmatprep.subr.mxu0 0.0
  %528 = vmatpush1.msra.mxu0 %v483
  %529 = vmatprep.subr.mxu0 0.0
  %530 = vmatpush1.msra.mxu0 %v484
  %531 = vmatprep.subr.mxu0 0.0
  %532 = vmatpush1.msra.mxu0 %v485
  %533 = vmatprep.subr.mxu0 0.0
  %534 = vmatpush1.msra.mxu0 %v486
  %535 = vmatprep.subr.mxu0 0.0
  %536 = vmatpush1.msra.mxu0 %v487
  %537 = vmatprep.subr.mxu0 0.0
  %538 = vmatpush1.msra.mxu0 %v488
  %539 = vmatprep.subr.mxu0 0.0
  %540 = vmatpush1.msra.mxu0 %v489
  %541 = vmatprep.subr.mxu0 0.0
  %542 = vmatpush1.msra.mxu0 %v490
  %543 = vmatprep.subr.mxu0 0.0
  %544 = vmatpush1.msra.mxu0 %v491
  %545 = vmatprep.subr.mxu0 0.0
  %546 = vmatpush1.msra.mxu0 %v492
  %547 = vmatprep.subr.mxu0 0.0
  %548 = vmatpush1.msra.mxu0 %v493
  %549 = vmatprep.subr.mxu0 0.0
  %550 = vmatpush1.msra.mxu0 %v494
  %551 = vmatprep.subr.mxu0 0.0
  %552 = vmatpush1.msra.mxu0 %v495
  %553 = vmatprep.subr.mxu0 0.0
  %554 = vmatpush1.msra.mxu0 %v496
  %555 = vmatprep.subr.mxu0 0.0
  %556 = vmatpush1.msra.mxu0 %v497
  %557 = vmatprep.subr.mxu0 0.0
  %558 = vmatpush1.msra.mxu0 %v498
  %559 = vmatprep.subr.mxu0 0.0
  %560 = vmatpush1.msra.mxu0 %v499
  %561 = vmatprep.subr.mxu0 0.0
  %562 = vmatpush1.msra.mxu0 %v500
  %563 = vmatprep.subr.mxu0 0.0
  %564 = vmatpush1.msra.mxu0 %v501
  %565 = vmatprep.subr.mxu0 0.0
  %566 = vmatpush1.msra.mxu0 %v502
  %567 = vmatprep.subr.mxu0 0.0
  %568 = vmatpush1.msra.mxu0 %v503
  %569 = vmatprep.subr.mxu0 0.0
  %570 = vmatpush1.msra.mxu0 %v504
  %571 = vmatprep.subr.mxu0 0.0
  %572 = vmatpush1.msra.mxu0 %v505
  %573 = vmatprep.subr.mxu0 0.0
  %574 = vmatpush1.msra.mxu0 %v506
  %575 = vmatprep.subr.mxu0 0.0
  %576 = vmatpush1.msra.mxu0 %v507
  %577 = vmatprep.subr.mxu0 0.0
  %578 = vmatpush1.msra.mxu0 %v508
  %579 = vmatprep.subr.mxu0 0.0
  %580 = vmatpush1.msra.mxu0 %v509
  %581 = vmatprep.mubr.f32.mxu0 %v35
  %582 = vmatmul.mubr.f32.gmra.mrb[0].mxu0 %v476
  %v583 = vpop.f32.mrb[0].mxu0
  %v584 = vadd.f32 %v515, %v583
  %v585 = vpop.f32.mrb[0].mxu0
  %586 = vmatprep.mubr.f32.mxu0 %v36
  %587 = vmatmul.mubr.f32.gmra.mrb[0].mxu0 %v477
  %v588 = vpop.f32.mrb[0].mxu0
  %v589 = vadd.f32 %v515, %v588
  %v590 = vpop.f32.mrb[0].mxu0
  %591 = vdwg.mxu0
  %v592 = vld [vmem:[%s4] sm:$0x1]
  %vm593 = vcmp.gt.f32.partialorder %v584, 0.0
  %vm594 = vcmp.gt.f32.partialorder %v589, 0.0
  %v596 = vlaneseq
  %v597 = vshrl.u32 %v596, 7
  %v598 = vsub.s32 0, %v597
  %v599 = vrot.slane %v592, %v598
  %v601 = vmul.f32 %v599, %v584
  %v602 = vmul.f32 %v599, %v589
  %v603 = vsel %vm593, %v584, %v601
  %v604 = vsel %vm594, %v589, %v602
  %v605 = vlaneseq
  %v606 = vshrl.u32 %v605, 7
  %v607 = vsub.s32 0, %v606
  %v608 = vrot.slane %v603, %v607
  %v609 = vmul.f32 %v55, %v608
  %v610 = vmul.f32 %v60, %v608
  %v611 = vsel %vm76, %v609, -3.4e+38
  %v612 = vsel %vm77, %v610, -3.4e+38
  %v613 = vmax.f32 %v611, -3.4e+38
  %v614 = vmax.f32 %v612, -3.4e+38
  %v615 = vlaneseq
  %v616 = vshrl.u32 %v615, 7
  %v617 = vsub.s32 1, %v616
  %v618 = vrot.slane %v603, %v617
  %v619 = vmul.f32 %v84, %v618
  %v620 = vmul.f32 %v88, %v618
  %v621 = vsel %vm102, %v619, -3.4e+38
  %v622 = vsel %vm103, %v620, -3.4e+38
  %v623 = vmax.f32 %v613, %v621
  %v624 = vmax.f32 %v614, %v622
  %v625 = vlaneseq
  %v626 = vshrl.u32 %v625, 7
  %v627 = vsub.s32 2, %v626
  %v628 = vrot.slane %v603, %v627
  %v629 = vmul.f32 %v110, %v628
  %v630 = vmul.f32 %v114, %v628
  %v631 = vsel %vm128, %v629, -3.4e+38
  %v632 = vsel %vm129, %v630, -3.4e+38
  %v633 = vmax.f32 %v623, %v631
  %v634 = vmax.f32 %v624, %v632
  %v635 = vlaneseq
  %v636 = vshrl.u32 %v635, 7
  %v637 = vsub.s32 3, %v636
  %v638 = vrot.slane %v603, %v637
  %v639 = vmul.f32 %v136, %v638
  %v640 = vmul.f32 %v140, %v638
  %v641 = vsel %vm154, %v639, -3.4e+38
  %v642 = vsel %vm155, %v640, -3.4e+38
  %v643 = vmax.f32 %v633, %v641
  %v644 = vmax.f32 %v634, %v642
  %v645 = vlaneseq
  %v646 = vshrl.u32 %v645, 7
  %v647 = vsub.s32 4, %v646
  %v648 = vrot.slane %v603, %v647
  %v649 = vmul.f32 %v162, %v648
  %v650 = vmul.f32 %v166, %v648
  %v651 = vsel %vm180, %v649, -3.4e+38
  %v652 = vsel %vm181, %v650, -3.4e+38
  %v653 = vmax.f32 %v643, %v651
  %v654 = vmax.f32 %v644, %v652
  %v655 = vlaneseq
  %v656 = vshrl.u32 %v655, 7
  %v657 = vsub.s32 5, %v656
  %v658 = vrot.slane %v603, %v657
  %v659 = vmul.f32 %v188, %v658
  %v660 = vmul.f32 %v192, %v658
  %v661 = vsel %vm206, %v659, -3.4e+38
  %v662 = vsel %vm207, %v660, -3.4e+38
  %v663 = vmax.f32 %v653, %v661
  %v664 = vmax.f32 %v654, %v662
  %v665 = vlaneseq
  %v666 = vshrl.u32 %v665, 7
  %v667 = vsub.s32 6, %v666
  %v668 = vrot.slane %v603, %v667
  %v669 = vmul.f32 %v214, %v668
  %v670 = vmul.f32 %v218, %v668
  %v671 = vsel %vm232, %v669, -3.4e+38
  %v672 = vsel %vm233, %v670, -3.4e+38
  %v673 = vmax.f32 %v663, %v671
  %v674 = vmax.f32 %v664, %v672
  %v675 = vlaneseq
  %v676 = vshrl.u32 %v675, 7
  %v677 = vsub.s32 7, %v676
  %v678 = vrot.slane %v603, %v677
  %v679 = vmul.f32 %v240, %v678
  %v680 = vmul.f32 %v244, %v678
  %v681 = vsel %vm258, %v679, -3.4e+38
  %v682 = vsel %vm259, %v680, -3.4e+38
  %v683 = vmax.f32 %v673, %v681
  %v684 = vmax.f32 %v674, %v682
  %v685 = vlaneseq
  %v686 = vshrl.u32 %v685, 7
  %v687 = vsub.s32 0, %v686
  %v688 = vrot.slane %v604, %v687
  %v689 = vmul.f32 %v266, %v688
  %v690 = vmul.f32 %v270, %v688
  %v691 = vsel %vm284, %v689, -3.4e+38
  %v692 = vsel %vm285, %v690, -3.4e+38
  %v693 = vmax.f32 %v683, %v691
  %v694 = vmax.f32 %v684, %v692
  %v695 = vlaneseq
  %v696 = vshrl.u32 %v695, 7
  %v697 = vsub.s32 1, %v696
  %v698 = vrot.slane %v604, %v697
  %v699 = vmul.f32 %v292, %v698
  %v700 = vmul.f32 %v296, %v698
  %v701 = vsel %vm310, %v699, -3.4e+38
  %v702 = vsel %vm311, %v700, -3.4e+38
  %v703 = vmax.f32 %v693, %v701
  %v704 = vmax.f32 %v694, %v702
  %v705 = vlaneseq
  %v706 = vshrl.u32 %v705, 7
  %v707 = vsub.s32 2, %v706
  %v708 = vrot.slane %v604, %v707
  %v709 = vmul.f32 %v318, %v708
  %v710 = vmul.f32 %v322, %v708
  %v711 = vsel %vm336, %v709, -3.4e+38
  %v712 = vsel %vm337, %v710, -3.4e+38
  %v713 = vmax.f32 %v703, %v711
  %v714 = vmax.f32 %v704, %v712
  %v715 = vlaneseq
  %v716 = vshrl.u32 %v715, 7
  %v717 = vsub.s32 3, %v716
  %v718 = vrot.slane %v604, %v717
  %v719 = vmul.f32 %v344, %v718
  %v720 = vmul.f32 %v348, %v718
  %v721 = vsel %vm362, %v719, -3.4e+38
  %v722 = vsel %vm363, %v720, -3.4e+38
  %v723 = vmax.f32 %v713, %v721
  %v724 = vmax.f32 %v714, %v722
  %v725 = vlaneseq
  %v726 = vshrl.u32 %v725, 7
  %v727 = vsub.s32 4, %v726
  %v728 = vrot.slane %v604, %v727
  %v729 = vmul.f32 %v370, %v728
  %v730 = vmul.f32 %v374, %v728
  %v731 = vsel %vm388, %v729, -3.4e+38
  %v732 = vsel %vm389, %v730, -3.4e+38
  %v733 = vmax.f32 %v723, %v731
  %v734 = vmax.f32 %v724, %v732
  %v735 = vlaneseq
  %v736 = vshrl.u32 %v735, 7
  %v737 = vsub.s32 5, %v736
  %v738 = vrot.slane %v604, %v737
  %v739 = vmul.f32 %v396, %v738
  %v740 = vmul.f32 %v400, %v738
  %v741 = vsel %vm414, %v739, -3.4e+38
  %v742 = vsel %vm415, %v740, -3.4e+38
  %v743 = vmax.f32 %v733, %v741
  %v744 = vmax.f32 %v734, %v742
  %v745 = vlaneseq
  %v746 = vshrl.u32 %v745, 7
  %v747 = vsub.s32 6, %v746
  %v748 = vrot.slane %v604, %v747
  %v749 = vmul.f32 %v422, %v748
  %v750 = vmul.f32 %v426, %v748
  %v751 = vsel %vm440, %v749, -3.4e+38
  %v752 = vsel %vm441, %v750, -3.4e+38
  %v753 = vmax.f32 %v743, %v751
  %v754 = vmax.f32 %v744, %v752
  %v755 = vlaneseq
  %v756 = vshrl.u32 %v755, 7
  %v757 = vsub.s32 7, %v756
  %v758 = vrot.slane %v604, %v757
  %v759 = vmul.f32 %v448, %v758
  %v760 = vmul.f32 %v452, %v758
  %v761 = vsel %vm466, %v759, -3.4e+38
  %v762 = vsel %vm467, %v760, -3.4e+38
  %v763 = vmax.f32 %v753, %v761
  %v764 = vmax.f32 %v754, %v762
  %v765 = vsel %vm474, %v763, 0.0
  %v766 = vsel %vm475, %v764, 0.0
  %s767 = scalar_lea.vmem %s2, 256
  %v768 = vld [vmem:[%s767] sm:$0xff]
  %v769 = vld [vmem:[%s767 + $0x8] sm:$0xff]
  %v770 = vld [vmem:[%s767 + $0x10] sm:$0xff]
  %v771 = vld [vmem:[%s767 + $0x18] sm:$0xff]
  %v772 = vld [vmem:[%s767 + $0x20] sm:$0xff]
  %v773 = vld [vmem:[%s767 + $0x28] sm:$0xff]
  %v774 = vld [vmem:[%s767 + $0x30] sm:$0xff]
  %v775 = vld [vmem:[%s767 + $0x38] sm:$0xff]
  %v776 = vld [vmem:[%s767 + $0x40] sm:$0xff]
  %v777 = vld [vmem:[%s767 + $0x48] sm:$0xff]
  %v778 = vld [vmem:[%s767 + $0x50] sm:$0xff]
  %v779 = vld [vmem:[%s767 + $0x58] sm:$0xff]
  %v780 = vld [vmem:[%s767 + $0x60] sm:$0xff]
  %v781 = vld [vmem:[%s767 + $0x68] sm:$0xff]
  %v782 = vld [vmem:[%s767 + $0x70] sm:$0xff]
  %v783 = vld [vmem:[%s767 + $0x78] sm:$0xff]
  %v784 = vld [vmem:[%s767 + $0x80] sm:$0xff]
  %v785 = vld [vmem:[%s767 + $0x88] sm:$0xff]
  %v786 = vld [vmem:[%s767 + $0x90] sm:$0xff]
  %v787 = vld [vmem:[%s767 + $0x98] sm:$0xff]
  %v788 = vld [vmem:[%s767 + $0xa0] sm:$0xff]
  %v789 = vld [vmem:[%s767 + $0xa8] sm:$0xff]
  %v790 = vld [vmem:[%s767 + $0xb0] sm:$0xff]
  %v791 = vld [vmem:[%s767 + $0xb8] sm:$0xff]
  %v792 = vld [vmem:[%s767 + $0xc0] sm:$0xff]
  %v793 = vld [vmem:[%s767 + $0xc8] sm:$0xff]
  %v794 = vld [vmem:[%s767 + $0xd0] sm:$0xff]
  %v795 = vld [vmem:[%s767 + $0xd8] sm:$0xff]
  %v796 = vld [vmem:[%s767 + $0xe0] sm:$0xff]
  %v797 = vld [vmem:[%s767 + $0xe8] sm:$0xff]
  %v798 = vld [vmem:[%s767 + $0xf0] sm:$0xff]
  %v799 = vld [vmem:[%s767 + $0xf8] sm:$0xff]
  %s800 = scalar_lea.vmem %s3, 1
  %v801 = vld [vmem:[%s800] sm:$0x1]
  %v803 = vlaneseq
  %v804 = vshrl.u32 %v803, 7
  %v805 = vsub.s32 0, %v804
  %v806 = vrot.slane %v801, %v805
  %808 = vmatprep.subr.mxu0 0.0
  %809 = vmatpush1.msra.mxu0 %v768
  %810 = vmatprep.subr.mxu0 0.0
  %811 = vmatpush1.msra.mxu0 %v769
  %812 = vmatprep.subr.mxu0 0.0
  %813 = vmatpush1.msra.mxu0 %v770
  %814 = vmatprep.subr.mxu0 0.0
  %815 = vmatpush1.msra.mxu0 %v771
  %816 = vmatprep.subr.mxu0 0.0
  %817 = vmatpush1.msra.mxu0 %v772
  %818 = vmatprep.subr.mxu0 0.0
  %819 = vmatpush1.msra.mxu0 %v773
  %820 = vmatprep.subr.mxu0 0.0
  %821 = vmatpush1.msra.mxu0 %v774
  %822 = vmatprep.subr.mxu0 0.0
  %823 = vmatpush1.msra.mxu0 %v775
  %824 = vmatprep.subr.mxu0 0.0
  %825 = vmatpush1.msra.mxu0 %v776
  %826 = vmatprep.subr.mxu0 0.0
  %827 = vmatpush1.msra.mxu0 %v777
  %828 = vmatprep.subr.mxu0 0.0
  %829 = vmatpush1.msra.mxu0 %v778
  %830 = vmatprep.subr.mxu0 0.0
  %831 = vmatpush1.msra.mxu0 %v779
  %832 = vmatprep.subr.mxu0 0.0
  %833 = vmatpush1.msra.mxu0 %v780
  %834 = vmatprep.subr.mxu0 0.0
  %835 = vmatpush1.msra.mxu0 %v781
  %836 = vmatprep.subr.mxu0 0.0
  %837 = vmatpush1.msra.mxu0 %v782
  %838 = vmatprep.subr.mxu0 0.0
  %839 = vmatpush1.msra.mxu0 %v783
  %840 = vmatprep.subr.mxu0 0.0
  %841 = vmatpush1.msra.mxu0 %v784
  %842 = vmatprep.subr.mxu0 0.0
  %843 = vmatpush1.msra.mxu0 %v785
  %844 = vmatprep.subr.mxu0 0.0
  %845 = vmatpush1.msra.mxu0 %v786
  %846 = vmatprep.subr.mxu0 0.0
  %847 = vmatpush1.msra.mxu0 %v787
  %848 = vmatprep.subr.mxu0 0.0
  %849 = vmatpush1.msra.mxu0 %v788
  %850 = vmatprep.subr.mxu0 0.0
  %851 = vmatpush1.msra.mxu0 %v789
  %852 = vmatprep.subr.mxu0 0.0
  %853 = vmatpush1.msra.mxu0 %v790
  %854 = vmatprep.subr.mxu0 0.0
  %855 = vmatpush1.msra.mxu0 %v791
  %856 = vmatprep.subr.mxu0 0.0
  %857 = vmatpush1.msra.mxu0 %v792
  %858 = vmatprep.subr.mxu0 0.0
  %859 = vmatpush1.msra.mxu0 %v793
  %860 = vmatprep.subr.mxu0 0.0
  %861 = vmatpush1.msra.mxu0 %v794
  %862 = vmatprep.subr.mxu0 0.0
  %863 = vmatpush1.msra.mxu0 %v795
  %864 = vmatprep.subr.mxu0 0.0
  %865 = vmatpush1.msra.mxu0 %v796
  %866 = vmatprep.subr.mxu0 0.0
  %867 = vmatpush1.msra.mxu0 %v797
  %868 = vmatprep.subr.mxu0 0.0
  %869 = vmatpush1.msra.mxu0 %v798
  %870 = vmatprep.subr.mxu0 0.0
  %871 = vmatpush1.msra.mxu0 %v799
  %872 = vmatprep.mubr.f32.mxu0 %v603
  %873 = vmatmul.mubr.f32.gmra.mrb[0].mxu0 %v765
  %v874 = vpop.f32.mrb[0].mxu0
  %v875 = vadd.f32 %v806, %v874
  %v876 = vpop.f32.mrb[0].mxu0
  %877 = vmatprep.mubr.f32.mxu0 %v604
  %878 = vmatmul.mubr.f32.gmra.mrb[0].mxu0 %v766
  %v879 = vpop.f32.mrb[0].mxu0
  %v880 = vadd.f32 %v806, %v879
  %v881 = vpop.f32.mrb[0].mxu0
  %882 = vdwg.mxu0
  %s883 = scalar_lea.vmem %s4, 1
  %v884 = vld [vmem:[%s883] sm:$0x1]
  %vm885 = vcmp.gt.f32.partialorder %v875, 0.0
  %vm886 = vcmp.gt.f32.partialorder %v880, 0.0
  %v888 = vlaneseq
  %v889 = vshrl.u32 %v888, 7
  %v890 = vsub.s32 0, %v889
  %v891 = vrot.slane %v884, %v890
  %v893 = vmul.f32 %v891, %v875
  %v894 = vmul.f32 %v891, %v880
  %v895 = vsel %vm885, %v875, %v893
  %v896 = vsel %vm886, %v880, %v894
  %v897 = vmax.f32 %v603, %v895
  %v898 = vmax.f32 %v604, %v896
  %v899 = vlaneseq
  %v900 = vshrl.u32 %v899, 7
  %v901 = vsub.s32 0, %v900
  %v902 = vrot.slane %v895, %v901
  %v903 = vmul.f32 %v55, %v902
  %v904 = vmul.f32 %v60, %v902
  %v905 = vsel %vm76, %v903, -3.4e+38
  %v906 = vsel %vm77, %v904, -3.4e+38
  %v907 = vmax.f32 %v905, -3.4e+38
  %v908 = vmax.f32 %v906, -3.4e+38
  %v909 = vlaneseq
  %v910 = vshrl.u32 %v909, 7
  %v911 = vsub.s32 1, %v910
  %v912 = vrot.slane %v895, %v911
  %v913 = vmul.f32 %v84, %v912
  %v914 = vmul.f32 %v88, %v912
  %v915 = vsel %vm102, %v913, -3.4e+38
  %v916 = vsel %vm103, %v914, -3.4e+38
  %v917 = vmax.f32 %v907, %v915
  %v918 = vmax.f32 %v908, %v916
  %v919 = vlaneseq
  %v920 = vshrl.u32 %v919, 7
  %v921 = vsub.s32 2, %v920
  %v922 = vrot.slane %v895, %v921
  %v923 = vmul.f32 %v110, %v922
  %v924 = vmul.f32 %v114, %v922
  %v925 = vsel %vm128, %v923, -3.4e+38
  %v926 = vsel %vm129, %v924, -3.4e+38
  %v927 = vmax.f32 %v917, %v925
  %v928 = vmax.f32 %v918, %v926
  %v929 = vlaneseq
  %v930 = vshrl.u32 %v929, 7
  %v931 = vsub.s32 3, %v930
  %v932 = vrot.slane %v895, %v931
  %v933 = vmul.f32 %v136, %v932
  %v934 = vmul.f32 %v140, %v932
  %v935 = vsel %vm154, %v933, -3.4e+38
  %v936 = vsel %vm155, %v934, -3.4e+38
  %v937 = vmax.f32 %v927, %v935
  %v938 = vmax.f32 %v928, %v936
  %v939 = vlaneseq
  %v940 = vshrl.u32 %v939, 7
  %v941 = vsub.s32 4, %v940
  %v942 = vrot.slane %v895, %v941
  %v943 = vmul.f32 %v162, %v942
  %v944 = vmul.f32 %v166, %v942
  %v945 = vsel %vm180, %v943, -3.4e+38
  %v946 = vsel %vm181, %v944, -3.4e+38
  %v947 = vmax.f32 %v937, %v945
  %v948 = vmax.f32 %v938, %v946
  %v949 = vlaneseq
  %v950 = vshrl.u32 %v949, 7
  %v951 = vsub.s32 5, %v950
  %v952 = vrot.slane %v895, %v951
  %v953 = vmul.f32 %v188, %v952
  %v954 = vmul.f32 %v192, %v952
  %v955 = vsel %vm206, %v953, -3.4e+38
  %v956 = vsel %vm207, %v954, -3.4e+38
  %v957 = vmax.f32 %v947, %v955
  %v958 = vmax.f32 %v948, %v956
  %v959 = vlaneseq
  %v960 = vshrl.u32 %v959, 7
  %v961 = vsub.s32 6, %v960
  %v962 = vrot.slane %v895, %v961
  %v963 = vmul.f32 %v214, %v962
  %v964 = vmul.f32 %v218, %v962
  %v965 = vsel %vm232, %v963, -3.4e+38
  %v966 = vsel %vm233, %v964, -3.4e+38
  %v967 = vmax.f32 %v957, %v965
  %v968 = vmax.f32 %v958, %v966
  %v969 = vlaneseq
  %v970 = vshrl.u32 %v969, 7
  %v971 = vsub.s32 7, %v970
  %v972 = vrot.slane %v895, %v971
  %v973 = vmul.f32 %v240, %v972
  %v974 = vmul.f32 %v244, %v972
  %v975 = vsel %vm258, %v973, -3.4e+38
  %v976 = vsel %vm259, %v974, -3.4e+38
  %v977 = vmax.f32 %v967, %v975
  %v978 = vmax.f32 %v968, %v976
  %v979 = vlaneseq
  %v980 = vshrl.u32 %v979, 7
  %v981 = vsub.s32 0, %v980
  %v982 = vrot.slane %v896, %v981
  %v983 = vmul.f32 %v266, %v982
  %v984 = vmul.f32 %v270, %v982
  %v985 = vsel %vm284, %v983, -3.4e+38
  %v986 = vsel %vm285, %v984, -3.4e+38
  %v987 = vmax.f32 %v977, %v985
  %v988 = vmax.f32 %v978, %v986
  %v989 = vlaneseq
  %v990 = vshrl.u32 %v989, 7
  %v991 = vsub.s32 1, %v990
  %v992 = vrot.slane %v896, %v991
  %v993 = vmul.f32 %v292, %v992
  %v994 = vmul.f32 %v296, %v992
  %v995 = vsel %vm310, %v993, -3.4e+38
  %v996 = vsel %vm311, %v994, -3.4e+38
  %v997 = vmax.f32 %v987, %v995
  %v998 = vmax.f32 %v988, %v996
  %v999 = vlaneseq
  %v1000 = vshrl.u32 %v999, 7
  %v1001 = vsub.s32 2, %v1000
  %v1002 = vrot.slane %v896, %v1001
  %v1003 = vmul.f32 %v318, %v1002
  %v1004 = vmul.f32 %v322, %v1002
  %v1005 = vsel %vm336, %v1003, -3.4e+38
  %v1006 = vsel %vm337, %v1004, -3.4e+38
  %v1007 = vmax.f32 %v997, %v1005
  %v1008 = vmax.f32 %v998, %v1006
  %v1009 = vlaneseq
  %v1010 = vshrl.u32 %v1009, 7
  %v1011 = vsub.s32 3, %v1010
  %v1012 = vrot.slane %v896, %v1011
  %v1013 = vmul.f32 %v344, %v1012
  %v1014 = vmul.f32 %v348, %v1012
  %v1015 = vsel %vm362, %v1013, -3.4e+38
  %v1016 = vsel %vm363, %v1014, -3.4e+38
  %v1017 = vmax.f32 %v1007, %v1015
  %v1018 = vmax.f32 %v1008, %v1016
  %v1019 = vlaneseq
  %v1020 = vshrl.u32 %v1019, 7
  %v1021 = vsub.s32 4, %v1020
  %v1022 = vrot.slane %v896, %v1021
  %v1023 = vmul.f32 %v370, %v1022
  %v1024 = vmul.f32 %v374, %v1022
  %v1025 = vsel %vm388, %v1023, -3.4e+38
  %v1026 = vsel %vm389, %v1024, -3.4e+38
  %v1027 = vmax.f32 %v1017, %v1025
  %v1028 = vmax.f32 %v1018, %v1026
  %v1029 = vlaneseq
  %v1030 = vshrl.u32 %v1029, 7
  %v1031 = vsub.s32 5, %v1030
  %v1032 = vrot.slane %v896, %v1031
  %v1033 = vmul.f32 %v396, %v1032
  %v1034 = vmul.f32 %v400, %v1032
  %v1035 = vsel %vm414, %v1033, -3.4e+38
  %v1036 = vsel %vm415, %v1034, -3.4e+38
  %v1037 = vmax.f32 %v1027, %v1035
  %v1038 = vmax.f32 %v1028, %v1036
  %v1039 = vlaneseq
  %v1040 = vshrl.u32 %v1039, 7
  %v1041 = vsub.s32 6, %v1040
  %v1042 = vrot.slane %v896, %v1041
  %v1043 = vmul.f32 %v422, %v1042
  %v1044 = vmul.f32 %v426, %v1042
  %v1045 = vsel %vm440, %v1043, -3.4e+38
  %v1046 = vsel %vm441, %v1044, -3.4e+38
  %v1047 = vmax.f32 %v1037, %v1045
  %v1048 = vmax.f32 %v1038, %v1046
  %v1049 = vlaneseq
  %v1050 = vshrl.u32 %v1049, 7
  %v1051 = vsub.s32 7, %v1050
  %v1052 = vrot.slane %v896, %v1051
  %v1053 = vmul.f32 %v448, %v1052
  %v1054 = vmul.f32 %v452, %v1052
  %v1055 = vsel %vm466, %v1053, -3.4e+38
  %v1056 = vsel %vm467, %v1054, -3.4e+38
  %v1057 = vmax.f32 %v1047, %v1055
  %v1058 = vmax.f32 %v1048, %v1056
  %v1059 = vsel %vm474, %v1057, 0.0
  %v1060 = vsel %vm475, %v1058, 0.0
  %s1061 = scalar_lea.vmem %s2, 512
  %v1062 = vld [vmem:[%s1061] sm:$0xff]
  %v1063 = vld [vmem:[%s1061 + $0x8] sm:$0xff]
  %v1064 = vld [vmem:[%s1061 + $0x10] sm:$0xff]
  %v1065 = vld [vmem:[%s1061 + $0x18] sm:$0xff]
  %v1066 = vld [vmem:[%s1061 + $0x20] sm:$0xff]
  %v1067 = vld [vmem:[%s1061 + $0x28] sm:$0xff]
  %v1068 = vld [vmem:[%s1061 + $0x30] sm:$0xff]
  %v1069 = vld [vmem:[%s1061 + $0x38] sm:$0xff]
  %v1070 = vld [vmem:[%s1061 + $0x40] sm:$0xff]
  %v1071 = vld [vmem:[%s1061 + $0x48] sm:$0xff]
  %v1072 = vld [vmem:[%s1061 + $0x50] sm:$0xff]
  %v1073 = vld [vmem:[%s1061 + $0x58] sm:$0xff]
  %v1074 = vld [vmem:[%s1061 + $0x60] sm:$0xff]
  %v1075 = vld [vmem:[%s1061 + $0x68] sm:$0xff]
  %v1076 = vld [vmem:[%s1061 + $0x70] sm:$0xff]
  %v1077 = vld [vmem:[%s1061 + $0x78] sm:$0xff]
  %v1078 = vld [vmem:[%s1061 + $0x80] sm:$0xff]
  %v1079 = vld [vmem:[%s1061 + $0x88] sm:$0xff]
  %v1080 = vld [vmem:[%s1061 + $0x90] sm:$0xff]
  %v1081 = vld [vmem:[%s1061 + $0x98] sm:$0xff]
  %v1082 = vld [vmem:[%s1061 + $0xa0] sm:$0xff]
  %v1083 = vld [vmem:[%s1061 + $0xa8] sm:$0xff]
  %v1084 = vld [vmem:[%s1061 + $0xb0] sm:$0xff]
  %v1085 = vld [vmem:[%s1061 + $0xb8] sm:$0xff]
  %v1086 = vld [vmem:[%s1061 + $0xc0] sm:$0xff]
  %v1087 = vld [vmem:[%s1061 + $0xc8] sm:$0xff]
  %v1088 = vld [vmem:[%s1061 + $0xd0] sm:$0xff]
  %v1089 = vld [vmem:[%s1061 + $0xd8] sm:$0xff]
  %v1090 = vld [vmem:[%s1061 + $0xe0] sm:$0xff]
  %v1091 = vld [vmem:[%s1061 + $0xe8] sm:$0xff]
  %v1092 = vld [vmem:[%s1061 + $0xf0] sm:$0xff]
  %v1093 = vld [vmem:[%s1061 + $0xf8] sm:$0xff]
  %s1094 = scalar_lea.vmem %s3, 2
  %v1095 = vld [vmem:[%s1094] sm:$0x1]
  %v1097 = vlaneseq
  %v1098 = vshrl.u32 %v1097, 7
  %v1099 = vsub.s32 0, %v1098
  %v1100 = vrot.slane %v1095, %v1099
  %1102 = vmatprep.subr.mxu0 0.0
  %1103 = vmatpush1.msra.mxu0 %v1062
  %1104 = vmatprep.subr.mxu0 0.0
  %1105 = vmatpush1.msra.mxu0 %v1063
  %1106 = vmatprep.subr.mxu0 0.0
  %1107 = vmatpush1.msra.mxu0 %v1064
  %1108 = vmatprep.subr.mxu0 0.0
  %1109 = vmatpush1.msra.mxu0 %v1065
  %1110 = vmatprep.subr.mxu0 0.0
  %1111 = vmatpush1.msra.mxu0 %v1066
  %1112 = vmatprep.subr.mxu0 0.0
  %1113 = vmatpush1.msra.mxu0 %v1067
  %1114 = vmatprep.subr.mxu0 0.0
  %1115 = vmatpush1.msra.mxu0 %v1068
  %1116 = vmatprep.subr.mxu0 0.0
  %1117 = vmatpush1.msra.mxu0 %v1069
  %1118 = vmatprep.subr.mxu0 0.0
  %1119 = vmatpush1.msra.mxu0 %v1070
  %1120 = vmatprep.subr.mxu0 0.0
  %1121 = vmatpush1.msra.mxu0 %v1071
  %1122 = vmatprep.subr.mxu0 0.0
  %1123 = vmatpush1.msra.mxu0 %v1072
  %1124 = vmatprep.subr.mxu0 0.0
  %1125 = vmatpush1.msra.mxu0 %v1073
  %1126 = vmatprep.subr.mxu0 0.0
  %1127 = vmatpush1.msra.mxu0 %v1074
  %1128 = vmatprep.subr.mxu0 0.0
  %1129 = vmatpush1.msra.mxu0 %v1075
  %1130 = vmatprep.subr.mxu0 0.0
  %1131 = vmatpush1.msra.mxu0 %v1076
  %1132 = vmatprep.subr.mxu0 0.0
  %1133 = vmatpush1.msra.mxu0 %v1077
  %1134 = vmatprep.subr.mxu0 0.0
  %1135 = vmatpush1.msra.mxu0 %v1078
  %1136 = vmatprep.subr.mxu0 0.0
  %1137 = vmatpush1.msra.mxu0 %v1079
  %1138 = vmatprep.subr.mxu0 0.0
  %1139 = vmatpush1.msra.mxu0 %v1080
  %1140 = vmatprep.subr.mxu0 0.0
  %1141 = vmatpush1.msra.mxu0 %v1081
  %1142 = vmatprep.subr.mxu0 0.0
  %1143 = vmatpush1.msra.mxu0 %v1082
  %1144 = vmatprep.subr.mxu0 0.0
  %1145 = vmatpush1.msra.mxu0 %v1083
  %1146 = vmatprep.subr.mxu0 0.0
  %1147 = vmatpush1.msra.mxu0 %v1084
  %1148 = vmatprep.subr.mxu0 0.0
  %1149 = vmatpush1.msra.mxu0 %v1085
  %1150 = vmatprep.subr.mxu0 0.0
  %1151 = vmatpush1.msra.mxu0 %v1086
  %1152 = vmatprep.subr.mxu0 0.0
  %1153 = vmatpush1.msra.mxu0 %v1087
  %1154 = vmatprep.subr.mxu0 0.0
  %1155 = vmatpush1.msra.mxu0 %v1088
  %1156 = vmatprep.subr.mxu0 0.0
  %1157 = vmatpush1.msra.mxu0 %v1089
  %1158 = vmatprep.subr.mxu0 0.0
  %1159 = vmatpush1.msra.mxu0 %v1090
  %1160 = vmatprep.subr.mxu0 0.0
  %1161 = vmatpush1.msra.mxu0 %v1091
  %1162 = vmatprep.subr.mxu0 0.0
  %1163 = vmatpush1.msra.mxu0 %v1092
  %1164 = vmatprep.subr.mxu0 0.0
  %1165 = vmatpush1.msra.mxu0 %v1093
  %1166 = vmatprep.mubr.f32.mxu0 %v895
  %1167 = vmatmul.mubr.f32.gmra.mrb[0].mxu0 %v1059
  %v1168 = vpop.f32.mrb[0].mxu0
  %v1169 = vadd.f32 %v1100, %v1168
  %v1170 = vpop.f32.mrb[0].mxu0
  %1171 = vmatprep.mubr.f32.mxu0 %v896
  %1172 = vmatmul.mubr.f32.gmra.mrb[0].mxu0 %v1060
  %v1173 = vpop.f32.mrb[0].mxu0
  %v1174 = vadd.f32 %v1100, %v1173
  %v1175 = vpop.f32.mrb[0].mxu0
  %1176 = vdwg.mxu0
  %s1177 = scalar_lea.vmem %s4, 2
  %v1178 = vld [vmem:[%s1177] sm:$0x1]
  %vm1179 = vcmp.gt.f32.partialorder %v1169, 0.0
  %vm1180 = vcmp.gt.f32.partialorder %v1174, 0.0
  %v1182 = vlaneseq
  %v1183 = vshrl.u32 %v1182, 7
  %v1184 = vsub.s32 0, %v1183
  %v1185 = vrot.slane %v1178, %v1184
  %v1187 = vmul.f32 %v1185, %v1169
  %v1188 = vmul.f32 %v1185, %v1174
  %v1189 = vsel %vm1179, %v1169, %v1187
  %v1190 = vsel %vm1180, %v1174, %v1188
  %v1191 = vmax.f32 %v897, %v1189
  %v1192 = vmax.f32 %v898, %v1190
  %v1193 = vlaneseq
  %v1194 = vshrl.u32 %v1193, 7
  %v1195 = vsub.s32 0, %v1194
  %v1196 = vrot.slane %v1191, %v1195
  %v1197 = vsel %vm76, %v1196, -3.4e+38
  %v1198 = vsel %vm77, %v1196, -3.4e+38
  %v1199 = vmax.f32 %v1197, -3.4e+38
  %v1200 = vmax.f32 %v1198, -3.4e+38
  %v1201 = vlaneseq
  %v1202 = vshrl.u32 %v1201, 7
  %v1203 = vsub.s32 1, %v1202
  %v1204 = vrot.slane %v1191, %v1203
  %v1205 = vsel %vm102, %v1204, -3.4e+38
  %v1206 = vsel %vm103, %v1204, -3.4e+38
  %v1207 = vmax.f32 %v1199, %v1205
  %v1208 = vmax.f32 %v1200, %v1206
  %v1209 = vlaneseq
  %v1210 = vshrl.u32 %v1209, 7
  %v1211 = vsub.s32 2, %v1210
  %v1212 = vrot.slane %v1191, %v1211
  %v1213 = vsel %vm128, %v1212, -3.4e+38
  %v1214 = vsel %vm129, %v1212, -3.4e+38
  %v1215 = vmax.f32 %v1207, %v1213
  %v1216 = vmax.f32 %v1208, %v1214
  %v1217 = vlaneseq
  %v1218 = vshrl.u32 %v1217, 7
  %v1219 = vsub.s32 3, %v1218
  %v1220 = vrot.slane %v1191, %v1219
  %v1221 = vsel %vm154, %v1220, -3.4e+38
  %v1222 = vsel %vm155, %v1220, -3.4e+38
  %v1223 = vmax.f32 %v1215, %v1221
  %v1224 = vmax.f32 %v1216, %v1222
  %v1225 = vlaneseq
  %v1226 = vshrl.u32 %v1225, 7
  %v1227 = vsub.s32 4, %v1226
  %v1228 = vrot.slane %v1191, %v1227
  %v1229 = vsel %vm180, %v1228, -3.4e+38
  %v1230 = vsel %vm181, %v1228, -3.4e+38
  %v1231 = vmax.f32 %v1223, %v1229
  %v1232 = vmax.f32 %v1224, %v1230
  %v1233 = vlaneseq
  %v1234 = vshrl.u32 %v1233, 7
  %v1235 = vsub.s32 5, %v1234
  %v1236 = vrot.slane %v1191, %v1235
  %v1237 = vsel %vm206, %v1236, -3.4e+38
  %v1238 = vsel %vm207, %v1236, -3.4e+38
  %v1239 = vmax.f32 %v1231, %v1237
  %v1240 = vmax.f32 %v1232, %v1238
  %v1241 = vlaneseq
  %v1242 = vshrl.u32 %v1241, 7
  %v1243 = vsub.s32 6, %v1242
  %v1244 = vrot.slane %v1191, %v1243
  %v1245 = vsel %vm232, %v1244, -3.4e+38
  %v1246 = vsel %vm233, %v1244, -3.4e+38
  %v1247 = vmax.f32 %v1239, %v1245
  %v1248 = vmax.f32 %v1240, %v1246
  %v1249 = vlaneseq
  %v1250 = vshrl.u32 %v1249, 7
  %v1251 = vsub.s32 7, %v1250
  %v1252 = vrot.slane %v1191, %v1251
  %v1253 = vsel %vm258, %v1252, -3.4e+38
  %v1254 = vsel %vm259, %v1252, -3.4e+38
  %v1255 = vmax.f32 %v1247, %v1253
  %v1256 = vmax.f32 %v1248, %v1254
  %v1257 = vlaneseq
  %v1258 = vshrl.u32 %v1257, 7
  %v1259 = vsub.s32 0, %v1258
  %v1260 = vrot.slane %v1192, %v1259
  %v1261 = vsel %vm284, %v1260, -3.4e+38
  %v1262 = vsel %vm285, %v1260, -3.4e+38
  %v1263 = vmax.f32 %v1255, %v1261
  %v1264 = vmax.f32 %v1256, %v1262
  %v1265 = vlaneseq
  %v1266 = vshrl.u32 %v1265, 7
  %v1267 = vsub.s32 1, %v1266
  %v1268 = vrot.slane %v1192, %v1267
  %v1269 = vsel %vm310, %v1268, -3.4e+38
  %v1270 = vsel %vm311, %v1268, -3.4e+38
  %v1271 = vmax.f32 %v1263, %v1269
  %v1272 = vmax.f32 %v1264, %v1270
  %v1273 = vlaneseq
  %v1274 = vshrl.u32 %v1273, 7
  %v1275 = vsub.s32 2, %v1274
  %v1276 = vrot.slane %v1192, %v1275
  %v1277 = vsel %vm336, %v1276, -3.4e+38
  %v1278 = vsel %vm337, %v1276, -3.4e+38
  %v1279 = vmax.f32 %v1271, %v1277
  %v1280 = vmax.f32 %v1272, %v1278
  %v1281 = vlaneseq
  %v1282 = vshrl.u32 %v1281, 7
  %v1283 = vsub.s32 3, %v1282
  %v1284 = vrot.slane %v1192, %v1283
  %v1285 = vsel %vm362, %v1284, -3.4e+38
  %v1286 = vsel %vm363, %v1284, -3.4e+38
  %v1287 = vmax.f32 %v1279, %v1285
  %v1288 = vmax.f32 %v1280, %v1286
  %v1289 = vlaneseq
  %v1290 = vshrl.u32 %v1289, 7
  %v1291 = vsub.s32 4, %v1290
  %v1292 = vrot.slane %v1192, %v1291
  %v1293 = vsel %vm388, %v1292, -3.4e+38
  %v1294 = vsel %vm389, %v1292, -3.4e+38
  %v1295 = vmax.f32 %v1287, %v1293
  %v1296 = vmax.f32 %v1288, %v1294
  %v1297 = vlaneseq
  %v1298 = vshrl.u32 %v1297, 7
  %v1299 = vsub.s32 5, %v1298
  %v1300 = vrot.slane %v1192, %v1299
  %v1301 = vsel %vm414, %v1300, -3.4e+38
  %v1302 = vsel %vm415, %v1300, -3.4e+38
  %v1303 = vmax.f32 %v1295, %v1301
  %v1304 = vmax.f32 %v1296, %v1302
  %v1305 = vlaneseq
  %v1306 = vshrl.u32 %v1305, 7
  %v1307 = vsub.s32 6, %v1306
  %v1308 = vrot.slane %v1192, %v1307
  %v1309 = vsel %vm440, %v1308, -3.4e+38
  %v1310 = vsel %vm441, %v1308, -3.4e+38
  %v1311 = vmax.f32 %v1303, %v1309
  %v1312 = vmax.f32 %v1304, %v1310
  %v1313 = vlaneseq
  %v1314 = vshrl.u32 %v1313, 7
  %v1315 = vsub.s32 7, %v1314
  %v1316 = vrot.slane %v1192, %v1315
  %v1317 = vsel %vm466, %v1316, -3.4e+38
  %v1318 = vsel %vm467, %v1316, -3.4e+38
  %v1319 = vmax.f32 %v1311, %v1317
  %v1320 = vmax.f32 %v1312, %v1318
  %v1321 = vsel %vm474, %v1319, 0.0
  %v1322 = vsel %vm475, %v1320, 0.0
  %s1323 = scalar_lea.vmem %s2, 768
  %v1324 = vld [vmem:[%s1323] sm:$0xff]
  %v1325 = vld [vmem:[%s1323 + $0x8] sm:$0xff]
  %v1326 = vld [vmem:[%s1323 + $0x10] sm:$0xff]
  %v1327 = vld [vmem:[%s1323 + $0x18] sm:$0xff]
  %v1328 = vld [vmem:[%s1323 + $0x20] sm:$0xff]
  %v1329 = vld [vmem:[%s1323 + $0x28] sm:$0xff]
  %v1330 = vld [vmem:[%s1323 + $0x30] sm:$0xff]
  %v1331 = vld [vmem:[%s1323 + $0x38] sm:$0xff]
  %v1332 = vld [vmem:[%s1323 + $0x40] sm:$0xff]
  %v1333 = vld [vmem:[%s1323 + $0x48] sm:$0xff]
  %v1334 = vld [vmem:[%s1323 + $0x50] sm:$0xff]
  %v1335 = vld [vmem:[%s1323 + $0x58] sm:$0xff]
  %v1336 = vld [vmem:[%s1323 + $0x60] sm:$0xff]
  %v1337 = vld [vmem:[%s1323 + $0x68] sm:$0xff]
  %v1338 = vld [vmem:[%s1323 + $0x70] sm:$0xff]
  %v1339 = vld [vmem:[%s1323 + $0x78] sm:$0xff]
  %v1340 = vld [vmem:[%s1323 + $0x80] sm:$0xff]
  %v1341 = vld [vmem:[%s1323 + $0x88] sm:$0xff]
  %v1342 = vld [vmem:[%s1323 + $0x90] sm:$0xff]
  %v1343 = vld [vmem:[%s1323 + $0x98] sm:$0xff]
  %v1344 = vld [vmem:[%s1323 + $0xa0] sm:$0xff]
  %v1345 = vld [vmem:[%s1323 + $0xa8] sm:$0xff]
  %v1346 = vld [vmem:[%s1323 + $0xb0] sm:$0xff]
  %v1347 = vld [vmem:[%s1323 + $0xb8] sm:$0xff]
  %v1348 = vld [vmem:[%s1323 + $0xc0] sm:$0xff]
  %v1349 = vld [vmem:[%s1323 + $0xc8] sm:$0xff]
  %v1350 = vld [vmem:[%s1323 + $0xd0] sm:$0xff]
  %v1351 = vld [vmem:[%s1323 + $0xd8] sm:$0xff]
  %v1352 = vld [vmem:[%s1323 + $0xe0] sm:$0xff]
  %v1353 = vld [vmem:[%s1323 + $0xe8] sm:$0xff]
  %v1354 = vld [vmem:[%s1323 + $0xf0] sm:$0xff]
  %v1355 = vld [vmem:[%s1323 + $0xf8] sm:$0xff]
  %s1356 = scalar_lea.vmem %s3, 3
  %v1357 = vld [vmem:[%s1356] sm:$0x1]
  %v1359 = vlaneseq
  %v1360 = vshrl.u32 %v1359, 7
  %v1361 = vsub.s32 0, %v1360
  %v1362 = vrot.slane %v1357, %v1361
  %1364 = vmatprep.subr.mxu0 0.0
  %1365 = vmatpush1.msra.mxu0 %v1324
  %1366 = vmatprep.subr.mxu0 0.0
  %1367 = vmatpush1.msra.mxu0 %v1325
  %1368 = vmatprep.subr.mxu0 0.0
  %1369 = vmatpush1.msra.mxu0 %v1326
  %1370 = vmatprep.subr.mxu0 0.0
  %1371 = vmatpush1.msra.mxu0 %v1327
  %1372 = vmatprep.subr.mxu0 0.0
  %1373 = vmatpush1.msra.mxu0 %v1328
  %1374 = vmatprep.subr.mxu0 0.0
  %1375 = vmatpush1.msra.mxu0 %v1329
  %1376 = vmatprep.subr.mxu0 0.0
  %1377 = vmatpush1.msra.mxu0 %v1330
  %1378 = vmatprep.subr.mxu0 0.0
  %1379 = vmatpush1.msra.mxu0 %v1331
  %1380 = vmatprep.subr.mxu0 0.0
  %1381 = vmatpush1.msra.mxu0 %v1332
  %1382 = vmatprep.subr.mxu0 0.0
  %1383 = vmatpush1.msra.mxu0 %v1333
  %1384 = vmatprep.subr.mxu0 0.0
  %1385 = vmatpush1.msra.mxu0 %v1334
  %1386 = vmatprep.subr.mxu0 0.0
  %1387 = vmatpush1.msra.mxu0 %v1335
  %1388 = vmatprep.subr.mxu0 0.0
  %1389 = vmatpush1.msra.mxu0 %v1336
  %1390 = vmatprep.subr.mxu0 0.0
  %1391 = vmatpush1.msra.mxu0 %v1337
  %1392 = vmatprep.subr.mxu0 0.0
  %1393 = vmatpush1.msra.mxu0 %v1338
  %1394 = vmatprep.subr.mxu0 0.0
  %1395 = vmatpush1.msra.mxu0 %v1339
  %1396 = vmatprep.subr.mxu0 0.0
  %1397 = vmatpush1.msra.mxu0 %v1340
  %1398 = vmatprep.subr.mxu0 0.0
  %1399 = vmatpush1.msra.mxu0 %v1341
  %1400 = vmatprep.subr.mxu0 0.0
  %1401 = vmatpush1.msra.mxu0 %v1342
  %1402 = vmatprep.subr.mxu0 0.0
  %1403 = vmatpush1.msra.mxu0 %v1343
  %1404 = vmatprep.subr.mxu0 0.0
  %1405 = vmatpush1.msra.mxu0 %v1344
  %1406 = vmatprep.subr.mxu0 0.0
  %1407 = vmatpush1.msra.mxu0 %v1345
  %1408 = vmatprep.subr.mxu0 0.0
  %1409 = vmatpush1.msra.mxu0 %v1346
  %1410 = vmatprep.subr.mxu0 0.0
  %1411 = vmatpush1.msra.mxu0 %v1347
  %1412 = vmatprep.subr.mxu0 0.0
  %1413 = vmatpush1.msra.mxu0 %v1348
  %1414 = vmatprep.subr.mxu0 0.0
  %1415 = vmatpush1.msra.mxu0 %v1349
  %1416 = vmatprep.subr.mxu0 0.0
  %1417 = vmatpush1.msra.mxu0 %v1350
  %1418 = vmatprep.subr.mxu0 0.0
  %1419 = vmatpush1.msra.mxu0 %v1351
  %1420 = vmatprep.subr.mxu0 0.0
  %1421 = vmatpush1.msra.mxu0 %v1352
  %1422 = vmatprep.subr.mxu0 0.0
  %1423 = vmatpush1.msra.mxu0 %v1353
  %1424 = vmatprep.subr.mxu0 0.0
  %1425 = vmatpush1.msra.mxu0 %v1354
  %1426 = vmatprep.subr.mxu0 0.0
  %1427 = vmatpush1.msra.mxu0 %v1355
  %1428 = vmatprep.mubr.f32.mxu0 %v1191
  %1429 = vmatmul.mubr.f32.gmra.mrb[0].mxu0 %v1321
  %v1430 = vpop.f32.mrb[0].mxu0
  %v1431 = vadd.f32 %v1362, %v1430
  %v1432 = vpop.f32.mrb[0].mxu0
  %1433 = vmatprep.mubr.f32.mxu0 %v1192
  %1434 = vmatmul.mubr.f32.gmra.mrb[0].mxu0 %v1322
  %v1435 = vpop.f32.mrb[0].mxu0
  %v1436 = vadd.f32 %v1362, %v1435
  %v1437 = vpop.f32.mrb[0].mxu0
  %1438 = vdwg.mxu0
  %s1439 = scalar_lea.vmem %s4, 3
  %v1440 = vld [vmem:[%s1439] sm:$0x1]
  %vm1441 = vcmp.gt.f32.partialorder %v1431, 0.0
  %vm1442 = vcmp.gt.f32.partialorder %v1436, 0.0
  %v1444 = vlaneseq
  %v1445 = vshrl.u32 %v1444, 7
  %v1446 = vsub.s32 0, %v1445
  %v1447 = vrot.slane %v1440, %v1446
  %v1449 = vmul.f32 %v1447, %v1431
  %v1450 = vmul.f32 %v1447, %v1436
  %v1451 = vsel %vm1441, %v1431, %v1449
  %v1452 = vsel %vm1442, %v1436, %v1450
  %v1453 = vlaneseq
  %v1454 = vshrl.u32 %v1453, 7
  %v1455 = vsub.s32 0, %v1454
  %v1456 = vrot.slane %v1451, %v1455
  %v1457 = vsel %vm76, %v1456, -3.4e+38
  %v1458 = vsel %vm77, %v1456, -3.4e+38
  %v1459 = vmax.f32 %v1457, -3.4e+38
  %v1460 = vmax.f32 %v1458, -3.4e+38
  %v1461 = vlaneseq
  %v1462 = vshrl.u32 %v1461, 7
  %v1463 = vsub.s32 1, %v1462
  %v1464 = vrot.slane %v1451, %v1463
  %v1465 = vsel %vm102, %v1464, -3.4e+38
  %v1466 = vsel %vm103, %v1464, -3.4e+38
  %v1467 = vmax.f32 %v1459, %v1465
  %v1468 = vmax.f32 %v1460, %v1466
  %v1469 = vlaneseq
  %v1470 = vshrl.u32 %v1469, 7
  %v1471 = vsub.s32 2, %v1470
  %v1472 = vrot.slane %v1451, %v1471
  %v1473 = vsel %vm128, %v1472, -3.4e+38
  %v1474 = vsel %vm129, %v1472, -3.4e+38
  %v1475 = vmax.f32 %v1467, %v1473
  %v1476 = vmax.f32 %v1468, %v1474
  %v1477 = vlaneseq
  %v1478 = vshrl.u32 %v1477, 7
  %v1479 = vsub.s32 3, %v1478
  %v1480 = vrot.slane %v1451, %v1479
  %v1481 = vsel %vm154, %v1480, -3.4e+38
  %v1482 = vsel %vm155, %v1480, -3.4e+38
  %v1483 = vmax.f32 %v1475, %v1481
  %v1484 = vmax.f32 %v1476, %v1482
  %v1485 = vlaneseq
  %v1486 = vshrl.u32 %v1485, 7
  %v1487 = vsub.s32 4, %v1486
  %v1488 = vrot.slane %v1451, %v1487
  %v1489 = vsel %vm180, %v1488, -3.4e+38
  %v1490 = vsel %vm181, %v1488, -3.4e+38
  %v1491 = vmax.f32 %v1483, %v1489
  %v1492 = vmax.f32 %v1484, %v1490
  %v1493 = vlaneseq
  %v1494 = vshrl.u32 %v1493, 7
  %v1495 = vsub.s32 5, %v1494
  %v1496 = vrot.slane %v1451, %v1495
  %v1497 = vsel %vm206, %v1496, -3.4e+38
  %v1498 = vsel %vm207, %v1496, -3.4e+38
  %v1499 = vmax.f32 %v1491, %v1497
  %v1500 = vmax.f32 %v1492, %v1498
  %v1501 = vlaneseq
  %v1502 = vshrl.u32 %v1501, 7
  %v1503 = vsub.s32 6, %v1502
  %v1504 = vrot.slane %v1451, %v1503
  %v1505 = vsel %vm232, %v1504, -3.4e+38
  %v1506 = vsel %vm233, %v1504, -3.4e+38
  %v1507 = vmax.f32 %v1499, %v1505
  %v1508 = vmax.f32 %v1500, %v1506
  %v1509 = vlaneseq
  %v1510 = vshrl.u32 %v1509, 7
  %v1511 = vsub.s32 7, %v1510
  %v1512 = vrot.slane %v1451, %v1511
  %v1513 = vsel %vm258, %v1512, -3.4e+38
  %v1514 = vsel %vm259, %v1512, -3.4e+38
  %v1515 = vmax.f32 %v1507, %v1513
  %v1516 = vmax.f32 %v1508, %v1514
  %v1517 = vlaneseq
  %v1518 = vshrl.u32 %v1517, 7
  %v1519 = vsub.s32 0, %v1518
  %v1520 = vrot.slane %v1452, %v1519
  %v1521 = vsel %vm284, %v1520, -3.4e+38
  %v1522 = vsel %vm285, %v1520, -3.4e+38
  %v1523 = vmax.f32 %v1515, %v1521
  %v1524 = vmax.f32 %v1516, %v1522
  %v1525 = vlaneseq
  %v1526 = vshrl.u32 %v1525, 7
  %v1527 = vsub.s32 1, %v1526
  %v1528 = vrot.slane %v1452, %v1527
  %v1529 = vsel %vm310, %v1528, -3.4e+38
  %v1530 = vsel %vm311, %v1528, -3.4e+38
  %v1531 = vmax.f32 %v1523, %v1529
  %v1532 = vmax.f32 %v1524, %v1530
  %v1533 = vlaneseq
  %v1534 = vshrl.u32 %v1533, 7
  %v1535 = vsub.s32 2, %v1534
  %v1536 = vrot.slane %v1452, %v1535
  %v1537 = vsel %vm336, %v1536, -3.4e+38
  %v1538 = vsel %vm337, %v1536, -3.4e+38
  %v1539 = vmax.f32 %v1531, %v1537
  %v1540 = vmax.f32 %v1532, %v1538
  %v1541 = vlaneseq
  %v1542 = vshrl.u32 %v1541, 7
  %v1543 = vsub.s32 3, %v1542
  %v1544 = vrot.slane %v1452, %v1543
  %v1545 = vsel %vm362, %v1544, -3.4e+38
  %v1546 = vsel %vm363, %v1544, -3.4e+38
  %v1547 = vmax.f32 %v1539, %v1545
  %v1548 = vmax.f32 %v1540, %v1546
  %v1549 = vlaneseq
  %v1550 = vshrl.u32 %v1549, 7
  %v1551 = vsub.s32 4, %v1550
  %v1552 = vrot.slane %v1452, %v1551
  %v1553 = vsel %vm388, %v1552, -3.4e+38
  %v1554 = vsel %vm389, %v1552, -3.4e+38
  %v1555 = vmax.f32 %v1547, %v1553
  %v1556 = vmax.f32 %v1548, %v1554
  %v1557 = vlaneseq
  %v1558 = vshrl.u32 %v1557, 7
  %v1559 = vsub.s32 5, %v1558
  %v1560 = vrot.slane %v1452, %v1559
  %v1561 = vsel %vm414, %v1560, -3.4e+38
  %v1562 = vsel %vm415, %v1560, -3.4e+38
  %v1563 = vmax.f32 %v1555, %v1561
  %v1564 = vmax.f32 %v1556, %v1562
  %v1565 = vlaneseq
  %v1566 = vshrl.u32 %v1565, 7
  %v1567 = vsub.s32 6, %v1566
  %v1568 = vrot.slane %v1452, %v1567
  %v1569 = vsel %vm440, %v1568, -3.4e+38
  %v1570 = vsel %vm441, %v1568, -3.4e+38
  %v1571 = vmax.f32 %v1563, %v1569
  %v1572 = vmax.f32 %v1564, %v1570
  %v1573 = vlaneseq
  %v1574 = vshrl.u32 %v1573, 7
  %v1575 = vsub.s32 7, %v1574
  %v1576 = vrot.slane %v1452, %v1575
  %v1577 = vsel %vm466, %v1576, -3.4e+38
  %v1578 = vsel %vm467, %v1576, -3.4e+38
  %v1579 = vmax.f32 %v1571, %v1577
  %v1580 = vmax.f32 %v1572, %v1578
  %v1581 = vsel %vm474, %v1579, 0.0
  %v1582 = vsel %vm475, %v1580, 0.0
  %s1583 = scalar_lea.vmem %s2, 1024
  %v1584 = vld [vmem:[%s1583] sm:$0xff]
  %v1585 = vld [vmem:[%s1583 + $0x8] sm:$0xff]
  %v1586 = vld [vmem:[%s1583 + $0x10] sm:$0xff]
  %v1587 = vld [vmem:[%s1583 + $0x18] sm:$0xff]
  %v1588 = vld [vmem:[%s1583 + $0x20] sm:$0xff]
  %v1589 = vld [vmem:[%s1583 + $0x28] sm:$0xff]
  %v1590 = vld [vmem:[%s1583 + $0x30] sm:$0xff]
  %v1591 = vld [vmem:[%s1583 + $0x38] sm:$0xff]
  %v1592 = vld [vmem:[%s1583 + $0x40] sm:$0xff]
  %v1593 = vld [vmem:[%s1583 + $0x48] sm:$0xff]
  %v1594 = vld [vmem:[%s1583 + $0x50] sm:$0xff]
  %v1595 = vld [vmem:[%s1583 + $0x58] sm:$0xff]
  %v1596 = vld [vmem:[%s1583 + $0x60] sm:$0xff]
  %v1597 = vld [vmem:[%s1583 + $0x68] sm:$0xff]
  %v1598 = vld [vmem:[%s1583 + $0x70] sm:$0xff]
  %v1599 = vld [vmem:[%s1583 + $0x78] sm:$0xff]
  %v1600 = vld [vmem:[%s1583 + $0x80] sm:$0xff]
  %v1601 = vld [vmem:[%s1583 + $0x88] sm:$0xff]
  %v1602 = vld [vmem:[%s1583 + $0x90] sm:$0xff]
  %v1603 = vld [vmem:[%s1583 + $0x98] sm:$0xff]
  %v1604 = vld [vmem:[%s1583 + $0xa0] sm:$0xff]
  %v1605 = vld [vmem:[%s1583 + $0xa8] sm:$0xff]
  %v1606 = vld [vmem:[%s1583 + $0xb0] sm:$0xff]
  %v1607 = vld [vmem:[%s1583 + $0xb8] sm:$0xff]
  %v1608 = vld [vmem:[%s1583 + $0xc0] sm:$0xff]
  %v1609 = vld [vmem:[%s1583 + $0xc8] sm:$0xff]
  %v1610 = vld [vmem:[%s1583 + $0xd0] sm:$0xff]
  %v1611 = vld [vmem:[%s1583 + $0xd8] sm:$0xff]
  %v1612 = vld [vmem:[%s1583 + $0xe0] sm:$0xff]
  %v1613 = vld [vmem:[%s1583 + $0xe8] sm:$0xff]
  %v1614 = vld [vmem:[%s1583 + $0xf0] sm:$0xff]
  %v1615 = vld [vmem:[%s1583 + $0xf8] sm:$0xff]
  %s1616 = scalar_lea.vmem %s3, 4
  %v1617 = vld [vmem:[%s1616] sm:$0x1]
  %v1619 = vlaneseq
  %v1620 = vshrl.u32 %v1619, 7
  %v1621 = vsub.s32 0, %v1620
  %v1622 = vrot.slane %v1617, %v1621
  %1624 = vmatprep.subr.mxu0 0.0
  %1625 = vmatpush1.msra.mxu0 %v1584
  %1626 = vmatprep.subr.mxu0 0.0
  %1627 = vmatpush1.msra.mxu0 %v1585
  %1628 = vmatprep.subr.mxu0 0.0
  %1629 = vmatpush1.msra.mxu0 %v1586
  %1630 = vmatprep.subr.mxu0 0.0
  %1631 = vmatpush1.msra.mxu0 %v1587
  %1632 = vmatprep.subr.mxu0 0.0
  %1633 = vmatpush1.msra.mxu0 %v1588
  %1634 = vmatprep.subr.mxu0 0.0
  %1635 = vmatpush1.msra.mxu0 %v1589
  %1636 = vmatprep.subr.mxu0 0.0
  %1637 = vmatpush1.msra.mxu0 %v1590
  %1638 = vmatprep.subr.mxu0 0.0
  %1639 = vmatpush1.msra.mxu0 %v1591
  %1640 = vmatprep.subr.mxu0 0.0
  %1641 = vmatpush1.msra.mxu0 %v1592
  %1642 = vmatprep.subr.mxu0 0.0
  %1643 = vmatpush1.msra.mxu0 %v1593
  %1644 = vmatprep.subr.mxu0 0.0
  %1645 = vmatpush1.msra.mxu0 %v1594
  %1646 = vmatprep.subr.mxu0 0.0
  %1647 = vmatpush1.msra.mxu0 %v1595
  %1648 = vmatprep.subr.mxu0 0.0
  %1649 = vmatpush1.msra.mxu0 %v1596
  %1650 = vmatprep.subr.mxu0 0.0
  %1651 = vmatpush1.msra.mxu0 %v1597
  %1652 = vmatprep.subr.mxu0 0.0
  %1653 = vmatpush1.msra.mxu0 %v1598
  %1654 = vmatprep.subr.mxu0 0.0
  %1655 = vmatpush1.msra.mxu0 %v1599
  %1656 = vmatprep.subr.mxu0 0.0
  %1657 = vmatpush1.msra.mxu0 %v1600
  %1658 = vmatprep.subr.mxu0 0.0
  %1659 = vmatpush1.msra.mxu0 %v1601
  %1660 = vmatprep.subr.mxu0 0.0
  %1661 = vmatpush1.msra.mxu0 %v1602
  %1662 = vmatprep.subr.mxu0 0.0
  %1663 = vmatpush1.msra.mxu0 %v1603
  %1664 = vmatprep.subr.mxu0 0.0
  %1665 = vmatpush1.msra.mxu0 %v1604
  %1666 = vmatprep.subr.mxu0 0.0
  %1667 = vmatpush1.msra.mxu0 %v1605
  %1668 = vmatprep.subr.mxu0 0.0
  %1669 = vmatpush1.msra.mxu0 %v1606
  %1670 = vmatprep.subr.mxu0 0.0
  %1671 = vmatpush1.msra.mxu0 %v1607
  %1672 = vmatprep.subr.mxu0 0.0
  %1673 = vmatpush1.msra.mxu0 %v1608
  %1674 = vmatprep.subr.mxu0 0.0
  %1675 = vmatpush1.msra.mxu0 %v1609
  %1676 = vmatprep.subr.mxu0 0.0
  %1677 = vmatpush1.msra.mxu0 %v1610
  %1678 = vmatprep.subr.mxu0 0.0
  %1679 = vmatpush1.msra.mxu0 %v1611
  %1680 = vmatprep.subr.mxu0 0.0
  %1681 = vmatpush1.msra.mxu0 %v1612
  %1682 = vmatprep.subr.mxu0 0.0
  %1683 = vmatpush1.msra.mxu0 %v1613
  %1684 = vmatprep.subr.mxu0 0.0
  %1685 = vmatpush1.msra.mxu0 %v1614
  %1686 = vmatprep.subr.mxu0 0.0
  %1687 = vmatpush1.msra.mxu0 %v1615
  %1688 = vmatprep.mubr.f32.mxu0 %v1451
  %1689 = vmatmul.mubr.f32.gmra.mrb[0].mxu0 %v1581
  %v1690 = vpop.f32.mrb[0].mxu0
  %v1691 = vadd.f32 %v1622, %v1690
  %v1692 = vpop.f32.mrb[0].mxu0
  %1693 = vmatprep.mubr.f32.mxu0 %v1452
  %1694 = vmatmul.mubr.f32.gmra.mrb[0].mxu0 %v1582
  %v1695 = vpop.f32.mrb[0].mxu0
  %v1696 = vadd.f32 %v1622, %v1695
  %v1697 = vpop.f32.mrb[0].mxu0
  %1698 = vdwg.mxu0
  %s1699 = scalar_lea.vmem %s4, 4
  %v1700 = vld [vmem:[%s1699] sm:$0x1]
  %vm1701 = vcmp.gt.f32.partialorder %v1691, 0.0
  %vm1702 = vcmp.gt.f32.partialorder %v1696, 0.0
  %v1704 = vlaneseq
  %v1705 = vshrl.u32 %v1704, 7
  %v1706 = vsub.s32 0, %v1705
  %v1707 = vrot.slane %v1700, %v1706
  %v1709 = vmul.f32 %v1707, %v1691
  %v1710 = vmul.f32 %v1707, %v1696
  %v1711 = vsel %vm1701, %v1691, %v1709
  %v1712 = vsel %vm1702, %v1696, %v1710
  %v1713 = vmax.f32 %v1451, %v1711
  %v1714 = vmax.f32 %v1452, %v1712
  %v1715 = vlaneseq
  %v1716 = vshrl.u32 %v1715, 7
  %v1717 = vsub.s32 0, %v1716
  %v1718 = vrot.slane %v1711, %v1717
  %v1719 = vsel %vm76, %v1718, -3.4e+38
  %v1720 = vsel %vm77, %v1718, -3.4e+38
  %v1721 = vmax.f32 %v1719, -3.4e+38
  %v1722 = vmax.f32 %v1720, -3.4e+38
  %v1723 = vlaneseq
  %v1724 = vshrl.u32 %v1723, 7
  %v1725 = vsub.s32 1, %v1724
  %v1726 = vrot.slane %v1711, %v1725
  %v1727 = vsel %vm102, %v1726, -3.4e+38
  %v1728 = vsel %vm103, %v1726, -3.4e+38
  %v1729 = vmax.f32 %v1721, %v1727
  %v1730 = vmax.f32 %v1722, %v1728
  %v1731 = vlaneseq
  %v1732 = vshrl.u32 %v1731, 7
  %v1733 = vsub.s32 2, %v1732
  %v1734 = vrot.slane %v1711, %v1733
  %v1735 = vsel %vm128, %v1734, -3.4e+38
  %v1736 = vsel %vm129, %v1734, -3.4e+38
  %v1737 = vmax.f32 %v1729, %v1735
  %v1738 = vmax.f32 %v1730, %v1736
  %v1739 = vlaneseq
  %v1740 = vshrl.u32 %v1739, 7
  %v1741 = vsub.s32 3, %v1740
  %v1742 = vrot.slane %v1711, %v1741
  %v1743 = vsel %vm154, %v1742, -3.4e+38
  %v1744 = vsel %vm155, %v1742, -3.4e+38
  %v1745 = vmax.f32 %v1737, %v1743
  %v1746 = vmax.f32 %v1738, %v1744
  %v1747 = vlaneseq
  %v1748 = vshrl.u32 %v1747, 7
  %v1749 = vsub.s32 4, %v1748
  %v1750 = vrot.slane %v1711, %v1749
  %v1751 = vsel %vm180, %v1750, -3.4e+38
  %v1752 = vsel %vm181, %v1750, -3.4e+38
  %v1753 = vmax.f32 %v1745, %v1751
  %v1754 = vmax.f32 %v1746, %v1752
  %v1755 = vlaneseq
  %v1756 = vshrl.u32 %v1755, 7
  %v1757 = vsub.s32 5, %v1756
  %v1758 = vrot.slane %v1711, %v1757
  %v1759 = vsel %vm206, %v1758, -3.4e+38
  %v1760 = vsel %vm207, %v1758, -3.4e+38
  %v1761 = vmax.f32 %v1753, %v1759
  %v1762 = vmax.f32 %v1754, %v1760
  %v1763 = vlaneseq
  %v1764 = vshrl.u32 %v1763, 7
  %v1765 = vsub.s32 6, %v1764
  %v1766 = vrot.slane %v1711, %v1765
  %v1767 = vsel %vm232, %v1766, -3.4e+38
  %v1768 = vsel %vm233, %v1766, -3.4e+38
  %v1769 = vmax.f32 %v1761, %v1767
  %v1770 = vmax.f32 %v1762, %v1768
  %v1771 = vlaneseq
  %v1772 = vshrl.u32 %v1771, 7
  %v1773 = vsub.s32 7, %v1772
  %v1774 = vrot.slane %v1711, %v1773
  %v1775 = vsel %vm258, %v1774, -3.4e+38
  %v1776 = vsel %vm259, %v1774, -3.4e+38
  %v1777 = vmax.f32 %v1769, %v1775
  %v1778 = vmax.f32 %v1770, %v1776
  %v1779 = vlaneseq
  %v1780 = vshrl.u32 %v1779, 7
  %v1781 = vsub.s32 0, %v1780
  %v1782 = vrot.slane %v1712, %v1781
  %v1783 = vsel %vm284, %v1782, -3.4e+38
  %v1784 = vsel %vm285, %v1782, -3.4e+38
  %v1785 = vmax.f32 %v1777, %v1783
  %v1786 = vmax.f32 %v1778, %v1784
  %v1787 = vlaneseq
  %v1788 = vshrl.u32 %v1787, 7
  %v1789 = vsub.s32 1, %v1788
  %v1790 = vrot.slane %v1712, %v1789
  %v1791 = vsel %vm310, %v1790, -3.4e+38
  %v1792 = vsel %vm311, %v1790, -3.4e+38
  %v1793 = vmax.f32 %v1785, %v1791
  %v1794 = vmax.f32 %v1786, %v1792
  %v1795 = vlaneseq
  %v1796 = vshrl.u32 %v1795, 7
  %v1797 = vsub.s32 2, %v1796
  %v1798 = vrot.slane %v1712, %v1797
  %v1799 = vsel %vm336, %v1798, -3.4e+38
  %v1800 = vsel %vm337, %v1798, -3.4e+38
  %v1801 = vmax.f32 %v1793, %v1799
  %v1802 = vmax.f32 %v1794, %v1800
  %v1803 = vlaneseq
  %v1804 = vshrl.u32 %v1803, 7
  %v1805 = vsub.s32 3, %v1804
  %v1806 = vrot.slane %v1712, %v1805
  %v1807 = vsel %vm362, %v1806, -3.4e+38
  %v1808 = vsel %vm363, %v1806, -3.4e+38
  %v1809 = vmax.f32 %v1801, %v1807
  %v1810 = vmax.f32 %v1802, %v1808
  %v1811 = vlaneseq
  %v1812 = vshrl.u32 %v1811, 7
  %v1813 = vsub.s32 4, %v1812
  %v1814 = vrot.slane %v1712, %v1813
  %v1815 = vsel %vm388, %v1814, -3.4e+38
  %v1816 = vsel %vm389, %v1814, -3.4e+38
  %v1817 = vmax.f32 %v1809, %v1815
  %v1818 = vmax.f32 %v1810, %v1816
  %v1819 = vlaneseq
  %v1820 = vshrl.u32 %v1819, 7
  %v1821 = vsub.s32 5, %v1820
  %v1822 = vrot.slane %v1712, %v1821
  %v1823 = vsel %vm414, %v1822, -3.4e+38
  %v1824 = vsel %vm415, %v1822, -3.4e+38
  %v1825 = vmax.f32 %v1817, %v1823
  %v1826 = vmax.f32 %v1818, %v1824
  %v1827 = vlaneseq
  %v1828 = vshrl.u32 %v1827, 7
  %v1829 = vsub.s32 6, %v1828
  %v1830 = vrot.slane %v1712, %v1829
  %v1831 = vsel %vm440, %v1830, -3.4e+38
  %v1832 = vsel %vm441, %v1830, -3.4e+38
  %v1833 = vmax.f32 %v1825, %v1831
  %v1834 = vmax.f32 %v1826, %v1832
  %v1835 = vlaneseq
  %v1836 = vshrl.u32 %v1835, 7
  %v1837 = vsub.s32 7, %v1836
  %v1838 = vrot.slane %v1712, %v1837
  %v1839 = vsel %vm466, %v1838, -3.4e+38
  %v1840 = vsel %vm467, %v1838, -3.4e+38
  %v1841 = vmax.f32 %v1833, %v1839
  %v1842 = vmax.f32 %v1834, %v1840
  %v1843 = vsel %vm474, %v1841, 0.0
  %v1844 = vsel %vm475, %v1842, 0.0
  %s1845 = scalar_lea.vmem %s2, 1280
  %v1846 = vld [vmem:[%s1845] sm:$0xff]
  %v1847 = vld [vmem:[%s1845 + $0x8] sm:$0xff]
  %v1848 = vld [vmem:[%s1845 + $0x10] sm:$0xff]
  %v1849 = vld [vmem:[%s1845 + $0x18] sm:$0xff]
  %v1850 = vld [vmem:[%s1845 + $0x20] sm:$0xff]
  %v1851 = vld [vmem:[%s1845 + $0x28] sm:$0xff]
  %v1852 = vld [vmem:[%s1845 + $0x30] sm:$0xff]
  %v1853 = vld [vmem:[%s1845 + $0x38] sm:$0xff]
  %v1854 = vld [vmem:[%s1845 + $0x40] sm:$0xff]
  %v1855 = vld [vmem:[%s1845 + $0x48] sm:$0xff]
  %v1856 = vld [vmem:[%s1845 + $0x50] sm:$0xff]
  %v1857 = vld [vmem:[%s1845 + $0x58] sm:$0xff]
  %v1858 = vld [vmem:[%s1845 + $0x60] sm:$0xff]
  %v1859 = vld [vmem:[%s1845 + $0x68] sm:$0xff]
  %v1860 = vld [vmem:[%s1845 + $0x70] sm:$0xff]
  %v1861 = vld [vmem:[%s1845 + $0x78] sm:$0xff]
  %v1862 = vld [vmem:[%s1845 + $0x80] sm:$0xff]
  %v1863 = vld [vmem:[%s1845 + $0x88] sm:$0xff]
  %v1864 = vld [vmem:[%s1845 + $0x90] sm:$0xff]
  %v1865 = vld [vmem:[%s1845 + $0x98] sm:$0xff]
  %v1866 = vld [vmem:[%s1845 + $0xa0] sm:$0xff]
  %v1867 = vld [vmem:[%s1845 + $0xa8] sm:$0xff]
  %v1868 = vld [vmem:[%s1845 + $0xb0] sm:$0xff]
  %v1869 = vld [vmem:[%s1845 + $0xb8] sm:$0xff]
  %v1870 = vld [vmem:[%s1845 + $0xc0] sm:$0xff]
  %v1871 = vld [vmem:[%s1845 + $0xc8] sm:$0xff]
  %v1872 = vld [vmem:[%s1845 + $0xd0] sm:$0xff]
  %v1873 = vld [vmem:[%s1845 + $0xd8] sm:$0xff]
  %v1874 = vld [vmem:[%s1845 + $0xe0] sm:$0xff]
  %v1875 = vld [vmem:[%s1845 + $0xe8] sm:$0xff]
  %v1876 = vld [vmem:[%s1845 + $0xf0] sm:$0xff]
  %v1877 = vld [vmem:[%s1845 + $0xf8] sm:$0xff]
  %s1878 = scalar_lea.vmem %s3, 5
  %v1879 = vld [vmem:[%s1878] sm:$0x1]
  %v1881 = vlaneseq
  %v1882 = vshrl.u32 %v1881, 7
  %v1883 = vsub.s32 0, %v1882
  %v1884 = vrot.slane %v1879, %v1883
  %1886 = vmatprep.subr.mxu0 0.0
  %1887 = vmatpush1.msra.mxu0 %v1846
  %1888 = vmatprep.subr.mxu0 0.0
  %1889 = vmatpush1.msra.mxu0 %v1847
  %1890 = vmatprep.subr.mxu0 0.0
  %1891 = vmatpush1.msra.mxu0 %v1848
  %1892 = vmatprep.subr.mxu0 0.0
  %1893 = vmatpush1.msra.mxu0 %v1849
  %1894 = vmatprep.subr.mxu0 0.0
  %1895 = vmatpush1.msra.mxu0 %v1850
  %1896 = vmatprep.subr.mxu0 0.0
  %1897 = vmatpush1.msra.mxu0 %v1851
  %1898 = vmatprep.subr.mxu0 0.0
  %1899 = vmatpush1.msra.mxu0 %v1852
  %1900 = vmatprep.subr.mxu0 0.0
  %1901 = vmatpush1.msra.mxu0 %v1853
  %1902 = vmatprep.subr.mxu0 0.0
  %1903 = vmatpush1.msra.mxu0 %v1854
  %1904 = vmatprep.subr.mxu0 0.0
  %1905 = vmatpush1.msra.mxu0 %v1855
  %1906 = vmatprep.subr.mxu0 0.0
  %1907 = vmatpush1.msra.mxu0 %v1856
  %1908 = vmatprep.subr.mxu0 0.0
  %1909 = vmatpush1.msra.mxu0 %v1857
  %1910 = vmatprep.subr.mxu0 0.0
  %1911 = vmatpush1.msra.mxu0 %v1858
  %1912 = vmatprep.subr.mxu0 0.0
  %1913 = vmatpush1.msra.mxu0 %v1859
  %1914 = vmatprep.subr.mxu0 0.0
  %1915 = vmatpush1.msra.mxu0 %v1860
  %1916 = vmatprep.subr.mxu0 0.0
  %1917 = vmatpush1.msra.mxu0 %v1861
  %1918 = vmatprep.subr.mxu0 0.0
  %1919 = vmatpush1.msra.mxu0 %v1862
  %1920 = vmatprep.subr.mxu0 0.0
  %1921 = vmatpush1.msra.mxu0 %v1863
  %1922 = vmatprep.subr.mxu0 0.0
  %1923 = vmatpush1.msra.mxu0 %v1864
  %1924 = vmatprep.subr.mxu0 0.0
  %1925 = vmatpush1.msra.mxu0 %v1865
  %1926 = vmatprep.subr.mxu0 0.0
  %1927 = vmatpush1.msra.mxu0 %v1866
  %1928 = vmatprep.subr.mxu0 0.0
  %1929 = vmatpush1.msra.mxu0 %v1867
  %1930 = vmatprep.subr.mxu0 0.0
  %1931 = vmatpush1.msra.mxu0 %v1868
  %1932 = vmatprep.subr.mxu0 0.0
  %1933 = vmatpush1.msra.mxu0 %v1869
  %1934 = vmatprep.subr.mxu0 0.0
  %1935 = vmatpush1.msra.mxu0 %v1870
  %1936 = vmatprep.subr.mxu0 0.0
  %1937 = vmatpush1.msra.mxu0 %v1871
  %1938 = vmatprep.subr.mxu0 0.0
  %1939 = vmatpush1.msra.mxu0 %v1872
  %1940 = vmatprep.subr.mxu0 0.0
  %1941 = vmatpush1.msra.mxu0 %v1873
  %1942 = vmatprep.subr.mxu0 0.0
  %1943 = vmatpush1.msra.mxu0 %v1874
  %1944 = vmatprep.subr.mxu0 0.0
  %1945 = vmatpush1.msra.mxu0 %v1875
  %1946 = vmatprep.subr.mxu0 0.0
  %1947 = vmatpush1.msra.mxu0 %v1876
  %1948 = vmatprep.subr.mxu0 0.0
  %1949 = vmatpush1.msra.mxu0 %v1877
  %1950 = vmatprep.mubr.f32.mxu0 %v1711
  %1951 = vmatmul.mubr.f32.gmra.mrb[0].mxu0 %v1843
  %v1952 = vpop.f32.mrb[0].mxu0
  %v1953 = vadd.f32 %v1884, %v1952
  %v1954 = vpop.f32.mrb[0].mxu0
  %1955 = vmatprep.mubr.f32.mxu0 %v1712
  %1956 = vmatmul.mubr.f32.gmra.mrb[0].mxu0 %v1844
  %v1957 = vpop.f32.mrb[0].mxu0
  %v1958 = vadd.f32 %v1884, %v1957
  %v1959 = vpop.f32.mrb[0].mxu0
  %1960 = vdwg.mxu0
  %s1961 = scalar_lea.vmem %s4, 5
  %v1962 = vld [vmem:[%s1961] sm:$0x1]
  %vm1963 = vcmp.gt.f32.partialorder %v1953, 0.0
  %vm1964 = vcmp.gt.f32.partialorder %v1958, 0.0
  %v1966 = vlaneseq
  %v1967 = vshrl.u32 %v1966, 7
  %v1968 = vsub.s32 0, %v1967
  %v1969 = vrot.slane %v1962, %v1968
  %v1971 = vmul.f32 %v1969, %v1953
  %v1972 = vmul.f32 %v1969, %v1958
  %v1973 = vsel %vm1963, %v1953, %v1971
  %v1974 = vsel %vm1964, %v1958, %v1972
  %v1975 = vmax.f32 %v1713, %v1973
  %v1976 = vmax.f32 %v1714, %v1974
  %v1977 = vld [vmem:[%s5] sm:$0xff]
  %v1978 = vld [vmem:[%s5 + $0x8] sm:$0xff]
  %v1979 = vld [vmem:[%s5 + $0x10] sm:$0xff]
  %v1980 = vld [vmem:[%s5 + $0x18] sm:$0xff]
  %v1981 = vld [vmem:[%s5 + $0x20] sm:$0xff]
  %v1982 = vld [vmem:[%s5 + $0x28] sm:$0xff]
  %v1983 = vld [vmem:[%s5 + $0x30] sm:$0xff]
  %v1984 = vld [vmem:[%s5 + $0x38] sm:$0xff]
  %v1985 = vld [vmem:[%s5 + $0x40] sm:$0xff]
  %v1986 = vld [vmem:[%s5 + $0x48] sm:$0xff]
  %v1987 = vld [vmem:[%s5 + $0x50] sm:$0xff]
  %v1988 = vld [vmem:[%s5 + $0x58] sm:$0xff]
  %v1989 = vld [vmem:[%s5 + $0x60] sm:$0xff]
  %v1990 = vld [vmem:[%s5 + $0x68] sm:$0xff]
  %v1991 = vld [vmem:[%s5 + $0x70] sm:$0xff]
  %v1992 = vld [vmem:[%s5 + $0x78] sm:$0xff]
  %v1993 = vld [vmem:[%s6] sm:$0x1]
  %v1995 = vlaneseq
  %v1996 = vshrl.u32 %v1995, 7
  %v1997 = vsub.s32 0, %v1996
  %v1998 = vrot.slane %v1993, %v1997
  %2000 = vmatprep.subr.mxu0 0.0
  %2001 = vmatpush1.msra.mxu0 %v1977
  %2002 = vmatprep.subr.mxu0 0.0
  %2003 = vmatpush1.msra.mxu0 %v1978
  %2004 = vmatprep.subr.mxu0 0.0
  %2005 = vmatpush1.msra.mxu0 %v1979
  %2006 = vmatprep.subr.mxu0 0.0
  %2007 = vmatpush1.msra.mxu0 %v1980
  %2008 = vmatprep.subr.mxu0 0.0
  %2009 = vmatpush1.msra.mxu0 %v1981
  %2010 = vmatprep.subr.mxu0 0.0
  %2011 = vmatpush1.msra.mxu0 %v1982
  %2012 = vmatprep.subr.mxu0 0.0
  %2013 = vmatpush1.msra.mxu0 %v1983
  %2014 = vmatprep.subr.mxu0 0.0
  %2015 = vmatpush1.msra.mxu0 %v1984
  %2016 = vmatprep.subr.mxu0 0.0
  %2017 = vmatpush1.msra.mxu0 %v1985
  %2018 = vmatprep.subr.mxu0 0.0
  %2019 = vmatpush1.msra.mxu0 %v1986
  %2020 = vmatprep.subr.mxu0 0.0
  %2021 = vmatpush1.msra.mxu0 %v1987
  %2022 = vmatprep.subr.mxu0 0.0
  %2023 = vmatpush1.msra.mxu0 %v1988
  %2024 = vmatprep.subr.mxu0 0.0
  %2025 = vmatpush1.msra.mxu0 %v1989
  %2026 = vmatprep.subr.mxu0 0.0
  %2027 = vmatpush1.msra.mxu0 %v1990
  %2028 = vmatprep.subr.mxu0 0.0
  %2029 = vmatpush1.msra.mxu0 %v1991
  %2030 = vmatprep.subr.mxu0 0.0
  %2031 = vmatpush1.msra.mxu0 %v1992
  %2032 = vmatprep.subr.mxu0 0.0
  %2033 = vmatpush1.msra.mxu0 0.0
  %2034 = vmatprep.subr.mxu0 0.0
  %2035 = vmatpush1.msra.mxu0 0.0
  %2036 = vmatprep.subr.mxu0 0.0
  %2037 = vmatpush1.msra.mxu0 0.0
  %2038 = vmatprep.subr.mxu0 0.0
  %2039 = vmatpush1.msra.mxu0 0.0
  %2040 = vmatprep.subr.mxu0 0.0
  %2041 = vmatpush1.msra.mxu0 0.0
  %2042 = vmatprep.subr.mxu0 0.0
  %2043 = vmatpush1.msra.mxu0 0.0
  %2044 = vmatprep.subr.mxu0 0.0
  %2045 = vmatpush1.msra.mxu0 0.0
  %2046 = vmatprep.subr.mxu0 0.0
  %2047 = vmatpush1.msra.mxu0 0.0
  %2048 = vmatprep.subr.mxu0 0.0
  %2049 = vmatpush1.msra.mxu0 0.0
  %2050 = vmatprep.subr.mxu0 0.0
  %2051 = vmatpush1.msra.mxu0 0.0
  %2052 = vmatprep.subr.mxu0 0.0
  %2053 = vmatpush1.msra.mxu0 0.0
  %2054 = vmatprep.subr.mxu0 0.0
  %2055 = vmatpush1.msra.mxu0 0.0
  %2056 = vmatprep.subr.mxu0 0.0
  %2057 = vmatpush1.msra.mxu0 0.0
  %2058 = vmatprep.subr.mxu0 0.0
  %2059 = vmatpush1.msra.mxu0 0.0
  %2060 = vmatprep.subr.mxu0 0.0
  %2061 = vmatpush1.msra.mxu0 0.0
  %2062 = vmatprep.subr.mxu0 0.0
  %2063 = vmatpush1.msra.mxu0 0.0
  %2064 = vmatprep.mubr.f32.mxu0 0.0
  %2065 = vmatmul.mubr.f32.gmra.mrb[0].mxu0 %v1975
  %v2066 = vpop.f32.mrb[0].mxu0
  %v2067 = vadd.f32 %v1998, %v2066
  %v2068 = vpop.f32.mrb[0].mxu0
  %2069 = vmatprep.mubr.f32.mxu0 0.0
  %2070 = vmatmul.mubr.f32.gmra.mrb[0].mxu0 %v1976
  %v2071 = vpop.f32.mrb[0].mxu0
  %v2072 = vadd.f32 %v1998, %v2071
  %v2073 = vpop.f32.mrb[0].mxu0
  %2074 = vdwg.mxu0
  %vm2075 = vcmp.gt.f32.partialorder %v2067, 0.0
  %vm2076 = vcmp.gt.f32.partialorder %v2072, 0.0
  %v2077 = vld [vmem:[%s7] sm:$0x1]
  %v2079 = vlaneseq
  %v2080 = vshrl.u32 %v2079, 7
  %v2081 = vsub.s32 0, %v2080
  %v2082 = vrot.slane %v2077, %v2081
  %v2084 = vmul.f32 %v2082, %v2067
  %v2085 = vmul.f32 %v2082, %v2072
  %v2086 = vsel %vm2075, %v2067, %v2084
  %v2087 = vsel %vm2076, %v2072, %v2085
  %v2088 = vld [vmem:[%s8] sm:$0xff]
  %v2089 = vld [vmem:[%s8 + $0x8] sm:$0xff]
  %v2090 = vld [vmem:[%s8 + $0x10] sm:$0xff]
  %v2091 = vld [vmem:[%s8 + $0x18] sm:$0xff]
  %v2092 = vld [vmem:[%s8 + $0x20] sm:$0xff]
  %v2093 = vld [vmem:[%s8 + $0x28] sm:$0xff]
  %v2094 = vld [vmem:[%s8 + $0x30] sm:$0xff]
  %v2095 = vld [vmem:[%s8 + $0x38] sm:$0xff]
  %v2096 = vld [vmem:[%s8 + $0x40] sm:$0xff]
  %v2097 = vld [vmem:[%s8 + $0x48] sm:$0xff]
  %v2098 = vld [vmem:[%s8 + $0x50] sm:$0xff]
  %v2099 = vld [vmem:[%s8 + $0x58] sm:$0xff]
  %v2100 = vld [vmem:[%s8 + $0x60] sm:$0xff]
  %v2101 = vld [vmem:[%s8 + $0x68] sm:$0xff]
  %v2102 = vld [vmem:[%s8 + $0x70] sm:$0xff]
  %v2103 = vld [vmem:[%s8 + $0x78] sm:$0xff]
  %v2104 = vld [vmem:[%s9] sm:$0x1]
  %v2106 = vlaneseq
  %v2107 = vshrl.u32 %v2106, 7
  %v2108 = vsub.s32 0, %v2107
  %v2109 = vrot.slane %v2104, %v2108
  %2111 = vmatprep.subr.mxu0 0.0
  %2112 = vmatpush1.msra.mxu0 %v2088
  %2113 = vmatprep.subr.mxu0 0.0
  %2114 = vmatpush1.msra.mxu0 %v2089
  %2115 = vmatprep.subr.mxu0 0.0
  %2116 = vmatpush1.msra.mxu0 %v2090
  %2117 = vmatprep.subr.mxu0 0.0
  %2118 = vmatpush1.msra.mxu0 %v2091
  %2119 = vmatprep.subr.mxu0 0.0
  %2120 = vmatpush1.msra.mxu0 %v2092
  %2121 = vmatprep.subr.mxu0 0.0
  %2122 = vmatpush1.msra.mxu0 %v2093
  %2123 = vmatprep.subr.mxu0 0.0
  %2124 = vmatpush1.msra.mxu0 %v2094
  %2125 = vmatprep.subr.mxu0 0.0
  %2126 = vmatpush1.msra.mxu0 %v2095
  %2127 = vmatprep.subr.mxu0 0.0
  %2128 = vmatpush1.msra.mxu0 %v2096
  %2129 = vmatprep.subr.mxu0 0.0
  %2130 = vmatpush1.msra.mxu0 %v2097
  %2131 = vmatprep.subr.mxu0 0.0
  %2132 = vmatpush1.msra.mxu0 %v2098
  %2133 = vmatprep.subr.mxu0 0.0
  %2134 = vmatpush1.msra.mxu0 %v2099
  %2135 = vmatprep.subr.mxu0 0.0
  %2136 = vmatpush1.msra.mxu0 %v2100
  %2137 = vmatprep.subr.mxu0 0.0
  %2138 = vmatpush1.msra.mxu0 %v2101
  %2139 = vmatprep.subr.mxu0 0.0
  %2140 = vmatpush1.msra.mxu0 %v2102
  %2141 = vmatprep.subr.mxu0 0.0
  %2142 = vmatpush1.msra.mxu0 %v2103
  %2143 = vmatprep.subr.mxu0 0.0
  %2144 = vmatpush1.msra.mxu0 0.0
  %2145 = vmatprep.subr.mxu0 0.0
  %2146 = vmatpush1.msra.mxu0 0.0
  %2147 = vmatprep.subr.mxu0 0.0
  %2148 = vmatpush1.msra.mxu0 0.0
  %2149 = vmatprep.subr.mxu0 0.0
  %2150 = vmatpush1.msra.mxu0 0.0
  %2151 = vmatprep.subr.mxu0 0.0
  %2152 = vmatpush1.msra.mxu0 0.0
  %2153 = vmatprep.subr.mxu0 0.0
  %2154 = vmatpush1.msra.mxu0 0.0
  %2155 = vmatprep.subr.mxu0 0.0
  %2156 = vmatpush1.msra.mxu0 0.0
  %2157 = vmatprep.subr.mxu0 0.0
  %2158 = vmatpush1.msra.mxu0 0.0
  %2159 = vmatprep.subr.mxu0 0.0
  %2160 = vmatpush1.msra.mxu0 0.0
  %2161 = vmatprep.subr.mxu0 0.0
  %2162 = vmatpush1.msra.mxu0 0.0
  %2163 = vmatprep.subr.mxu0 0.0
  %2164 = vmatpush1.msra.mxu0 0.0
  %2165 = vmatprep.subr.mxu0 0.0
  %2166 = vmatpush1.msra.mxu0 0.0
  %2167 = vmatprep.subr.mxu0 0.0
  %2168 = vmatpush1.msra.mxu0 0.0
  %2169 = vmatprep.subr.mxu0 0.0
  %2170 = vmatpush1.msra.mxu0 0.0
  %2171 = vmatprep.subr.mxu0 0.0
  %2172 = vmatpush1.msra.mxu0 0.0
  %2173 = vmatprep.subr.mxu0 0.0
  %2174 = vmatpush1.msra.mxu0 0.0
  %2175 = vmatprep.mubr.f32.mxu0 0.0
  %2176 = vmatmul.mubr.f32.gmra.mrb[0].mxu0 %v2086
  %v2177 = vpop.f32.mrb[0].mxu0
  %v2178 = vadd.f32 %v2109, %v2177
  %v2179 = vpop.f32.mrb[0].mxu0
  %2180 = vmatprep.mubr.f32.mxu0 0.0
  %2181 = vmatmul.mubr.f32.gmra.mrb[0].mxu0 %v2087
  %v2182 = vpop.f32.mrb[0].mxu0
  %v2183 = vadd.f32 %v2109, %v2182
  %v2184 = vpop.f32.mrb[0].mxu0
  %2185 = vdwg.mxu0
  %2186 = vst [vmem:[%s10] sm:$0xff] %v2178
  %2187 = vst [vmem:[%s10 + $0x8] sm:$0xff] %v2183
  // Predicated region
  $region42: #{config1_forward.1} parent=0 // pred_check
    _
  $region43: #{config1_forward.1} parent=0 // pred_check_branch
    %2189 = sbr.rel (0) target = $region45
  $region44: #{config1_forward.1} parent=0 // pred_region
    _
  $region45: #{config1_forward.1} parent=0 // pred_fallthru
    _
  // Predicated region
  $region46: #{config1_forward.1} parent=0 // pred_check
    _
  $region47: #{config1_forward.1} parent=0 // pred_check_branch
    %2191 = sbr.rel (0) target = $region49
  $region48: #{config1_forward.1} parent=0 // pred_region
    _
  $region49: #{config1_forward.1} parent=0 // pred_fallthru
    _

</llo_original>
